<compile_context>
chip_gen: v5e
topology: v5e:2x2
jax: 0.10.0
libtpu: 0.0.40
codegen_flags: <defaults>
</compile_context>

<pallas_src>
import functools

import jax
import jax.numpy as jnp
from jax.experimental import pallas as pl
from jax.experimental.pallas import tpu as pltpu

TILE_M = 512   # lane tile over the GEMM M axis (multiple of 128)
LANE = 128
SUB = 16       # bf16 sublane tile: pad Cout and K to multiples of 16


def _round_up(x, m):
    return (x + m - 1) // m * m


# ---------------------------------------------------------------------------
# Pallas kernel: one (Coutp, tile_m) block of  out = act(w @ x + b),
# optionally max-accumulated over the 4 pooling-window chunks (grid axis 1).
# ---------------------------------------------------------------------------
def _gemm_bias_act_kernel(w_ref, x_ref, b_ref, o_ref, *, relu, pooled):
    acc = jnp.dot(w_ref[...], x_ref[0], preferred_element_type=jnp.float32)
    acc = acc + b_ref[...]                      # (Coutp, 1) broadcast over lanes
    if relu:
        acc = jnp.maximum(acc, 0.0)
    acc = acc.astype(o_ref.dtype)
    if not pooled:
        o_ref[...] = acc
    else:
        j = pl.program_id(1)                    # pooling-window chunk (hi, wi)

        @pl.when(j == 0)
        def _():
            o_ref[...] = acc

        @pl.when(j > 0)
        def _():
            o_ref[...] = jnp.maximum(o_ref[...], acc)


def gemm_bias_act(wp, bp, x, *, relu, pooled, out_dtype):
    """Fused GEMM + bias (+ReLU) (+2x2 max-pool over the leading chunk axis).

    wp : (Coutp, Kp)  bf16  pre-padded weights   (resident across the grid)
    bp : (Coutp, 1)   f32   pre-padded bias      (resident)
    x  : (nc, Kp, M)  bf16  im2col'd activations (nc = 4 if pooled else 1)
    Returns (Coutp, Mp) in out_dtype; caller slices [:Cout, :M].
    """
    coutp, kp = wp.shape
    nc, kx, m = x.shape
    assert kx == kp
    tile_m = min(TILE_M, _round_up(m, LANE))
    mp = _round_up(m, tile_m)
    if mp != m:
        x = jnp.pad(x, ((0, 0), (0, 0), (0, mp - m)))

    kernel = functools.partial(_gemm_bias_act_kernel, relu=relu, pooled=pooled)
    return pl.pallas_call(
        kernel,
        grid=(mp // tile_m, nc),
        in_specs=[
            pl.BlockSpec((coutp, kp), lambda i, j: (0, 0)),          # weights
            pl.BlockSpec((1, kp, tile_m), lambda i, j: (j, 0, i)),   # activations
            pl.BlockSpec((coutp, 1), lambda i, j: (0, 0)),           # bias
        ],
        out_specs=pl.BlockSpec((coutp, tile_m), lambda i, j: (0, i)),
        out_shape=jax.ShapeDtypeStruct((coutp, mp), out_dtype),
        compiler_params=pltpu.CompilerParams(
            dimension_semantics=("parallel", "arbitrary")),
    )(wp, x, bp)


# ---------------------------------------------------------------------------
# Glue: channels-major im2col (bf16 BEFORE the 25x expansion)
# ---------------------------------------------------------------------------
def _im2col_bf16(x_cnhw, kp, *, k=5, pad=2, pool=False):
    """x:(C,N,H,W) -> bf16 columns with K order (c, kh, kw) == PyTorch flattening.

    pool=False: (1, kp, N*H*W)            columns ordered (n, h, w)
    pool=True : (4, kp, N*(H//2)*(W//2))  chunk = (hi, wi) pooling offset,
                columns ordered (n, ho, wo) within each chunk, so a following
                2x2 max-pool is an elementwise max across the chunk axis.
    K is zero-padded from C*k*k up to kp (weights padded identically).
    """
    C, N, H, W = x_cnhw.shape
    xb = x_cnhw.astype(jnp.bfloat16)             # cast before the 25x blow-up
    xp = jnp.pad(xb, ((0, 0), (0, 0), (pad, pad), (pad, pad)))
    patches = [xp[:, :, i:i + H, j:j + W] for i in range(k) for j in range(k)]
    p = jnp.stack(patches, axis=1)               # (C, k*k, N, H, W)
    kk = C * k * k
    if not pool:
        cols = p.reshape(1, kk, N * H * W)
    else:
        ho, wo = H // 2, W // 2
        q = N * ho * wo
        p = p.reshape(C, k * k, N, ho, 2, wo, 2)
        p = p.transpose(4, 6, 0, 1, 2, 3, 5)     # (hi, wi, C, kk, N, Ho, Wo)
        cols = p.reshape(4, kk, q)
    if kp != kk:
        cols = jnp.pad(cols, ((0, 0), (0, kp - kk), (0, 0)))
    return cols


# ---------------------------------------------------------------------------
# Parameters (PyTorch layout) + one-time preprocessing (pad + bf16 cast)
# ---------------------------------------------------------------------------
def init_params(key):
    ks = jax.random.split(key, 10)

    def conv_p(kw, kb, cout, cin):
        w = jax.random.normal(kw, (cout, cin, 5, 5), jnp.float32) * 0.05
        b = jax.random.normal(kb, (cout,), jnp.float32) * 0.05
        return w, b

    p = {}
    p["c1_w"], p["c1_b"] = conv_p(ks[0], ks[1], 16, 1)
    p["c2a_w"], p["c2a_b"] = conv_p(ks[2], ks[3], 32, 16)
    p["c2b_w"], p["c2b_b"] = conv_p(ks[4], ks[5], 32, 32)
    p["c3_w"], p["c3_b"] = conv_p(ks[6], ks[7], 64, 32)
    # nn.Linear weight layout (out_features, in_features); used directly as the
    # (Cout, K) GEMM operand -> never transposed.
    p["fc_w"] = jax.random.normal(ks[8], (10, 64 * 7 * 7), jnp.float32) * 0.02
    p["fc_b"] = jax.random.normal(ks[9], (10,), jnp.float32) * 0.02
    return p


def prepare_params(raw):
    """One-time weight preprocessing (hoisted out of the forward pass):
    reshape conv weights to (Cout, Cin*25), pad Cout/K to multiples of 16,
    cast weights to bf16, pad biases (kept f32 for the epilogue)."""
    def prep(w, b):
        if w.ndim == 4:
            cout, cin, kh, kw = w.shape
            w = w.reshape(cout, cin * kh * kw)
        cout, k = w.shape
        coutp, kp = _round_up(cout, SUB), _round_up(k, SUB)
        wp = jnp.pad(w, ((0, coutp - cout), (0, kp - k))).astype(jnp.bfloat16)
        bp = jnp.pad(b, (0, coutp - cout)).astype(jnp.float32).reshape(coutp, 1)
        return {"w": wp, "b": bp}

    return {
        "c1": prep(raw["c1_w"], raw["c1_b"]),
        "c2a": prep(raw["c2a_w"], raw["c2a_b"]),
        "c2b": prep(raw["c2b_w"], raw["c2b_b"]),
        "c3": prep(raw["c3_w"], raw["c3_b"]),
        "fc": prep(raw["fc_w"], raw["fc_b"]),
    }


# ---------------------------------------------------------------------------
# Forward (mirrors the PyTorch CNN module)
# ---------------------------------------------------------------------------
def cnn_forward(prep, x_nchw):
    N = x_nchw.shape[0]
    # Channels-major layout throughout: (C, N, H, W).
    x = jnp.transpose(x_nchw, (1, 0, 2, 3))                      # (1, N, 28, 28)

    # conv1: Conv(1->16,5,1,2)+ReLU+MaxPool2 (pool fused)   28x28 -> 14x14
    l = prep["c1"]
    cols = _im2col_bf16(x, l["w"].shape[1], pool=True)
    y = gemm_bias_act(l["w"], l["b"], cols, relu=True, pooled=True,
                      out_dtype=jnp.bfloat16)
    x = y[:16, :N * 14 * 14].reshape(16, N, 14, 14)

    # conv2: Conv(16->32)+ReLU, Conv(32->32)+ReLU+MaxPool2 (fused)  -> 7x7
    l = prep["c2a"]
    cols = _im2col_bf16(x, l["w"].shape[1])
    y = gemm_bias_act(l["w"], l["b"], cols, relu=True, pooled=False,
                      out_dtype=jnp.bfloat16)
    x = y[:32, :N * 14 * 14].reshape(32, N, 14, 14)

    l = prep["c2b"]
    cols = _im2col_bf16(x, l["w"].shape[1], pool=True)
    y = gemm_bias_act(l["w"], l["b"], cols, relu=True, pooled=True,
                      out_dtype=jnp.bfloat16)
    x = y[:32, :N * 7 * 7].reshape(32, N, 7, 7)

    # conv3: Conv(32->64)+ReLU
    l = prep["c3"]
    cols = _im2col_bf16(x, l["w"].shape[1])
    y = gemm_bias_act(l["w"], l["b"], cols, relu=True, pooled=False,
                      out_dtype=jnp.bfloat16)
    x = y[:64, :N * 7 * 7].reshape(64, N, 7, 7)

    # Flatten in PyTorch NCHW .view order (feature = c*49 + h*7 + w), then
    # Linear(3136 -> 10) as the same transposed GEMM: (10,3136) @ (3136, N).
    xt = x.transpose(0, 2, 3, 1).reshape(1, 64 * 7 * 7, N)       # (1, 3136, N)
    l = prep["fc"]
    out = gemm_bias_act(l["w"], l["b"], xt, relu=False, pooled=False,
                        out_dtype=jnp.float32)
    return out[:10, :N].T                                        # (N, 10) f32


if __name__ == "__main__":
    key = jax.random.PRNGKey(0)
    k_param, k_in = jax.random.split(key)
    raw = init_params(k_param)
    prep = prepare_params(raw)   # one-time weight pad + bf16 cast (hoisted)
    # Linear(64*7*7, 10) implies 1x28x28 inputs (MNIST-style); batch = 2.
    x = jax.random.normal(k_in, (2, 1, 28, 28), jnp.float32)

    fwd = jax.jit(cnn_forward)
    out = fwd(prep, x)
    jax.block_until_ready(out)
    assert out.shape == (2, 10) and out.dtype == jnp.float32
    assert bool(jnp.all(jnp.isfinite(out)))
    print("KERNEL_OK")
</pallas_src>

<mosaic_0001>
module attributes {stable_mosaic.version = 11 : i64} {
  func.func @_gemm_bias_act_kernel(%arg0: i32, %arg1: i32, %arg2: memref<16x32xbf16, #tpu.memory_space<vmem>>, %arg3: memref<1x32x512xbf16, #tpu.memory_space<vmem>>, %arg4: memref<16x1xf32, #tpu.memory_space<vmem>>, %arg5: memref<16x512xbf16, #tpu.memory_space<vmem>>) attributes {dimension_semantics = [#tpu.dimension_semantics<parallel>, #tpu.dimension_semantics<arbitrary>], iteration_bounds = array<i64: 1, 4>, scalar_prefetch = 0 : i64, scratch_operands = 0 : i64, tpu.core_type = #tpu.core_type<tc>, window_params = [{pipeline_mode = #tpu.pipeline_mode<synchronous>, transform_indices = @transform_0, window_bounds = array<i64: 16, 32>}, {transform_indices = @transform_1, window_bounds = array<i64: 1, 32, 512>}, {pipeline_mode = #tpu.pipeline_mode<synchronous>, transform_indices = @transform_2, window_bounds = array<i64: 16, 1>}, {transform_indices = @transform_3, window_bounds = array<i64: 16, 512>}]} {
    %c0 = arith.constant 0 : index
    %c0_0 = arith.constant 0 : index
    %0 = vector.load %arg2[%c0, %c0_0] : memref<16x32xbf16, #tpu.memory_space<vmem>>, vector<16x32xbf16>
    %c0_1 = arith.constant 0 : index
    %c0_2 = arith.constant 0 : index
    %c0_3 = arith.constant 0 : index
    %1 = vector.load %arg3[%c0_1, %c0_2, %c0_3] : memref<1x32x512xbf16, #tpu.memory_space<vmem>>, vector<1x32x512xbf16>
    %2 = vector.shape_cast %1 : vector<1x32x512xbf16> to vector<32x512xbf16>
    %cst = arith.constant dense<0.000000e+00> : vector<16x512xf32>
    %3 = tpu.matmul %0, %2, %cst {dimension_numbers = #tpu.dot_dimension_numbers<[1], [0], [0], [1], [0, 0, 1, 1], [], []>} : vector<16x32xbf16>, vector<32x512xbf16>, vector<16x512xf32> -> vector<16x512xf32>
    %c0_4 = arith.constant 0 : index
    %c0_5 = arith.constant 0 : index
    %4 = vector.load %arg4[%c0_4, %c0_5] : memref<16x1xf32, #tpu.memory_space<vmem>>, vector<16x1xf32>
    %5 = vector.broadcast %4 : vector<16x1xf32> to vector<16x512xf32>
    %6 = arith.addf %3, %5 : vector<16x512xf32>
    %cst_6 = arith.constant 0.000000e+00 : f32
    %7 = vector.broadcast %cst_6 : f32 to vector<16x512xf32>
    %8 = arith.maximumf %6, %7 : vector<16x512xf32>
    %9 = arith.truncf %8 : vector<16x512xf32> to vector<16x512xbf16>
    %c0_i32 = arith.constant 0 : i32
    %10 = arith.cmpi eq, %arg1, %c0_i32 : i32
    %11 = arith.extui %10 : i1 to i32
    %c0_i32_7 = arith.constant 0 : i32
    %12 = arith.cmpi ne, %11, %c0_i32_7 : i32
    scf.if %12 {
      %c0_10 = arith.constant 0 : index
      %c0_11 = arith.constant 0 : index
      %16 = vector.load %arg5[%c0_10, %c0_11] : memref<16x512xbf16, #tpu.memory_space<vmem>>, vector<16x512xbf16>
      tpu.vector_store %arg5[%c0_10, %c0_11], %9 {strides = array<i32>} : memref<16x512xbf16, #tpu.memory_space<vmem>>, vector<16x512xbf16>,
    } else {
    }
    %c0_i32_8 = arith.constant 0 : i32
    %13 = arith.cmpi sgt, %arg1, %c0_i32_8 : i32
    %14 = arith.extui %13 : i1 to i32
    %c0_i32_9 = arith.constant 0 : i32
    %15 = arith.cmpi ne, %14, %c0_i32_9 : i32
    scf.if %15 {
      %c0_10 = arith.constant 0 : index
      %c0_11 = arith.constant 0 : index
      %16 = vector.load %arg5[%c0_10, %c0_11] : memref<16x512xbf16, #tpu.memory_space<vmem>>, vector<16x512xbf16>
      %17 = arith.maximumf %16, %9 : vector<16x512xbf16>
      %c0_12 = arith.constant 0 : index
      %c0_13 = arith.constant 0 : index
      %18 = vector.load %arg5[%c0_12, %c0_13] : memref<16x512xbf16, #tpu.memory_space<vmem>>, vector<16x512xbf16>
      tpu.vector_store %arg5[%c0_12, %c0_13], %17 {strides = array<i32>} : memref<16x512xbf16, #tpu.memory_space<vmem>>, vector<16x512xbf16>,
    } else {
    }
    return
  }
  func.func @transform_0(%arg0: i32, %arg1: i32) -> (i32, i32) {
    %c0_i32 = arith.constant 0 : i32
    %c0_i32_0 = arith.constant 0 : i32
    %c0_i32_1 = arith.constant 0 : i32
    return %c0_i32, %c0_i32_0 : i32, i32
  }
  func.func @transform_1(%arg0: i32, %arg1: i32) -> (i32, i32, i32) {
    %c0_i32 = arith.constant 0 : i32
    %c0_i32_0 = arith.constant 0 : i32
    return %arg1, %c0_i32, %arg0 : i32, i32, i32
  }
  func.func @transform_2(%arg0: i32, %arg1: i32) -> (i32, i32) {
    %c0_i32 = arith.constant 0 : i32
    %c0_i32_0 = arith.constant 0 : i32
    %c0_i32_1 = arith.constant 0 : i32
    return %c0_i32, %c0_i32_0 : i32, i32
  }
  func.func @transform_3(%arg0: i32, %arg1: i32) -> (i32, i32) {
    %c0_i32 = arith.constant 0 : i32
    %c0_i32_0 = arith.constant 0 : i32
    return %c0_i32, %arg0 : i32, i32
  }
}

module attributes {stable_mosaic.version = 11 : i64} {
  func.func @_gemm_bias_act_kernel(%arg0: i32, %arg1: i32, %arg2: memref<32x400xbf16, #tpu.memory_space<vmem>>, %arg3: memref<1x400x512xbf16, #tpu.memory_space<vmem>>, %arg4: memref<32x1xf32, #tpu.memory_space<vmem>>, %arg5: memref<32x512xbf16, #tpu.memory_space<vmem>>) attributes {dimension_semantics = [#tpu.dimension_semantics<parallel>, #tpu.dimension_semantics<arbitrary>], iteration_bounds = array<i64: 1, 1>, scalar_prefetch = 0 : i64, scratch_operands = 0 : i64, tpu.core_type = #tpu.core_type<tc>, window_params = [{pipeline_mode = #tpu.pipeline_mode<synchronous>, transform_indices = @transform_0, window_bounds = array<i64: 32, 400>}, {transform_indices = @transform_1, window_bounds = array<i64: 1, 400, 512>}, {pipeline_mode = #tpu.pipeline_mode<synchronous>, transform_indices = @transform_2, window_bounds = array<i64: 32, 1>}, {transform_indices = @transform_3, window_bounds = array<i64: 32, 512>}]} {
    %c0 = arith.constant 0 : index
    %c0_0 = arith.constant 0 : index
    %0 = vector.load %arg2[%c0, %c0_0] : memref<32x400xbf16, #tpu.memory_space<vmem>>, vector<32x400xbf16>
    %c0_1 = arith.constant 0 : index
    %c0_2 = arith.constant 0 : index
    %c0_3 = arith.constant 0 : index
    %1 = vector.load %arg3[%c0_1, %c0_2, %c0_3] : memref<1x400x512xbf16, #tpu.memory_space<vmem>>, vector<1x400x512xbf16>
    %2 = vector.shape_cast %1 : vector<1x400x512xbf16> to vector<400x512xbf16>
    %cst = arith.constant dense<0.000000e+00> : vector<32x512xf32>
    %3 = tpu.matmul %0, %2, %cst {dimension_numbers = #tpu.dot_dimension_numbers<[1], [0], [0], [1], [0, 0, 1, 1], [], []>} : vector<32x400xbf16>, vector<400x512xbf16>, vector<32x512xf32> -> vector<32x512xf32>
    %c0_4 = arith.constant 0 : index
    %c0_5 = arith.constant 0 : index
    %4 = vector.load %arg4[%c0_4, %c0_5] : memref<32x1xf32, #tpu.memory_space<vmem>>, vector<32x1xf32>
    %5 = vector.broadcast %4 : vector<32x1xf32> to vector<32x512xf32>
    %6 = arith.addf %3, %5 : vector<32x512xf32>
    %cst_6 = arith.constant 0.000000e+00 : f32
    %7 = vector.broadcast %cst_6 : f32 to vector<32x512xf32>
    %8 = arith.maximumf %6, %7 : vector<32x512xf32>
    %9 = arith.truncf %8 : vector<32x512xf32> to vector<32x512xbf16>
    %c0_7 = arith.constant 0 : index
    %c0_8 = arith.constant 0 : index
    %10 = vector.load %arg5[%c0_7, %c0_8] : memref<32x512xbf16, #tpu.memory_space<vmem>>, vector<32x512xbf16>
    tpu.vector_store %arg5[%c0_7, %c0_8], %9 {strides = array<i32>} : memref<32x512xbf16, #tpu.memory_space<vmem>>, vector<32x512xbf16>,
    return
  }
  func.func @transform_0(%arg0: i32, %arg1: i32) -> (i32, i32) {
    %c0_i32 = arith.constant 0 : i32
    %c0_i32_0 = arith.constant 0 : i32
    %c0_i32_1 = arith.constant 0 : i32
    return %c0_i32, %c0_i32_0 : i32, i32
  }
  func.func @transform_1(%arg0: i32, %arg1: i32) -> (i32, i32, i32) {
    %c0_i32 = arith.constant 0 : i32
    %c0_i32_0 = arith.constant 0 : i32
    return %arg1, %c0_i32, %arg0 : i32, i32, i32
  }
  func.func @transform_2(%arg0: i32, %arg1: i32) -> (i32, i32) {
    %c0_i32 = arith.constant 0 : i32
    %c0_i32_0 = arith.constant 0 : i32
    %c0_i32_1 = arith.constant 0 : i32
    return %c0_i32, %c0_i32_0 : i32, i32
  }
  func.func @transform_3(%arg0: i32, %arg1: i32) -> (i32, i32) {
    %c0_i32 = arith.constant 0 : i32
    %c0_i32_0 = arith.constant 0 : i32
    return %c0_i32, %arg0 : i32, i32
  }
}

module attributes {stable_mosaic.version = 11 : i64} {
  func.func @_gemm_bias_act_kernel(%arg0: i32, %arg1: i32, %arg2: memref<32x800xbf16, #tpu.memory_space<vmem>>, %arg3: memref<1x800x128xbf16, #tpu.memory_space<vmem>>, %arg4: memref<32x1xf32, #tpu.memory_space<vmem>>, %arg5: memref<32x128xbf16, #tpu.memory_space<vmem>>) attributes {dimension_semantics = [#tpu.dimension_semantics<parallel>, #tpu.dimension_semantics<arbitrary>], iteration_bounds = array<i64: 1, 4>, scalar_prefetch = 0 : i64, scratch_operands = 0 : i64, tpu.core_type = #tpu.core_type<tc>, window_params = [{pipeline_mode = #tpu.pipeline_mode<synchronous>, transform_indices = @transform_0, window_bounds = array<i64: 32, 800>}, {transform_indices = @transform_1, window_bounds = array<i64: 1, 800, 128>}, {pipeline_mode = #tpu.pipeline_mode<synchronous>, transform_indices = @transform_2, window_bounds = array<i64: 32, 1>}, {transform_indices = @transform_3, window_bounds = array<i64: 32, 128>}]} {
    %c0 = arith.constant 0 : index
    %c0_0 = arith.constant 0 : index
    %0 = vector.load %arg2[%c0, %c0_0] : memref<32x800xbf16, #tpu.memory_space<vmem>>, vector<32x800xbf16>
    %c0_1 = arith.constant 0 : index
    %c0_2 = arith.constant 0 : index
    %c0_3 = arith.constant 0 : index
    %1 = vector.load %arg3[%c0_1, %c0_2, %c0_3] : memref<1x800x128xbf16, #tpu.memory_space<vmem>>, vector<1x800x128xbf16>
    %2 = vector.shape_cast %1 : vector<1x800x128xbf16> to vector<800x128xbf16>
    %cst = arith.constant dense<0.000000e+00> : vector<32x128xf32>
    %3 = tpu.matmul %0, %2, %cst {dimension_numbers = #tpu.dot_dimension_numbers<[1], [0], [0], [1], [0, 0, 1, 1], [], []>} : vector<32x800xbf16>, vector<800x128xbf16>, vector<32x128xf32> -> vector<32x128xf32>
    %c0_4 = arith.constant 0 : index
    %c0_5 = arith.constant 0 : index
    %4 = vector.load %arg4[%c0_4, %c0_5] : memref<32x1xf32, #tpu.memory_space<vmem>>, vector<32x1xf32>
    %5 = vector.broadcast %4 : vector<32x1xf32> to vector<32x128xf32>
    %6 = arith.addf %3, %5 : vector<32x128xf32>
    %cst_6 = arith.constant 0.000000e+00 : f32
    %7 = vector.broadcast %cst_6 : f32 to vector<32x128xf32>
    %8 = arith.maximumf %6, %7 : vector<32x128xf32>
    %9 = arith.truncf %8 : vector<32x128xf32> to vector<32x128xbf16>
    %c0_i32 = arith.constant 0 : i32
    %10 = arith.cmpi eq, %arg1, %c0_i32 : i32
    %11 = arith.extui %10 : i1 to i32
    %c0_i32_7 = arith.constant 0 : i32
    %12 = arith.cmpi ne, %11, %c0_i32_7 : i32
    scf.if %12 {
      %c0_10 = arith.constant 0 : index
      %c0_11 = arith.constant 0 : index
      %16 = vector.load %arg5[%c0_10, %c0_11] : memref<32x128xbf16, #tpu.memory_space<vmem>>, vector<32x128xbf16>
      tpu.vector_store %arg5[%c0_10, %c0_11], %9 {strides = array<i32>} : memref<32x128xbf16, #tpu.memory_space<vmem>>, vector<32x128xbf16>,
    } else {
    }
    %c0_i32_8 = arith.constant 0 : i32
    %13 = arith.cmpi sgt, %arg1, %c0_i32_8 : i32
    %14 = arith.extui %13 : i1 to i32
    %c0_i32_9 = arith.constant 0 : i32
    %15 = arith.cmpi ne, %14, %c0_i32_9 : i32
    scf.if %15 {
      %c0_10 = arith.constant 0 : index
      %c0_11 = arith.constant 0 : index
      %16 = vector.load %arg5[%c0_10, %c0_11] : memref<32x128xbf16, #tpu.memory_space<vmem>>, vector<32x128xbf16>
      %17 = arith.maximumf %16, %9 : vector<32x128xbf16>
      %c0_12 = arith.constant 0 : index
      %c0_13 = arith.constant 0 : index
      %18 = vector.load %arg5[%c0_12, %c0_13] : memref<32x128xbf16, #tpu.memory_space<vmem>>, vector<32x128xbf16>
      tpu.vector_store %arg5[%c0_12, %c0_13], %17 {strides = array<i32>} : memref<32x128xbf16, #tpu.memory_space<vmem>>, vector<32x128xbf16>,
    } else {
    }
    return
  }
  func.func @transform_0(%arg0: i32, %arg1: i32) -> (i32, i32) {
    %c0_i32 = arith.constant 0 : i32
    %c0_i32_0 = arith.constant 0 : i32
    %c0_i32_1 = arith.constant 0 : i32
    return %c0_i32, %c0_i32_0 : i32, i32
  }
  func.func @transform_1(%arg0: i32, %arg1: i32) -> (i32, i32, i32) {
    %c0_i32 = arith.constant 0 : i32
    %c0_i32_0 = arith.constant 0 : i32
    return %arg1, %c0_i32, %arg0 : i32, i32, i32
  }
  func.func @transform_2(%arg0: i32, %arg1: i32) -> (i32, i32) {
    %c0_i32 = arith.constant 0 : i32
    %c0_i32_0 = arith.constant 0 : i32
    %c0_i32_1 = arith.constant 0 : i32
    return %c0_i32, %c0_i32_0 : i32, i32
  }
  func.func @transform_3(%arg0: i32, %arg1: i32) -> (i32, i32) {
    %c0_i32 = arith.constant 0 : i32
    %c0_i32_0 = arith.constant 0 : i32
    return %c0_i32, %arg0 : i32, i32
  }
}

module attributes {stable_mosaic.version = 11 : i64} {
  func.func @_gemm_bias_act_kernel(%arg0: i32, %arg1: i32, %arg2: memref<64x800xbf16, #tpu.memory_space<vmem>>, %arg3: memref<1x800x128xbf16, #tpu.memory_space<vmem>>, %arg4: memref<64x1xf32, #tpu.memory_space<vmem>>, %arg5: memref<64x128xbf16, #tpu.memory_space<vmem>>) attributes {dimension_semantics = [#tpu.dimension_semantics<parallel>, #tpu.dimension_semantics<arbitrary>], iteration_bounds = array<i64: 1, 1>, scalar_prefetch = 0 : i64, scratch_operands = 0 : i64, tpu.core_type = #tpu.core_type<tc>, window_params = [{pipeline_mode = #tpu.pipeline_mode<synchronous>, transform_indices = @transform_0, window_bounds = array<i64: 64, 800>}, {transform_indices = @transform_1, window_bounds = array<i64: 1, 800, 128>}, {pipeline_mode = #tpu.pipeline_mode<synchronous>, transform_indices = @transform_2, window_bounds = array<i64: 64, 1>}, {transform_indices = @transform_3, window_bounds = array<i64: 64, 128>}]} {
    %c0 = arith.constant 0 : index
    %c0_0 = arith.constant 0 : index
    %0 = vector.load %arg2[%c0, %c0_0] : memref<64x800xbf16, #tpu.memory_space<vmem>>, vector<64x800xbf16>
    %c0_1 = arith.constant 0 : index
    %c0_2 = arith.constant 0 : index
    %c0_3 = arith.constant 0 : index
    %1 = vector.load %arg3[%c0_1, %c0_2, %c0_3] : memref<1x800x128xbf16, #tpu.memory_space<vmem>>, vector<1x800x128xbf16>
    %2 = vector.shape_cast %1 : vector<1x800x128xbf16> to vector<800x128xbf16>
    %cst = arith.constant dense<0.000000e+00> : vector<64x128xf32>
    %3 = tpu.matmul %0, %2, %cst {dimension_numbers = #tpu.dot_dimension_numbers<[1], [0], [0], [1], [0, 0, 1, 1], [], []>} : vector<64x800xbf16>, vector<800x128xbf16>, vector<64x128xf32> -> vector<64x128xf32>
    %c0_4 = arith.constant 0 : index
    %c0_5 = arith.constant 0 : index
    %4 = vector.load %arg4[%c0_4, %c0_5] : memref<64x1xf32, #tpu.memory_space<vmem>>, vector<64x1xf32>
    %5 = vector.broadcast %4 : vector<64x1xf32> to vector<64x128xf32>
    %6 = arith.addf %3, %5 : vector<64x128xf32>
    %cst_6 = arith.constant 0.000000e+00 : f32
    %7 = vector.broadcast %cst_6 : f32 to vector<64x128xf32>
    %8 = arith.maximumf %6, %7 : vector<64x128xf32>
    %9 = arith.truncf %8 : vector<64x128xf32> to vector<64x128xbf16>
    %c0_7 = arith.constant 0 : index
    %c0_8 = arith.constant 0 : index
    %10 = vector.load %arg5[%c0_7, %c0_8] : memref<64x128xbf16, #tpu.memory_space<vmem>>, vector<64x128xbf16>
    tpu.vector_store %arg5[%c0_7, %c0_8], %9 {strides = array<i32>} : memref<64x128xbf16, #tpu.memory_space<vmem>>, vector<64x128xbf16>,
    return
  }
  func.func @transform_0(%arg0: i32, %arg1: i32) -> (i32, i32) {
    %c0_i32 = arith.constant 0 : i32
    %c0_i32_0 = arith.constant 0 : i32
    %c0_i32_1 = arith.constant 0 : i32
    return %c0_i32, %c0_i32_0 : i32, i32
  }
  func.func @transform_1(%arg0: i32, %arg1: i32) -> (i32, i32, i32) {
    %c0_i32 = arith.constant 0 : i32
    %c0_i32_0 = arith.constant 0 : i32
    return %arg1, %c0_i32, %arg0 : i32, i32, i32
  }
  func.func @transform_2(%arg0: i32, %arg1: i32) -> (i32, i32) {
    %c0_i32 = arith.constant 0 : i32
    %c0_i32_0 = arith.constant 0 : i32
    %c0_i32_1 = arith.constant 0 : i32
    return %c0_i32, %c0_i32_0 : i32, i32
  }
  func.func @transform_3(%arg0: i32, %arg1: i32) -> (i32, i32) {
    %c0_i32 = arith.constant 0 : i32
    %c0_i32_0 = arith.constant 0 : i32
    return %c0_i32, %arg0 : i32, i32
  }
}

module attributes {stable_mosaic.version = 11 : i64} {
  func.func @_gemm_bias_act_kernel(%arg0: i32, %arg1: i32, %arg2: memref<16x3136xbf16, #tpu.memory_space<vmem>>, %arg3: memref<1x3136x128xbf16, #tpu.memory_space<vmem>>, %arg4: memref<16x1xf32, #tpu.memory_space<vmem>>, %arg5: memref<16x128xf32, #tpu.memory_space<vmem>>) attributes {dimension_semantics = [#tpu.dimension_semantics<parallel>, #tpu.dimension_semantics<arbitrary>], iteration_bounds = array<i64: 1, 1>, scalar_prefetch = 0 : i64, scratch_operands = 0 : i64, tpu.core_type = #tpu.core_type<tc>, window_params = [{pipeline_mode = #tpu.pipeline_mode<synchronous>, transform_indices = @transform_0, window_bounds = array<i64: 16, 3136>}, {transform_indices = @transform_1, window_bounds = array<i64: 1, 3136, 128>}, {pipeline_mode = #tpu.pipeline_mode<synchronous>, transform_indices = @transform_2, window_bounds = array<i64: 16, 1>}, {transform_indices = @transform_3, window_bounds = array<i64: 16, 128>}]} {
    %c0 = arith.constant 0 : index
    %c0_0 = arith.constant 0 : index
    %0 = vector.load %arg2[%c0, %c0_0] : memref<16x3136xbf16, #tpu.memory_space<vmem>>, vector<16x3136xbf16>
    %c0_1 = arith.constant 0 : index
    %c0_2 = arith.constant 0 : index
    %c0_3 = arith.constant 0 : index
    %1 = vector.load %arg3[%c0_1, %c0_2, %c0_3] : memref<1x3136x128xbf16, #tpu.memory_space<vmem>>, vector<1x3136x128xbf16>
    %2 = vector.shape_cast %1 : vector<1x3136x128xbf16> to vector<3136x128xbf16>
    %cst = arith.constant dense<0.000000e+00> : vector<16x128xf32>
    %3 = tpu.matmul %0, %2, %cst {dimension_numbers = #tpu.dot_dimension_numbers<[1], [0], [0], [1], [0, 0, 1, 1], [], []>} : vector<16x3136xbf16>, vector<3136x128xbf16>, vector<16x128xf32> -> vector<16x128xf32>
    %c0_4 = arith.constant 0 : index
    %c0_5 = arith.constant 0 : index
    %4 = vector.load %arg4[%c0_4, %c0_5] : memref<16x1xf32, #tpu.memory_space<vmem>>, vector<16x1xf32>
    %5 = vector.broadcast %4 : vector<16x1xf32> to vector<16x128xf32>
    %6 = arith.addf %3, %5 : vector<16x128xf32>
    %c0_6 = arith.constant 0 : index
    %c0_7 = arith.constant 0 : index
    %7 = vector.load %arg5[%c0_6, %c0_7] : memref<16x128xf32, #tpu.memory_space<vmem>>, vector<16x128xf32>
    tpu.vector_store %arg5[%c0_6, %c0_7], %6 {strides = array<i32>} : memref<16x128xf32, #tpu.memory_space<vmem>>, vector<16x128xf32>,
    return
  }
  func.func @transform_0(%arg0: i32, %arg1: i32) -> (i32, i32) {
    %c0_i32 = arith.constant 0 : i32
    %c0_i32_0 = arith.constant 0 : i32
    %c0_i32_1 = arith.constant 0 : i32
    return %c0_i32, %c0_i32_0 : i32, i32
  }
  func.func @transform_1(%arg0: i32, %arg1: i32) -> (i32, i32, i32) {
    %c0_i32 = arith.constant 0 : i32
    %c0_i32_0 = arith.constant 0 : i32
    return %arg1, %c0_i32, %arg0 : i32, i32, i32
  }
  func.func @transform_2(%arg0: i32, %arg1: i32) -> (i32, i32) {
    %c0_i32 = arith.constant 0 : i32
    %c0_i32_0 = arith.constant 0 : i32
    %c0_i32_1 = arith.constant 0 : i32
    return %c0_i32, %c0_i32_0 : i32, i32
  }
  func.func @transform_3(%arg0: i32, %arg1: i32) -> (i32, i32) {
    %c0_i32 = arith.constant 0 : i32
    %c0_i32_0 = arith.constant 0 : i32
    return %c0_i32, %arg0 : i32, i32
  }
}

</mosaic_0001>

<llo_original>
// kernel: cnn_forward.5
$region0: #{cnn_forward.5}
  #allocation0 [shape = 'u32[]', space=smem, size = 0x4, offset = 0x4, fixed_abs, tag = 'smem constant byte address 0x4 - core index']
  #allocation1 [shape = 'u32[72,128]{1,0:T(1,128)}', space=vmem, size = 0x9000, scoped, tag = 'internal scratch']
  %s0 = inlined_call_operand.vmem [shape: bf16[16,32], index: 0, kind: input, shape index: {}]
  %s1 = inlined_call_operand.vmem [shape: bf16[4,32,512], index: 1, kind: input, shape index: {}]
  %s2 = inlined_call_operand.vmem [shape: f32[16,1], index: 2, kind: input, shape index: {}]
  %s3 = inlined_call_operand.vmem [shape: bf16[16,512], index: 3, kind: output, shape index: {}]
  %s4 = sld [smem:[#allocation0]]
  $region53: #{cnn_forward.5} parent=0
    _
  %s6 = ssub.s32 1, %s4
  %s7 = scalar_select 0, %s6, %s4
  loop: start=0, step=1, limit=6
  $region2: #{cnn_forward.5} parent=0 // loop_pre_header
    _
  $region3: #{cnn_forward.5} parent=0 // loop_header
    %s9 = sphi 0, %s13
    %p10 = scmp.ge.s32.totalorder %s9, 6
    %s16 = sphi 0, %s28
    %s17 = sphi 0, %s24
    %s18 = sphi 0, %s16
    %s19 = sphi 0, %s17
    %s20 = sphi 0, %s18
    %s21 = sphi 0, %s19
    %s29 = sphi 0, %s29
    %s31 = sphi 0, %s29
    %s32 = sphi 0, %s31
    %s46 = sphi 0, %s32
    %s54 = sphi 0, %s56
    %s57 = sphi 0, %s54
    %s58 = sphi 0, %s57
    %s74 = sphi 0, %s58
    %s78 = sphi 0, %s78
    %s80 = sphi 0, %s78
    %s81 = sphi 0, %s80
    %s95 = sphi 0, %s81
    %s101 = sphi 0, %s103
    %s104 = sphi 0, %s101
    %s105 = sphi 0, %s104
    %s121 = sphi 0, %s105
  $region4: #{cnn_forward.5} parent=0 // loop_header_branch
    %12 = sbr.rel (%p10) target = $region8
  $region5: #{cnn_forward.5} parent=0 // loop_body
    %s14 = ssub.s32 %s9, 1
    %s15 = ssub.s32 %s9, 2
    %s22 = sadd.s32 1, %s17
    %p23 = scmp.ge.s32.totalorder %s22, 4
    %s24 = scalar_select %p23, 0, %s22
    %s25 = sadd.s32 1, %s16
    %s26 = scalar_select %p23, %s25, %s16
    %p27 = scmp.ge.s32.totalorder %s26, 1
    %s28 = scalar_select %p27, 0, %s26
    %s30 = sadd.s32 %s29, 1
    %p33 = scmp.eq.s32.totalorder %s9, 3
    %p34 = scmp.ne.s32.totalorder %s29, %s31
    %p35 = scmp.eq.s32.totalorder %s9, 0
    %p36 = por %p34, %p35
    %p37 = scmp.ne.s32.totalorder %s29, %s31
    %p38 = scmp.eq.s32.totalorder %s14, 3
    %p39 = por %p37, %p38
    %p40 = scmp.ne.s32.totalorder %s31, %s32
    %p41 = scmp.eq.s32.totalorder %s14, 0
    %p42 = por %p40, %p41
    %p43 = scmp.ne.s32.totalorder %s31, %s32
    %p44 = scmp.eq.s32.totalorder %s15, 3
    %p45 = por %p43, %p44
    %p47 = scmp.ne.s32.totalorder %s32, %s46
    %p48 = scmp.eq.s32.totalorder %s15, 0
    %p49 = por %p47, %p48
    %s50 = ssub.s32 %s17, %s24
    %s51 = ssub.s32 %s16, %s28
    %s52 = sor.u32 %s50, %s51
    %p53 = scmp.eq.s32.totalorder %s52, 0
    %s55 = sadd.s32 %s54, 1
    %s56 = scalar_select %p53, %s54, %s55
    %p59 = pneg %p53
    %p60 = scmp.eq.s32.totalorder %s9, 3
    %p61 = por %p59, %p60
    %p62 = scmp.ne.s32.totalorder %s54, %s57
    %p63 = scmp.eq.s32.totalorder %s9, 0
    %p64 = por %p62, %p63
    %p65 = scmp.ne.s32.totalorder %s54, %s57
    %p66 = scmp.eq.s32.totalorder %s14, 3
    %p67 = por %p65, %p66
    %p68 = scmp.ne.s32.totalorder %s57, %s58
    %p69 = scmp.eq.s32.totalorder %s14, 0
    %p70 = por %p68, %p69
    %p71 = scmp.ne.s32.totalorder %s57, %s58
    %p72 = scmp.eq.s32.totalorder %s15, 3
    %p73 = por %p71, %p72
    %p75 = scmp.ne.s32.totalorder %s58, %s74
    %p76 = scmp.eq.s32.totalorder %s15, 0
    %p77 = por %p75, %p76
    %s79 = sadd.s32 %s78, 1
    %p82 = scmp.eq.s32.totalorder %s9, 3
    %p83 = scmp.ne.s32.totalorder %s78, %s80
    %p84 = scmp.eq.s32.totalorder %s9, 0
    %p85 = por %p83, %p84
    %p86 = scmp.ne.s32.totalorder %s78, %s80
    %p87 = scmp.eq.s32.totalorder %s14, 3
    %p88 = por %p86, %p87
    %p89 = scmp.ne.s32.totalorder %s80, %s81
    %p90 = scmp.eq.s32.totalorder %s14, 0
    %p91 = por %p89, %p90
    %p92 = scmp.ne.s32.totalorder %s80, %s81
    %p93 = scmp.eq.s32.totalorder %s15, 3
    %p94 = por %p92, %p93
    %p96 = scmp.ne.s32.totalorder %s81, %s95
    %p97 = scmp.eq.s32.totalorder %s15, 0
    %p98 = por %p96, %p97
    %s99 = ssub.s32 %s16, %s28
    %p100 = scmp.eq.s32.totalorder %s99, 0
    %s102 = sadd.s32 %s101, 1
    %s103 = scalar_select %p100, %s101, %s102
    %p106 = pneg %p100
    %p107 = scmp.eq.s32.totalorder %s9, 3
    %p108 = por %p106, %p107
    %p109 = scmp.ne.s32.totalorder %s101, %s104
    %p110 = scmp.eq.s32.totalorder %s9, 0
    %p111 = por %p109, %p110
    %p112 = scmp.ne.s32.totalorder %s101, %s104
    %p113 = scmp.eq.s32.totalorder %s14, 3
    %p114 = por %p112, %p113
    %p115 = scmp.ne.s32.totalorder %s104, %s105
    %p116 = scmp.eq.s32.totalorder %s14, 0
    %p117 = por %p115, %p116
    %p118 = scmp.ne.s32.totalorder %s104, %s105
    %p119 = scmp.eq.s32.totalorder %s15, 3
    %p120 = por %p118, %p119
    %p122 = scmp.ne.s32.totalorder %s105, %s121
    %p123 = scmp.eq.s32.totalorder %s15, 0
    %p124 = por %p122, %p123
    %p125 = scmp.le.s32.totalorder 1, %s9
    %p126 = scmp.lt.s32.totalorder %s9, 5
    %p127 = pnand %p125, %p126
    %p128 = pneg %p127
    // Predicated region
    $region9: #{cnn_forward.5} parent=5 // pred_check
      _
    $region10: #{cnn_forward.5} parent=5 // pred_check_branch
      %130 = sbr.rel (%p127) target = $region12
    $region11: #{cnn_forward.5} parent=5 // pred_region
      %s131 = ssub.s32 %s9, 1
      // Predicated region
      $region13: #{cnn_forward.5} parent=11 // pred_check
        %p132 = pneg %p42
      $region14: #{cnn_forward.5} parent=11 // pred_check_branch
        %134 = sbr.rel (%p132) target = $region16
      $region15: #{cnn_forward.5} parent=11 // pred_region
        _
      $region16: #{cnn_forward.5} parent=11 // pred_fallthru
        _
      // Predicated region
      $region17: #{cnn_forward.5} parent=11 // pred_check
        %p135 = pneg %p91
      $region18: #{cnn_forward.5} parent=11 // pred_check_branch
        %137 = sbr.rel (%p135) target = $region20
      $region19: #{cnn_forward.5} parent=11 // pred_region
        _
      $region20: #{cnn_forward.5} parent=11 // pred_fallthru
        _
    $region12: #{cnn_forward.5} parent=5 // pred_fallthru
      _
    %p138 = scmp.lt.s32.totalorder %s9, 4
    // Predicated region
    $region21: #{cnn_forward.5} parent=5 // pred_check
      %p139 = pneg %p138
    $region22: #{cnn_forward.5} parent=5 // pred_check_branch
      %141 = sbr.rel (%p139) target = $region24
    $region23: #{cnn_forward.5} parent=5 // pred_region
      // Predicated region
      $region25: #{cnn_forward.5} parent=23 // pred_check
        %p142 = pneg %p64
      $region26: #{cnn_forward.5} parent=23 // pred_check_branch
        %144 = sbr.rel (%p142) target = $region28
      $region27: #{cnn_forward.5} parent=23 // pred_region
        %s145 = smul.u32 4, %s16
        %p146 = scmp.lt.s32.totalorder %s17, 3
        %s147 = scalar_select %p146, %s17, 3
        %p148 = scmp.lt.s32.totalorder %s145, 3
        %s149 = scalar_select %p148, %s145, 3
        %s150 = smul.addr %s147, 16
        %s151 = sadd.s32 %s149, %s150
        %s152 = smul.addr %s151, 4
        %s153 = scalar_lea.vmem %s1, %s152
        %s154 = smul.u32 4, %s16
      $region28: #{cnn_forward.5} parent=23 // pred_fallthru
        _
    $region24: #{cnn_forward.5} parent=5 // pred_fallthru
      _
    %p155 = scmp.le.s32.totalorder 1, %s9
    %p156 = scmp.lt.s32.totalorder %s9, 5
    %p157 = pnand %p155, %p156
    %p158 = pneg %p157
    // Predicated region
    $region29: #{cnn_forward.5} parent=5 // pred_check
      _
    $region30: #{cnn_forward.5} parent=5 // pred_check_branch
      %160 = sbr.rel (%p157) target = $region32
    $region31: #{cnn_forward.5} parent=5 // pred_region
      %s161 = ssub.s32 %s9, 1
      %p162 = pneg %p42
      %p163 = pneg %p39
      %s164 = smul.u32 4, %s18
      %p165 = scmp.lt.s32.totalorder %s19, 3
      %s166 = scalar_select %p165, %s19, 3
      %p167 = scmp.lt.s32.totalorder %s164, 3
      %s168 = scalar_select %p167, %s164, 3
      %s169 = smul.addr %s166, 16
      %s170 = sadd.s32 %s168, %s169
      %s171 = smul.addr %s170, 4
      %s172 = scalar_lea.vmem %s1, %s171
      %p173 = pneg %p70
      %p174 = pneg %p67
      %p175 = pneg %p91
      %p176 = pneg %p88
      %p177 = pneg %p117
      %p178 = pneg %p114
      %s179 = smul.u32 4, %s18
      %p180 = scmp.lt.s32.totalorder %s179, 3
      %s181 = scalar_select %p180, %s179, 3
      %s182 = smul.addr %s181, 4
      %s183 = scalar_lea.vmem %s3, %s182
      %s184 = smul.u32 4, %s18
      %p185 = scmp.lt.s32.totalorder %s19, 3
      %s186 = scalar_select %p185, %s19, 3
      %p187 = scmp.lt.s32.totalorder %s184, 3
      %s188 = scalar_select %p187, %s184, 3
      %s189 = smul.addr %s186, 16
      %s190 = sadd.s32 %s188, %s189
      %s191 = smul.addr %s190, 4
      %s192 = scalar_lea.vmem %s1, %s191
      %s193 = smul.u32 4, %s18
      %s194 = smul.u32 4, %s18
      %p195 = scmp.lt.s32.totalorder %s194, 3
      %s196 = scalar_select %p195, %s194, 3
      %s197 = smul.addr %s196, 4
      %s198 = scalar_lea.vmem %s3, %s197
      %s199 = smul.u32 4, %s18
      %v201 = vld [vmem:[%s0] sm:$0xf]
      %v202 = vld [vmem:[%s0 + $0x4] sm:$0xf]
      %v203 = vld [vmem:[%s192] sm:$0xff]
      %v204 = vld [vmem:[%s192 + $0x8] sm:$0xff]
      %v205 = vld [vmem:[%s192 + $0x10] sm:$0xff]
      %v206 = vld [vmem:[%s192 + $0x18] sm:$0xff]
      %v207 = vld [vmem:[%s192 + $0x20] sm:$0xff]
      %v208 = vld [vmem:[%s192 + $0x28] sm:$0xff]
      %v209 = vld [vmem:[%s192 + $0x30] sm:$0xff]
      %v210 = vld [vmem:[%s192 + $0x38] sm:$0xff]
      %v211 = vld [vmem:[%s2] sm:$0xff]
      %v212 = vld [vmem:[%s2 + $0x8] sm:$0xff]
      %214 = vset.pattern.permute.xlu0 0
      %215 = vperm.xlu0 %214, %v211
      %v216 = vpop.permute.xlu0 %215
      %219 = vset.pattern.permute.xlu0 0
      %220 = vperm.xlu0 %219, %v212
      %v221 = vpop.permute.xlu0 %220
      %v225 = vunpack.c.l.b16 %v201
      %v226 = vunpack.c.l.b16 %v202
      %v227 = vpack.c.b16 %v226, %v225
      %v236 = vunpack.c.l.b16 %v203
      %v237 = vunpack.c.h.b16 %v203
      %v238 = vunpack.c.l.b16 %v204
      %v239 = vunpack.c.h.b16 %v204
      %v240 = vunpack.c.l.b16 %v205
      %v241 = vunpack.c.h.b16 %v205
      %v242 = vunpack.c.l.b16 %v206
      %v243 = vunpack.c.h.b16 %v206
      %v244 = vunpack.c.l.b16 %v207
      %v245 = vunpack.c.h.b16 %v207
      %v246 = vunpack.c.l.b16 %v208
      %v247 = vunpack.c.h.b16 %v208
      %v248 = vunpack.c.l.b16 %v209
      %v249 = vunpack.c.h.b16 %v209
      %v250 = vunpack.c.l.b16 %v210
      %v251 = vunpack.c.h.b16 %v210
      %v252 = vpack.c.b16 %v240, %v236
      %v253 = vpack.c.b16 %v241, %v237
      %v254 = vpack.c.b16 %v242, %v238
      %v255 = vpack.c.b16 %v243, %v239
      %v256 = vpack.c.b16 %v248, %v244
      %v257 = vpack.c.b16 %v249, %v245
      %v258 = vpack.c.b16 %v250, %v246
      %v259 = vpack.c.b16 %v251, %v247
      %vm268 = vcmask 261120
      %v270 = vsel %vm268, %v227, 0
      %272 = vmatpush.bf16.msra.mxu0 0
      %273 = vmatpush.bf16.msra.mxu0 0
      %274 = vmatpush.bf16.msra.mxu0 0
      %275 = vmatpush.bf16.msra.mxu0 0
      %276 = vmatpush.bf16.msra.mxu0 0
      %277 = vmatpush.bf16.msra.mxu0 0
      %278 = vmatpush.bf16.msra.mxu0 %v256
      %279 = vmatpush.bf16.msra.mxu0 %v252
      %280 = vmatmul.bf16.gmra.mxu0 %v270
      %v281 = vpop.f32.mrf.mxu0
      %v282 = vadd.f32 %v216, %v281
      %v283 = vpop.f32.mrf.mxu0
      %v284 = vadd.f32 %v221, %v283
      %285 = vdwg.mxu0
      %286 = vmatpush.bf16.msra.mxu0 0
      %287 = vmatpush.bf16.msra.mxu0 0
      %288 = vmatpush.bf16.msra.mxu0 0
      %289 = vmatpush.bf16.msra.mxu0 0
      %290 = vmatpush.bf16.msra.mxu0 0
      %291 = vmatpush.bf16.msra.mxu0 0
      %292 = vmatpush.bf16.msra.mxu0 %v257
      %293 = vmatpush.bf16.msra.mxu0 %v253
      %294 = vmatmul.bf16.gmra.mxu0 %v270
      %v295 = vpop.f32.mrf.mxu0
      %v296 = vadd.f32 %v216, %v295
      %v297 = vpop.f32.mrf.mxu0
      %v298 = vadd.f32 %v221, %v297
      %299 = vdwg.mxu0
      %300 = vmatpush.bf16.msra.mxu0 0
      %301 = vmatpush.bf16.msra.mxu0 0
      %302 = vmatpush.bf16.msra.mxu0 0
      %303 = vmatpush.bf16.msra.mxu0 0
      %304 = vmatpush.bf16.msra.mxu0 0
      %305 = vmatpush.bf16.msra.mxu0 0
      %306 = vmatpush.bf16.msra.mxu0 %v258
      %307 = vmatpush.bf16.msra.mxu0 %v254
      %308 = vmatmul.bf16.gmra.mxu0 %v270
      %v309 = vpop.f32.mrf.mxu0
      %v310 = vadd.f32 %v216, %v309
      %v311 = vpop.f32.mrf.mxu0
      %v312 = vadd.f32 %v221, %v311
      %313 = vdwg.mxu0
      %314 = vmatpush.bf16.msra.mxu0 0
      %315 = vmatpush.bf16.msra.mxu0 0
      %316 = vmatpush.bf16.msra.mxu0 0
      %317 = vmatpush.bf16.msra.mxu0 0
      %318 = vmatpush.bf16.msra.mxu0 0
      %319 = vmatpush.bf16.msra.mxu0 0
      %320 = vmatpush.bf16.msra.mxu0 %v259
      %321 = vmatpush.bf16.msra.mxu0 %v255
      %322 = vmatmul.bf16.gmra.mxu0 %v270
      %v323 = vpop.f32.mrf.mxu0
      %v324 = vadd.f32 %v216, %v323
      %v325 = vpop.f32.mrf.mxu0
      %v326 = vadd.f32 %v221, %v325
      %327 = vdwg.mxu0
      %v328 = vmax.f32 %v282, 0.0
      %v329 = vmax.f32 %v296, 0.0
      %v330 = vmax.f32 %v310, 0.0
      %v331 = vmax.f32 %v324, 0.0
      %v332 = vmax.f32 %v284, 0.0
      %v333 = vmax.f32 %v298, 0.0
      %v334 = vmax.f32 %v312, 0.0
      %v335 = vmax.f32 %v326, 0.0
      %v336 = vpack.c.bf16 %v329, %v328
      %v337 = vpack.c.bf16 %v331, %v330
      %v338 = vpack.c.bf16 %v333, %v332
      %v339 = vpack.c.bf16 %v335, %v334
      %p340 = scmp.eq.s32.totalorder %s19, 0
      // Predicated region
      $region33: #{cnn_forward.5} parent=31 // pred_check
        %p341 = pneg %p340
      $region34: #{cnn_forward.5} parent=31 // pred_check_branch
        %343 = sbr.rel (%p341) target = $region36
      $region35: #{cnn_forward.5} parent=31 // pred_region
        %344 = vst [vmem:[%s198] sm:$0xff] %v336
        %345 = vst [vmem:[%s198 + $0x8] sm:$0xff] %v337
        %346 = vst [vmem:[%s198 + $0x10] sm:$0xff] %v338
        %347 = vst [vmem:[%s198 + $0x18] sm:$0xff] %v339
      $region36: #{cnn_forward.5} parent=31 // pred_fallthru
        _
      %p348 = scmp.gt.s32.totalorder %s19, 0
      // Predicated region
      $region37: #{cnn_forward.5} parent=31 // pred_check
        %p349 = pneg %p348
      $region38: #{cnn_forward.5} parent=31 // pred_check_branch
        %351 = sbr.rel (%p349) target = $region40
      $region39: #{cnn_forward.5} parent=31 // pred_region
        %v352 = vld [vmem:[%s198] sm:$0xff]
        %v353 = vld [vmem:[%s198 + $0x8] sm:$0xff]
        %v354 = vld [vmem:[%s198 + $0x10] sm:$0xff]
        %v355 = vld [vmem:[%s198 + $0x18] sm:$0xff]
        %v356 = vunpack.c.l.bf16 %v352
        %v357 = vunpack.c.h.bf16 %v352
        %v358 = vunpack.c.l.bf16 %v353
        %v359 = vunpack.c.h.bf16 %v353
        %v360 = vunpack.c.l.bf16 %v354
        %v361 = vunpack.c.h.bf16 %v354
        %v362 = vunpack.c.l.bf16 %v355
        %v363 = vunpack.c.h.bf16 %v355
        %v364 = vunpack.c.l.bf16 %v336
        %v365 = vunpack.c.h.bf16 %v336
        %v366 = vunpack.c.l.bf16 %v337
        %v367 = vunpack.c.h.bf16 %v337
        %v368 = vunpack.c.l.bf16 %v338
        %v369 = vunpack.c.h.bf16 %v338
        %v370 = vunpack.c.l.bf16 %v339
        %v371 = vunpack.c.h.bf16 %v339
        %v372 = vmax.f32 %v356, %v364
        %v373 = vmax.f32 %v357, %v365
        %v374 = vmax.f32 %v358, %v366
        %v375 = vmax.f32 %v359, %v367
        %v376 = vmax.f32 %v360, %v368
        %v377 = vmax.f32 %v361, %v369
        %v378 = vmax.f32 %v362, %v370
        %v379 = vmax.f32 %v363, %v371
        %v380 = vpack.c.bf16 %v373, %v372
        %v381 = vpack.c.bf16 %v375, %v374
        %v382 = vpack.c.bf16 %v377, %v376
        %v383 = vpack.c.bf16 %v379, %v378
        %384 = vst [vmem:[%s198] sm:$0xff] %v380
        %385 = vst [vmem:[%s198 + $0x8] sm:$0xff] %v381
        %386 = vst [vmem:[%s198 + $0x10] sm:$0xff] %v382
        %387 = vst [vmem:[%s198 + $0x18] sm:$0xff] %v383
      $region40: #{cnn_forward.5} parent=31 // pred_fallthru
        _
      %s388 = smul.u32 4, %s18
      %p389 = scmp.lt.s32.totalorder %s388, 3
      %s390 = scalar_select %p389, %s388, 3
      %s391 = smul.addr %s390, 4
      %s392 = scalar_lea.vmem %s3, %s391
      // Predicated region
      $region41: #{cnn_forward.5} parent=31 // pred_check
        %p393 = pneg %p114
      $region42: #{cnn_forward.5} parent=31 // pred_check_branch
        %395 = sbr.rel (%p393) target = $region44
      $region43: #{cnn_forward.5} parent=31 // pred_region
        %s396 = smul.u32 4, %s18
      $region44: #{cnn_forward.5} parent=31 // pred_fallthru
        _
      // Predicated region
      $region45: #{cnn_forward.5} parent=31 // pred_check
        %p397 = pneg %p114
      $region46: #{cnn_forward.5} parent=31 // pred_check_branch
        %399 = sbr.rel (%p397) target = $region48
      $region47: #{cnn_forward.5} parent=31 // pred_region
        %s400 = smul.u32 4, %s18
        %p401 = scmp.lt.s32.totalorder %s400, 3
        %s402 = scalar_select %p401, %s400, 3
        %s403 = smul.addr %s402, 4
        %s404 = scalar_lea.vmem %s3, %s403
      $region48: #{cnn_forward.5} parent=31 // pred_fallthru
        _
    $region32: #{cnn_forward.5} parent=5 // pred_fallthru
      _
    %p405 = scmp.le.s32.totalorder 2, %s9
    // Predicated region
    $region49: #{cnn_forward.5} parent=5 // pred_check
      %p406 = pneg %p405
    $region50: #{cnn_forward.5} parent=5 // pred_check_branch
      %408 = sbr.rel (%p406) target = $region52
    $region51: #{cnn_forward.5} parent=5 // pred_region
      %s409 = ssub.s32 %s9, 2
    $region52: #{cnn_forward.5} parent=5 // pred_fallthru
      _
  $region6: #{cnn_forward.5} parent=0 // loop_footer
    %s13 = sadd.s32 1, %s9
  $region7: #{cnn_forward.5} parent=0 // loop_footer_branch
    %8 = sbr.rel target = $region3
  $region8: #{cnn_forward.5} parent=0 // loop_exit
    _

// kernel: cnn_forward.6
$region0: #{cnn_forward.6}
  #allocation0 [shape = 'u32[]', space=smem, size = 0x4, offset = 0x4, fixed_abs, tag = 'smem constant byte address 0x4 - core index']
  #allocation1 [shape = 'u32[72,128]{1,0:T(1,128)}', space=vmem, size = 0x9000, scoped, tag = 'internal scratch']
  %s0 = inlined_call_operand.vmem [shape: bf16[32,400], index: 0, kind: input, shape index: {}]
  %s1 = inlined_call_operand.vmem [shape: bf16[1,400,512], index: 1, kind: input, shape index: {}]
  %s2 = inlined_call_operand.vmem [shape: f32[32,1], index: 2, kind: input, shape index: {}]
  %s3 = inlined_call_operand.vmem [shape: bf16[32,512], index: 3, kind: output, shape index: {}]
  %s4 = sld [smem:[#allocation0]]
  $region22: #{cnn_forward.6} parent=0
    _
  %s6 = ssub.s32 1, %s4
  %s7 = scalar_select 0, %s6, %s4
  // Predicated region
  $region2: #{cnn_forward.6} parent=0 // pred_check
    _
  $region3: #{cnn_forward.6} parent=0 // pred_check_branch
    %9 = sbr.rel (0) target = $region5
  $region4: #{cnn_forward.6} parent=0 // pred_region
    _
  $region5: #{cnn_forward.6} parent=0 // pred_fallthru
    _
  // Predicated region
  $region6: #{cnn_forward.6} parent=0 // pred_check
    _
  $region7: #{cnn_forward.6} parent=0 // pred_check_branch
    %11 = sbr.rel (0) target = $region9
  $region8: #{cnn_forward.6} parent=0 // pred_region
    _
  $region9: #{cnn_forward.6} parent=0 // pred_fallthru
    _
  // Predicated region
  $region10: #{cnn_forward.6} parent=0 // pred_check
    _
  $region11: #{cnn_forward.6} parent=0 // pred_check_branch
    %13 = sbr.rel (0) target = $region13
  $region12: #{cnn_forward.6} parent=0 // pred_region
    _
  $region13: #{cnn_forward.6} parent=0 // pred_fallthru
    _
  %v15 = vld [vmem:[%s0] sm:$0xff]
  %v16 = vld [vmem:[%s0 + $0x8] sm:$0xff]
  %v17 = vld [vmem:[%s0 + $0x10] sm:$0xff]
  %v18 = vld [vmem:[%s0 + $0x18] sm:$0xff]
  %v19 = vld [vmem:[%s0 + $0x20] sm:$0xff]
  %v20 = vld [vmem:[%s0 + $0x28] sm:$0xff]
  %v21 = vld [vmem:[%s0 + $0x30] sm:$0xff]
  %v22 = vld [vmem:[%s0 + $0x38] sm:$0xff]
  %v23 = vld [vmem:[%s1] sm:$0xff]
  %v24 = vld [vmem:[%s1 + $0x8] sm:$0xff]
  %v25 = vld [vmem:[%s1 + $0x10] sm:$0xff]
  %v26 = vld [vmem:[%s1 + $0x18] sm:$0xff]
  %v27 = vld [vmem:[%s1 + $0x20] sm:$0xff]
  %v28 = vld [vmem:[%s1 + $0x28] sm:$0xff]
  %v29 = vld [vmem:[%s1 + $0x30] sm:$0xff]
  %v30 = vld [vmem:[%s1 + $0x38] sm:$0xff]
  %v31 = vld [vmem:[%s1 + $0x40] sm:$0xff]
  %v32 = vld [vmem:[%s1 + $0x48] sm:$0xff]
  %v33 = vld [vmem:[%s1 + $0x50] sm:$0xff]
  %v34 = vld [vmem:[%s1 + $0x58] sm:$0xff]
  %v35 = vld [vmem:[%s1 + $0x60] sm:$0xff]
  %v36 = vld [vmem:[%s1 + $0x68] sm:$0xff]
  %v37 = vld [vmem:[%s1 + $0x70] sm:$0xff]
  %v38 = vld [vmem:[%s1 + $0x78] sm:$0xff]
  %v39 = vld [vmem:[%s1 + $0x80] sm:$0xff]
  %v40 = vld [vmem:[%s1 + $0x88] sm:$0xff]
  %v41 = vld [vmem:[%s1 + $0x90] sm:$0xff]
  %v42 = vld [vmem:[%s1 + $0x98] sm:$0xff]
  %v43 = vld [vmem:[%s1 + $0xa0] sm:$0xff]
  %v44 = vld [vmem:[%s1 + $0xa8] sm:$0xff]
  %v45 = vld [vmem:[%s1 + $0xb0] sm:$0xff]
  %v46 = vld [vmem:[%s1 + $0xb8] sm:$0xff]
  %v47 = vld [vmem:[%s1 + $0xc0] sm:$0xff]
  %v48 = vld [vmem:[%s1 + $0xc8] sm:$0xff]
  %v49 = vld [vmem:[%s1 + $0xd0] sm:$0xff]
  %v50 = vld [vmem:[%s1 + $0xd8] sm:$0xff]
  %v51 = vld [vmem:[%s1 + $0xe0] sm:$0xff]
  %v52 = vld [vmem:[%s1 + $0xe8] sm:$0xff]
  %v53 = vld [vmem:[%s1 + $0xf0] sm:$0xff]
  %v54 = vld [vmem:[%s1 + $0xf8] sm:$0xff]
  %v55 = vld [vmem:[%s1 + $0x100] sm:$0xff]
  %v56 = vld [vmem:[%s1 + $0x108] sm:$0xff]
  %v57 = vld [vmem:[%s1 + $0x110] sm:$0xff]
  %v58 = vld [vmem:[%s1 + $0x118] sm:$0xff]
  %v59 = vld [vmem:[%s1 + $0x120] sm:$0xff]
  %v60 = vld [vmem:[%s1 + $0x128] sm:$0xff]
  %v61 = vld [vmem:[%s1 + $0x130] sm:$0xff]
  %v62 = vld [vmem:[%s1 + $0x138] sm:$0xff]
  %v63 = vld [vmem:[%s1 + $0x140] sm:$0xff]
  %v64 = vld [vmem:[%s1 + $0x148] sm:$0xff]
  %v65 = vld [vmem:[%s1 + $0x150] sm:$0xff]
  %v66 = vld [vmem:[%s1 + $0x158] sm:$0xff]
  %v67 = vld [vmem:[%s1 + $0x160] sm:$0xff]
  %v68 = vld [vmem:[%s1 + $0x168] sm:$0xff]
  %v69 = vld [vmem:[%s1 + $0x170] sm:$0xff]
  %v70 = vld [vmem:[%s1 + $0x178] sm:$0xff]
  %v71 = vld [vmem:[%s1 + $0x180] sm:$0xff]
  %v72 = vld [vmem:[%s1 + $0x188] sm:$0xff]
  %v73 = vld [vmem:[%s1 + $0x190] sm:$0xff]
  %v74 = vld [vmem:[%s1 + $0x198] sm:$0xff]
  %v75 = vld [vmem:[%s1 + $0x1a0] sm:$0xff]
  %v76 = vld [vmem:[%s1 + $0x1a8] sm:$0xff]
  %v77 = vld [vmem:[%s1 + $0x1b0] sm:$0xff]
  %v78 = vld [vmem:[%s1 + $0x1b8] sm:$0xff]
  %v79 = vld [vmem:[%s1 + $0x1c0] sm:$0xff]
  %v80 = vld [vmem:[%s1 + $0x1c8] sm:$0xff]
  %v81 = vld [vmem:[%s1 + $0x1d0] sm:$0xff]
  %v82 = vld [vmem:[%s1 + $0x1d8] sm:$0xff]
  %v83 = vld [vmem:[%s1 + $0x1e0] sm:$0xff]
  %v84 = vld [vmem:[%s1 + $0x1e8] sm:$0xff]
  %v85 = vld [vmem:[%s1 + $0x1f0] sm:$0xff]
  %v86 = vld [vmem:[%s1 + $0x1f8] sm:$0xff]
  %v87 = vld [vmem:[%s1 + $0x200] sm:$0xff]
  %v88 = vld [vmem:[%s1 + $0x208] sm:$0xff]
  %v89 = vld [vmem:[%s1 + $0x210] sm:$0xff]
  %v90 = vld [vmem:[%s1 + $0x218] sm:$0xff]
  %v91 = vld [vmem:[%s1 + $0x220] sm:$0xff]
  %v92 = vld [vmem:[%s1 + $0x228] sm:$0xff]
  %v93 = vld [vmem:[%s1 + $0x230] sm:$0xff]
  %v94 = vld [vmem:[%s1 + $0x238] sm:$0xff]
  %v95 = vld [vmem:[%s1 + $0x240] sm:$0xff]
  %v96 = vld [vmem:[%s1 + $0x248] sm:$0xff]
  %v97 = vld [vmem:[%s1 + $0x250] sm:$0xff]
  %v98 = vld [vmem:[%s1 + $0x258] sm:$0xff]
  %v99 = vld [vmem:[%s1 + $0x260] sm:$0xff]
  %v100 = vld [vmem:[%s1 + $0x268] sm:$0xff]
  %v101 = vld [vmem:[%s1 + $0x270] sm:$0xff]
  %v102 = vld [vmem:[%s1 + $0x278] sm:$0xff]
  %v103 = vld [vmem:[%s1 + $0x280] sm:$0xff]
  %v104 = vld [vmem:[%s1 + $0x288] sm:$0xff]
  %v105 = vld [vmem:[%s1 + $0x290] sm:$0xff]
  %v106 = vld [vmem:[%s1 + $0x298] sm:$0xff]
  %v107 = vld [vmem:[%s1 + $0x2a0] sm:$0xff]
  %v108 = vld [vmem:[%s1 + $0x2a8] sm:$0xff]
  %v109 = vld [vmem:[%s1 + $0x2b0] sm:$0xff]
  %v110 = vld [vmem:[%s1 + $0x2b8] sm:$0xff]
  %v111 = vld [vmem:[%s1 + $0x2c0] sm:$0xff]
  %v112 = vld [vmem:[%s1 + $0x2c8] sm:$0xff]
  %v113 = vld [vmem:[%s1 + $0x2d0] sm:$0xff]
  %v114 = vld [vmem:[%s1 + $0x2d8] sm:$0xff]
  %v115 = vld [vmem:[%s1 + $0x2e0] sm:$0xff]
  %v116 = vld [vmem:[%s1 + $0x2e8] sm:$0xff]
  %v117 = vld [vmem:[%s1 + $0x2f0] sm:$0xff]
  %v118 = vld [vmem:[%s1 + $0x2f8] sm:$0xff]
  %v119 = vld [vmem:[%s1 + $0x300] sm:$0xff]
  %v120 = vld [vmem:[%s1 + $0x308] sm:$0xff]
  %v121 = vld [vmem:[%s1 + $0x310] sm:$0xff]
  %v122 = vld [vmem:[%s1 + $0x318] sm:$0xff]
  %v123 = vld [vmem:[%s2] sm:$0xff]
  %v124 = vld [vmem:[%s2 + $0x8] sm:$0xff]
  %v125 = vld [vmem:[%s2 + $0x10] sm:$0xff]
  %v126 = vld [vmem:[%s2 + $0x18] sm:$0xff]
  %128 = vset.pattern.permute.xlu0 0
  %129 = vperm.xlu0 %128, %v123
  %v130 = vpop.permute.xlu0 %129
  %133 = vset.pattern.permute.xlu0 0
  %134 = vperm.xlu0 %133, %v124
  %v135 = vpop.permute.xlu0 %134
  %138 = vset.pattern.permute.xlu0 0
  %139 = vperm.xlu0 %138, %v125
  %v140 = vpop.permute.xlu0 %139
  %143 = vset.pattern.permute.xlu0 0
  %144 = vperm.xlu0 %143, %v126
  %v145 = vpop.permute.xlu0 %144
  %v155 = vunpack.c.l.b16 %v15
  %v156 = vunpack.c.h.b16 %v15
  %v157 = vunpack.c.l.b16 %v16
  %v158 = vunpack.c.h.b16 %v16
  %v159 = vunpack.c.l.b16 %v17
  %v160 = vunpack.c.h.b16 %v17
  %v161 = vunpack.c.l.b16 %v18
  %v162 = vunpack.c.h.b16 %v18
  %v163 = vunpack.c.l.b16 %v19
  %v164 = vunpack.c.h.b16 %v19
  %v165 = vunpack.c.l.b16 %v20
  %v166 = vunpack.c.h.b16 %v20
  %v167 = vunpack.c.l.b16 %v21
  %v168 = vunpack.c.h.b16 %v21
  %v169 = vunpack.c.l.b16 %v22
  %v170 = vunpack.c.h.b16 %v22
  %v171 = vpack.c.b16 %v159, %v155
  %v172 = vpack.c.b16 %v160, %v156
  %v173 = vpack.c.b16 %v161, %v157
  %v174 = vpack.c.b16 %v162, %v158
  %v175 = vpack.c.b16 %v167, %v163
  %v176 = vpack.c.b16 %v168, %v164
  %v177 = vpack.c.b16 %v169, %v165
  %v178 = vpack.c.b16 %v170, %v166
  %v285 = vunpack.c.l.b16 %v23
  %v286 = vunpack.c.h.b16 %v23
  %v287 = vunpack.c.l.b16 %v24
  %v288 = vunpack.c.h.b16 %v24
  %v289 = vunpack.c.l.b16 %v25
  %v290 = vunpack.c.h.b16 %v25
  %v291 = vunpack.c.l.b16 %v26
  %v292 = vunpack.c.h.b16 %v26
  %v293 = vunpack.c.l.b16 %v27
  %v294 = vunpack.c.h.b16 %v27
  %v295 = vunpack.c.l.b16 %v28
  %v296 = vunpack.c.h.b16 %v28
  %v297 = vunpack.c.l.b16 %v29
  %v298 = vunpack.c.h.b16 %v29
  %v299 = vunpack.c.l.b16 %v30
  %v300 = vunpack.c.h.b16 %v30
  %v301 = vunpack.c.l.b16 %v31
  %v302 = vunpack.c.h.b16 %v31
  %v303 = vunpack.c.l.b16 %v32
  %v304 = vunpack.c.h.b16 %v32
  %v305 = vunpack.c.l.b16 %v33
  %v306 = vunpack.c.h.b16 %v33
  %v307 = vunpack.c.l.b16 %v34
  %v308 = vunpack.c.h.b16 %v34
  %v309 = vunpack.c.l.b16 %v35
  %v310 = vunpack.c.h.b16 %v35
  %v311 = vunpack.c.l.b16 %v36
  %v312 = vunpack.c.h.b16 %v36
  %v313 = vunpack.c.l.b16 %v37
  %v314 = vunpack.c.h.b16 %v37
  %v315 = vunpack.c.l.b16 %v38
  %v316 = vunpack.c.h.b16 %v38
  %v317 = vunpack.c.l.b16 %v39
  %v318 = vunpack.c.h.b16 %v39
  %v319 = vunpack.c.l.b16 %v40
  %v320 = vunpack.c.h.b16 %v40
  %v321 = vunpack.c.l.b16 %v41
  %v322 = vunpack.c.h.b16 %v41
  %v323 = vunpack.c.l.b16 %v42
  %v324 = vunpack.c.h.b16 %v42
  %v325 = vunpack.c.l.b16 %v43
  %v326 = vunpack.c.h.b16 %v43
  %v327 = vunpack.c.l.b16 %v44
  %v328 = vunpack.c.h.b16 %v44
  %v329 = vunpack.c.l.b16 %v45
  %v330 = vunpack.c.h.b16 %v45
  %v331 = vunpack.c.l.b16 %v46
  %v332 = vunpack.c.h.b16 %v46
  %v333 = vunpack.c.l.b16 %v47
  %v334 = vunpack.c.h.b16 %v47
  %v335 = vunpack.c.l.b16 %v48
  %v336 = vunpack.c.h.b16 %v48
  %v337 = vunpack.c.l.b16 %v49
  %v338 = vunpack.c.h.b16 %v49
  %v339 = vunpack.c.l.b16 %v50
  %v340 = vunpack.c.h.b16 %v50
  %v341 = vunpack.c.l.b16 %v51
  %v342 = vunpack.c.h.b16 %v51
  %v343 = vunpack.c.l.b16 %v52
  %v344 = vunpack.c.h.b16 %v52
  %v345 = vunpack.c.l.b16 %v53
  %v346 = vunpack.c.h.b16 %v53
  %v347 = vunpack.c.l.b16 %v54
  %v348 = vunpack.c.h.b16 %v54
  %v349 = vunpack.c.l.b16 %v55
  %v350 = vunpack.c.h.b16 %v55
  %v351 = vunpack.c.l.b16 %v56
  %v352 = vunpack.c.h.b16 %v56
  %v353 = vunpack.c.l.b16 %v57
  %v354 = vunpack.c.h.b16 %v57
  %v355 = vunpack.c.l.b16 %v58
  %v356 = vunpack.c.h.b16 %v58
  %v357 = vunpack.c.l.b16 %v59
  %v358 = vunpack.c.h.b16 %v59
  %v359 = vunpack.c.l.b16 %v60
  %v360 = vunpack.c.h.b16 %v60
  %v361 = vunpack.c.l.b16 %v61
  %v362 = vunpack.c.h.b16 %v61
  %v363 = vunpack.c.l.b16 %v62
  %v364 = vunpack.c.h.b16 %v62
  %v365 = vunpack.c.l.b16 %v63
  %v366 = vunpack.c.h.b16 %v63
  %v367 = vunpack.c.l.b16 %v64
  %v368 = vunpack.c.h.b16 %v64
  %v369 = vunpack.c.l.b16 %v65
  %v370 = vunpack.c.h.b16 %v65
  %v371 = vunpack.c.l.b16 %v66
  %v372 = vunpack.c.h.b16 %v66
  %v373 = vunpack.c.l.b16 %v67
  %v374 = vunpack.c.h.b16 %v67
  %v375 = vunpack.c.l.b16 %v68
  %v376 = vunpack.c.h.b16 %v68
  %v377 = vunpack.c.l.b16 %v69
  %v378 = vunpack.c.h.b16 %v69
  %v379 = vunpack.c.l.b16 %v70
  %v380 = vunpack.c.h.b16 %v70
  %v381 = vunpack.c.l.b16 %v71
  %v382 = vunpack.c.h.b16 %v71
  %v383 = vunpack.c.l.b16 %v72
  %v384 = vunpack.c.h.b16 %v72
  %v385 = vunpack.c.l.b16 %v73
  %v386 = vunpack.c.h.b16 %v73
  %v387 = vunpack.c.l.b16 %v74
  %v388 = vunpack.c.h.b16 %v74
  %v389 = vunpack.c.l.b16 %v75
  %v390 = vunpack.c.h.b16 %v75
  %v391 = vunpack.c.l.b16 %v76
  %v392 = vunpack.c.h.b16 %v76
  %v393 = vunpack.c.l.b16 %v77
  %v394 = vunpack.c.h.b16 %v77
  %v395 = vunpack.c.l.b16 %v78
  %v396 = vunpack.c.h.b16 %v78
  %v397 = vunpack.c.l.b16 %v79
  %v398 = vunpack.c.h.b16 %v79
  %v399 = vunpack.c.l.b16 %v80
  %v400 = vunpack.c.h.b16 %v80
  %v401 = vunpack.c.l.b16 %v81
  %v402 = vunpack.c.h.b16 %v81
  %v403 = vunpack.c.l.b16 %v82
  %v404 = vunpack.c.h.b16 %v82
  %v405 = vunpack.c.l.b16 %v83
  %v406 = vunpack.c.h.b16 %v83
  %v407 = vunpack.c.l.b16 %v84
  %v408 = vunpack.c.h.b16 %v84
  %v409 = vunpack.c.l.b16 %v85
  %v410 = vunpack.c.h.b16 %v85
  %v411 = vunpack.c.l.b16 %v86
  %v412 = vunpack.c.h.b16 %v86
  %v413 = vunpack.c.l.b16 %v87
  %v414 = vunpack.c.h.b16 %v87
  %v415 = vunpack.c.l.b16 %v88
  %v416 = vunpack.c.h.b16 %v88
  %v417 = vunpack.c.l.b16 %v89
  %v418 = vunpack.c.h.b16 %v89
  %v419 = vunpack.c.l.b16 %v90
  %v420 = vunpack.c.h.b16 %v90
  %v421 = vunpack.c.l.b16 %v91
  %v422 = vunpack.c.h.b16 %v91
  %v423 = vunpack.c.l.b16 %v92
  %v424 = vunpack.c.h.b16 %v92
  %v425 = vunpack.c.l.b16 %v93
  %v426 = vunpack.c.h.b16 %v93
  %v427 = vunpack.c.l.b16 %v94
  %v428 = vunpack.c.h.b16 %v94
  %v429 = vunpack.c.l.b16 %v95
  %v430 = vunpack.c.h.b16 %v95
  %v431 = vunpack.c.l.b16 %v96
  %v432 = vunpack.c.h.b16 %v96
  %v433 = vunpack.c.l.b16 %v97
  %v434 = vunpack.c.h.b16 %v97
  %v435 = vunpack.c.l.b16 %v98
  %v436 = vunpack.c.h.b16 %v98
  %v437 = vunpack.c.l.b16 %v99
  %v438 = vunpack.c.h.b16 %v99
  %v439 = vunpack.c.l.b16 %v100
  %v440 = vunpack.c.h.b16 %v100
  %v441 = vunpack.c.l.b16 %v101
  %v442 = vunpack.c.h.b16 %v101
  %v443 = vunpack.c.l.b16 %v102
  %v444 = vunpack.c.h.b16 %v102
  %v445 = vunpack.c.l.b16 %v103
  %v446 = vunpack.c.h.b16 %v103
  %v447 = vunpack.c.l.b16 %v104
  %v448 = vunpack.c.h.b16 %v104
  %v449 = vunpack.c.l.b16 %v105
  %v450 = vunpack.c.h.b16 %v105
  %v451 = vunpack.c.l.b16 %v106
  %v452 = vunpack.c.h.b16 %v106
  %v453 = vunpack.c.l.b16 %v107
  %v454 = vunpack.c.h.b16 %v107
  %v455 = vunpack.c.l.b16 %v108
  %v456 = vunpack.c.h.b16 %v108
  %v457 = vunpack.c.l.b16 %v109
  %v458 = vunpack.c.h.b16 %v109
  %v459 = vunpack.c.l.b16 %v110
  %v460 = vunpack.c.h.b16 %v110
  %v461 = vunpack.c.l.b16 %v111
  %v462 = vunpack.c.h.b16 %v111
  %v463 = vunpack.c.l.b16 %v112
  %v464 = vunpack.c.h.b16 %v112
  %v465 = vunpack.c.l.b16 %v113
  %v466 = vunpack.c.h.b16 %v113
  %v467 = vunpack.c.l.b16 %v114
  %v468 = vunpack.c.h.b16 %v114
  %v469 = vunpack.c.l.b16 %v115
  %v470 = vunpack.c.h.b16 %v115
  %v471 = vunpack.c.l.b16 %v116
  %v472 = vunpack.c.h.b16 %v116
  %v473 = vunpack.c.l.b16 %v117
  %v474 = vunpack.c.h.b16 %v117
  %v475 = vunpack.c.l.b16 %v118
  %v476 = vunpack.c.h.b16 %v118
  %v477 = vunpack.c.l.b16 %v119
  %v478 = vunpack.c.h.b16 %v119
  %v479 = vunpack.c.l.b16 %v120
  %v480 = vunpack.c.h.b16 %v120
  %v481 = vunpack.c.l.b16 %v121
  %v482 = vunpack.c.h.b16 %v121
  %v483 = vunpack.c.l.b16 %v122
  %v484 = vunpack.c.h.b16 %v122
  %v485 = vpack.c.b16 %v289, %v285
  %v486 = vpack.c.b16 %v290, %v286
  %v487 = vpack.c.b16 %v291, %v287
  %v488 = vpack.c.b16 %v292, %v288
  %v489 = vpack.c.b16 %v297, %v293
  %v490 = vpack.c.b16 %v298, %v294
  %v491 = vpack.c.b16 %v299, %v295
  %v492 = vpack.c.b16 %v300, %v296
  %v493 = vpack.c.b16 %v305, %v301
  %v494 = vpack.c.b16 %v306, %v302
  %v495 = vpack.c.b16 %v307, %v303
  %v496 = vpack.c.b16 %v308, %v304
  %v497 = vpack.c.b16 %v313, %v309
  %v498 = vpack.c.b16 %v314, %v310
  %v499 = vpack.c.b16 %v315, %v311
  %v500 = vpack.c.b16 %v316, %v312
  %v501 = vpack.c.b16 %v321, %v317
  %v502 = vpack.c.b16 %v322, %v318
  %v503 = vpack.c.b16 %v323, %v319
  %v504 = vpack.c.b16 %v324, %v320
  %v505 = vpack.c.b16 %v329, %v325
  %v506 = vpack.c.b16 %v330, %v326
  %v507 = vpack.c.b16 %v331, %v327
  %v508 = vpack.c.b16 %v332, %v328
  %v509 = vpack.c.b16 %v337, %v333
  %v510 = vpack.c.b16 %v338, %v334
  %v511 = vpack.c.b16 %v339, %v335
  %v512 = vpack.c.b16 %v340, %v336
  %v513 = vpack.c.b16 %v345, %v341
  %v514 = vpack.c.b16 %v346, %v342
  %v515 = vpack.c.b16 %v347, %v343
  %v516 = vpack.c.b16 %v348, %v344
  %v517 = vpack.c.b16 %v353, %v349
  %v518 = vpack.c.b16 %v354, %v350
  %v519 = vpack.c.b16 %v355, %v351
  %v520 = vpack.c.b16 %v356, %v352
  %v521 = vpack.c.b16 %v361, %v357
  %v522 = vpack.c.b16 %v362, %v358
  %v523 = vpack.c.b16 %v363, %v359
  %v524 = vpack.c.b16 %v364, %v360
  %v525 = vpack.c.b16 %v369, %v365
  %v526 = vpack.c.b16 %v370, %v366
  %v527 = vpack.c.b16 %v371, %v367
  %v528 = vpack.c.b16 %v372, %v368
  %v529 = vpack.c.b16 %v377, %v373
  %v530 = vpack.c.b16 %v378, %v374
  %v531 = vpack.c.b16 %v379, %v375
  %v532 = vpack.c.b16 %v380, %v376
  %v533 = vpack.c.b16 %v385, %v381
  %v534 = vpack.c.b16 %v386, %v382
  %v535 = vpack.c.b16 %v387, %v383
  %v536 = vpack.c.b16 %v388, %v384
  %v537 = vpack.c.b16 %v393, %v389
  %v538 = vpack.c.b16 %v394, %v390
  %v539 = vpack.c.b16 %v395, %v391
  %v540 = vpack.c.b16 %v396, %v392
  %v541 = vpack.c.b16 %v401, %v397
  %v542 = vpack.c.b16 %v402, %v398
  %v543 = vpack.c.b16 %v403, %v399
  %v544 = vpack.c.b16 %v404, %v400
  %v545 = vpack.c.b16 %v409, %v405
  %v546 = vpack.c.b16 %v410, %v406
  %v547 = vpack.c.b16 %v411, %v407
  %v548 = vpack.c.b16 %v412, %v408
  %v549 = vpack.c.b16 %v417, %v413
  %v550 = vpack.c.b16 %v418, %v414
  %v551 = vpack.c.b16 %v419, %v415
  %v552 = vpack.c.b16 %v420, %v416
  %v553 = vpack.c.b16 %v425, %v421
  %v554 = vpack.c.b16 %v426, %v422
  %v555 = vpack.c.b16 %v427, %v423
  %v556 = vpack.c.b16 %v428, %v424
  %v557 = vpack.c.b16 %v433, %v429
  %v558 = vpack.c.b16 %v434, %v430
  %v559 = vpack.c.b16 %v435, %v431
  %v560 = vpack.c.b16 %v436, %v432
  %v561 = vpack.c.b16 %v441, %v437
  %v562 = vpack.c.b16 %v442, %v438
  %v563 = vpack.c.b16 %v443, %v439
  %v564 = vpack.c.b16 %v444, %v440
  %v565 = vpack.c.b16 %v449, %v445
  %v566 = vpack.c.b16 %v450, %v446
  %v567 = vpack.c.b16 %v451, %v447
  %v568 = vpack.c.b16 %v452, %v448
  %v569 = vpack.c.b16 %v457, %v453
  %v570 = vpack.c.b16 %v458, %v454
  %v571 = vpack.c.b16 %v459, %v455
  %v572 = vpack.c.b16 %v460, %v456
  %v573 = vpack.c.b16 %v465, %v461
  %v574 = vpack.c.b16 %v466, %v462
  %v575 = vpack.c.b16 %v467, %v463
  %v576 = vpack.c.b16 %v468, %v464
  %v577 = vpack.c.b16 %v473, %v469
  %v578 = vpack.c.b16 %v474, %v470
  %v579 = vpack.c.b16 %v475, %v471
  %v580 = vpack.c.b16 %v476, %v472
  %v581 = vpack.c.b16 %v481, %v477
  %v582 = vpack.c.b16 %v482, %v478
  %v583 = vpack.c.b16 %v483, %v479
  %v584 = vpack.c.b16 %v484, %v480
  %vm685 = vcmask 130048
  %v687 = vsel %vm685, %v174, 0
  %v690 = vsel %vm685, %v178, 0
  %692 = vmatpush.bf16.msra.mxu0 %v513
  %693 = vmatpush.bf16.msra.mxu0 %v509
  %694 = vmatpush.bf16.msra.mxu0 %v505
  %695 = vmatpush.bf16.msra.mxu0 %v501
  %696 = vmatpush.bf16.msra.mxu0 %v497
  %697 = vmatpush.bf16.msra.mxu0 %v493
  %698 = vmatpush.bf16.msra.mxu0 %v489
  %699 = vmatpush.bf16.msra.mxu0 %v485
  %700 = vmatmul.bf16.gmra.mxu0 %v171
  %v701 = vpop.f32.mrf.mxu0
  %v702 = vadd.f32 %v130, %v701
  %v703 = vpop.f32.mrf.mxu0
  %v704 = vadd.f32 %v135, %v703
  %705 = vmatmul.bf16.gmra.mxu0 %v175
  %v706 = vpop.f32.mrf.mxu0
  %v707 = vadd.f32 %v140, %v706
  %v708 = vpop.f32.mrf.mxu0
  %v709 = vadd.f32 %v145, %v708
  %710 = vdwg.mxu0
  %711 = vmatpush.bf16.msra.mxu0 %v545
  %712 = vmatpush.bf16.msra.mxu0 %v541
  %713 = vmatpush.bf16.msra.mxu0 %v537
  %714 = vmatpush.bf16.msra.mxu0 %v533
  %715 = vmatpush.bf16.msra.mxu0 %v529
  %716 = vmatpush.bf16.msra.mxu0 %v525
  %717 = vmatpush.bf16.msra.mxu0 %v521
  %718 = vmatpush.bf16.msra.mxu0 %v517
  %719 = vmatmul.bf16.gmra.mxu0 %v172
  %v720 = vpop.f32.mrf.mxu0
  %v721 = vadd.f32 %v702, %v720
  %v722 = vpop.f32.mrf.mxu0
  %v723 = vadd.f32 %v704, %v722
  %724 = vmatmul.bf16.gmra.mxu0 %v176
  %v725 = vpop.f32.mrf.mxu0
  %v726 = vadd.f32 %v707, %v725
  %v727 = vpop.f32.mrf.mxu0
  %v728 = vadd.f32 %v709, %v727
  %729 = vdwg.mxu0
  %730 = vmatpush.bf16.msra.mxu0 %v577
  %731 = vmatpush.bf16.msra.mxu0 %v573
  %732 = vmatpush.bf16.msra.mxu0 %v569
  %733 = vmatpush.bf16.msra.mxu0 %v565
  %734 = vmatpush.bf16.msra.mxu0 %v561
  %735 = vmatpush.bf16.msra.mxu0 %v557
  %736 = vmatpush.bf16.msra.mxu0 %v553
  %737 = vmatpush.bf16.msra.mxu0 %v549
  %738 = vmatmul.bf16.gmra.mxu0 %v173
  %v739 = vpop.f32.mrf.mxu0
  %v740 = vadd.f32 %v721, %v739
  %v741 = vpop.f32.mrf.mxu0
  %v742 = vadd.f32 %v723, %v741
  %743 = vmatmul.bf16.gmra.mxu0 %v177
  %v744 = vpop.f32.mrf.mxu0
  %v745 = vadd.f32 %v726, %v744
  %v746 = vpop.f32.mrf.mxu0
  %v747 = vadd.f32 %v728, %v746
  %748 = vdwg.mxu0
  %749 = vmatpush.bf16.msra.mxu0 0
  %750 = vmatpush.bf16.msra.mxu0 0
  %751 = vmatpush.bf16.msra.mxu0 0
  %752 = vmatpush.bf16.msra.mxu0 0
  %753 = vmatpush.bf16.msra.mxu0 0
  %754 = vmatpush.bf16.msra.mxu0 0
  %755 = vmatpush.bf16.msra.mxu0 0
  %756 = vmatpush.bf16.msra.mxu0 %v581
  %757 = vmatmul.bf16.gmra.mxu0 %v687
  %v758 = vpop.f32.mrf.mxu0
  %v759 = vadd.f32 %v740, %v758
  %v760 = vpop.f32.mrf.mxu0
  %v761 = vadd.f32 %v742, %v760
  %762 = vmatmul.bf16.gmra.mxu0 %v690
  %v763 = vpop.f32.mrf.mxu0
  %v764 = vadd.f32 %v745, %v763
  %v765 = vpop.f32.mrf.mxu0
  %v766 = vadd.f32 %v747, %v765
  %767 = vdwg.mxu0
  %768 = vmatpush.bf16.msra.mxu0 %v514
  %769 = vmatpush.bf16.msra.mxu0 %v510
  %770 = vmatpush.bf16.msra.mxu0 %v506
  %771 = vmatpush.bf16.msra.mxu0 %v502
  %772 = vmatpush.bf16.msra.mxu0 %v498
  %773 = vmatpush.bf16.msra.mxu0 %v494
  %774 = vmatpush.bf16.msra.mxu0 %v490
  %775 = vmatpush.bf16.msra.mxu0 %v486
  %776 = vmatmul.bf16.gmra.mxu0 %v171
  %v777 = vpop.f32.mrf.mxu0
  %v778 = vadd.f32 %v130, %v777
  %v779 = vpop.f32.mrf.mxu0
  %v780 = vadd.f32 %v135, %v779
  %781 = vmatmul.bf16.gmra.mxu0 %v175
  %v782 = vpop.f32.mrf.mxu0
  %v783 = vadd.f32 %v140, %v782
  %v784 = vpop.f32.mrf.mxu0
  %v785 = vadd.f32 %v145, %v784
  %786 = vdwg.mxu0
  %787 = vmatpush.bf16.msra.mxu0 %v546
  %788 = vmatpush.bf16.msra.mxu0 %v542
  %789 = vmatpush.bf16.msra.mxu0 %v538
  %790 = vmatpush.bf16.msra.mxu0 %v534
  %791 = vmatpush.bf16.msra.mxu0 %v530
  %792 = vmatpush.bf16.msra.mxu0 %v526
  %793 = vmatpush.bf16.msra.mxu0 %v522
  %794 = vmatpush.bf16.msra.mxu0 %v518
  %795 = vmatmul.bf16.gmra.mxu0 %v172
  %v796 = vpop.f32.mrf.mxu0
  %v797 = vadd.f32 %v778, %v796
  %v798 = vpop.f32.mrf.mxu0
  %v799 = vadd.f32 %v780, %v798
  %800 = vmatmul.bf16.gmra.mxu0 %v176
  %v801 = vpop.f32.mrf.mxu0
  %v802 = vadd.f32 %v783, %v801
  %v803 = vpop.f32.mrf.mxu0
  %v804 = vadd.f32 %v785, %v803
  %805 = vdwg.mxu0
  %806 = vmatpush.bf16.msra.mxu0 %v578
  %807 = vmatpush.bf16.msra.mxu0 %v574
  %808 = vmatpush.bf16.msra.mxu0 %v570
  %809 = vmatpush.bf16.msra.mxu0 %v566
  %810 = vmatpush.bf16.msra.mxu0 %v562
  %811 = vmatpush.bf16.msra.mxu0 %v558
  %812 = vmatpush.bf16.msra.mxu0 %v554
  %813 = vmatpush.bf16.msra.mxu0 %v550
  %814 = vmatmul.bf16.gmra.mxu0 %v173
  %v815 = vpop.f32.mrf.mxu0
  %v816 = vadd.f32 %v797, %v815
  %v817 = vpop.f32.mrf.mxu0
  %v818 = vadd.f32 %v799, %v817
  %819 = vmatmul.bf16.gmra.mxu0 %v177
  %v820 = vpop.f32.mrf.mxu0
  %v821 = vadd.f32 %v802, %v820
  %v822 = vpop.f32.mrf.mxu0
  %v823 = vadd.f32 %v804, %v822
  %824 = vdwg.mxu0
  %825 = vmatpush.bf16.msra.mxu0 0
  %826 = vmatpush.bf16.msra.mxu0 0
  %827 = vmatpush.bf16.msra.mxu0 0
  %828 = vmatpush.bf16.msra.mxu0 0
  %829 = vmatpush.bf16.msra.mxu0 0
  %830 = vmatpush.bf16.msra.mxu0 0
  %831 = vmatpush.bf16.msra.mxu0 0
  %832 = vmatpush.bf16.msra.mxu0 %v582
  %833 = vmatmul.bf16.gmra.mxu0 %v687
  %v834 = vpop.f32.mrf.mxu0
  %v835 = vadd.f32 %v816, %v834
  %v836 = vpop.f32.mrf.mxu0
  %v837 = vadd.f32 %v818, %v836
  %838 = vmatmul.bf16.gmra.mxu0 %v690
  %v839 = vpop.f32.mrf.mxu0
  %v840 = vadd.f32 %v821, %v839
  %v841 = vpop.f32.mrf.mxu0
  %v842 = vadd.f32 %v823, %v841
  %843 = vdwg.mxu0
  %844 = vmatpush.bf16.msra.mxu0 %v515
  %845 = vmatpush.bf16.msra.mxu0 %v511
  %846 = vmatpush.bf16.msra.mxu0 %v507
  %847 = vmatpush.bf16.msra.mxu0 %v503
  %848 = vmatpush.bf16.msra.mxu0 %v499
  %849 = vmatpush.bf16.msra.mxu0 %v495
  %850 = vmatpush.bf16.msra.mxu0 %v491
  %851 = vmatpush.bf16.msra.mxu0 %v487
  %852 = vmatmul.bf16.gmra.mxu0 %v171
  %v853 = vpop.f32.mrf.mxu0
  %v854 = vadd.f32 %v130, %v853
  %v855 = vpop.f32.mrf.mxu0
  %v856 = vadd.f32 %v135, %v855
  %857 = vmatmul.bf16.gmra.mxu0 %v175
  %v858 = vpop.f32.mrf.mxu0
  %v859 = vadd.f32 %v140, %v858
  %v860 = vpop.f32.mrf.mxu0
  %v861 = vadd.f32 %v145, %v860
  %862 = vdwg.mxu0
  %863 = vmatpush.bf16.msra.mxu0 %v547
  %864 = vmatpush.bf16.msra.mxu0 %v543
  %865 = vmatpush.bf16.msra.mxu0 %v539
  %866 = vmatpush.bf16.msra.mxu0 %v535
  %867 = vmatpush.bf16.msra.mxu0 %v531
  %868 = vmatpush.bf16.msra.mxu0 %v527
  %869 = vmatpush.bf16.msra.mxu0 %v523
  %870 = vmatpush.bf16.msra.mxu0 %v519
  %871 = vmatmul.bf16.gmra.mxu0 %v172
  %v872 = vpop.f32.mrf.mxu0
  %v873 = vadd.f32 %v854, %v872
  %v874 = vpop.f32.mrf.mxu0
  %v875 = vadd.f32 %v856, %v874
  %876 = vmatmul.bf16.gmra.mxu0 %v176
  %v877 = vpop.f32.mrf.mxu0
  %v878 = vadd.f32 %v859, %v877
  %v879 = vpop.f32.mrf.mxu0
  %v880 = vadd.f32 %v861, %v879
  %881 = vdwg.mxu0
  %882 = vmatpush.bf16.msra.mxu0 %v579
  %883 = vmatpush.bf16.msra.mxu0 %v575
  %884 = vmatpush.bf16.msra.mxu0 %v571
  %885 = vmatpush.bf16.msra.mxu0 %v567
  %886 = vmatpush.bf16.msra.mxu0 %v563
  %887 = vmatpush.bf16.msra.mxu0 %v559
  %888 = vmatpush.bf16.msra.mxu0 %v555
  %889 = vmatpush.bf16.msra.mxu0 %v551
  %890 = vmatmul.bf16.gmra.mxu0 %v173
  %v891 = vpop.f32.mrf.mxu0
  %v892 = vadd.f32 %v873, %v891
  %v893 = vpop.f32.mrf.mxu0
  %v894 = vadd.f32 %v875, %v893
  %895 = vmatmul.bf16.gmra.mxu0 %v177
  %v896 = vpop.f32.mrf.mxu0
  %v897 = vadd.f32 %v878, %v896
  %v898 = vpop.f32.mrf.mxu0
  %v899 = vadd.f32 %v880, %v898
  %900 = vdwg.mxu0
  %901 = vmatpush.bf16.msra.mxu0 0
  %902 = vmatpush.bf16.msra.mxu0 0
  %903 = vmatpush.bf16.msra.mxu0 0
  %904 = vmatpush.bf16.msra.mxu0 0
  %905 = vmatpush.bf16.msra.mxu0 0
  %906 = vmatpush.bf16.msra.mxu0 0
  %907 = vmatpush.bf16.msra.mxu0 0
  %908 = vmatpush.bf16.msra.mxu0 %v583
  %909 = vmatmul.bf16.gmra.mxu0 %v687
  %v910 = vpop.f32.mrf.mxu0
  %v911 = vadd.f32 %v892, %v910
  %v912 = vpop.f32.mrf.mxu0
  %v913 = vadd.f32 %v894, %v912
  %914 = vmatmul.bf16.gmra.mxu0 %v690
  %v915 = vpop.f32.mrf.mxu0
  %v916 = vadd.f32 %v897, %v915
  %v917 = vpop.f32.mrf.mxu0
  %v918 = vadd.f32 %v899, %v917
  %919 = vdwg.mxu0
  %920 = vmatpush.bf16.msra.mxu0 %v516
  %921 = vmatpush.bf16.msra.mxu0 %v512
  %922 = vmatpush.bf16.msra.mxu0 %v508
  %923 = vmatpush.bf16.msra.mxu0 %v504
  %924 = vmatpush.bf16.msra.mxu0 %v500
  %925 = vmatpush.bf16.msra.mxu0 %v496
  %926 = vmatpush.bf16.msra.mxu0 %v492
  %927 = vmatpush.bf16.msra.mxu0 %v488
  %928 = vmatmul.bf16.gmra.mxu0 %v171
  %v929 = vpop.f32.mrf.mxu0
  %v930 = vadd.f32 %v130, %v929
  %v931 = vpop.f32.mrf.mxu0
  %v932 = vadd.f32 %v135, %v931
  %933 = vmatmul.bf16.gmra.mxu0 %v175
  %v934 = vpop.f32.mrf.mxu0
  %v935 = vadd.f32 %v140, %v934
  %v936 = vpop.f32.mrf.mxu0
  %v937 = vadd.f32 %v145, %v936
  %938 = vdwg.mxu0
  %939 = vmatpush.bf16.msra.mxu0 %v548
  %940 = vmatpush.bf16.msra.mxu0 %v544
  %941 = vmatpush.bf16.msra.mxu0 %v540
  %942 = vmatpush.bf16.msra.mxu0 %v536
  %943 = vmatpush.bf16.msra.mxu0 %v532
  %944 = vmatpush.bf16.msra.mxu0 %v528
  %945 = vmatpush.bf16.msra.mxu0 %v524
  %946 = vmatpush.bf16.msra.mxu0 %v520
  %947 = vmatmul.bf16.gmra.mxu0 %v172
  %v948 = vpop.f32.mrf.mxu0
  %v949 = vadd.f32 %v930, %v948
  %v950 = vpop.f32.mrf.mxu0
  %v951 = vadd.f32 %v932, %v950
  %952 = vmatmul.bf16.gmra.mxu0 %v176
  %v953 = vpop.f32.mrf.mxu0
  %v954 = vadd.f32 %v935, %v953
  %v955 = vpop.f32.mrf.mxu0
  %v956 = vadd.f32 %v937, %v955
  %957 = vdwg.mxu0
  %958 = vmatpush.bf16.msra.mxu0 %v580
  %959 = vmatpush.bf16.msra.mxu0 %v576
  %960 = vmatpush.bf16.msra.mxu0 %v572
  %961 = vmatpush.bf16.msra.mxu0 %v568
  %962 = vmatpush.bf16.msra.mxu0 %v564
  %963 = vmatpush.bf16.msra.mxu0 %v560
  %964 = vmatpush.bf16.msra.mxu0 %v556
  %965 = vmatpush.bf16.msra.mxu0 %v552
  %966 = vmatmul.bf16.gmra.mxu0 %v173
  %v967 = vpop.f32.mrf.mxu0
  %v968 = vadd.f32 %v949, %v967
  %v969 = vpop.f32.mrf.mxu0
  %v970 = vadd.f32 %v951, %v969
  %971 = vmatmul.bf16.gmra.mxu0 %v177
  %v972 = vpop.f32.mrf.mxu0
  %v973 = vadd.f32 %v954, %v972
  %v974 = vpop.f32.mrf.mxu0
  %v975 = vadd.f32 %v956, %v974
  %976 = vdwg.mxu0
  %977 = vmatpush.bf16.msra.mxu0 0
  %978 = vmatpush.bf16.msra.mxu0 0
  %979 = vmatpush.bf16.msra.mxu0 0
  %980 = vmatpush.bf16.msra.mxu0 0
  %981 = vmatpush.bf16.msra.mxu0 0
  %982 = vmatpush.bf16.msra.mxu0 0
  %983 = vmatpush.bf16.msra.mxu0 0
  %984 = vmatpush.bf16.msra.mxu0 %v584
  %985 = vmatmul.bf16.gmra.mxu0 %v687
  %v986 = vpop.f32.mrf.mxu0
  %v987 = vadd.f32 %v968, %v986
  %v988 = vpop.f32.mrf.mxu0
  %v989 = vadd.f32 %v970, %v988
  %990 = vmatmul.bf16.gmra.mxu0 %v690
  %v991 = vpop.f32.mrf.mxu0
  %v992 = vadd.f32 %v973, %v991
  %v993 = vpop.f32.mrf.mxu0
  %v994 = vadd.f32 %v975, %v993
  %995 = vdwg.mxu0
  %v996 = vmax.f32 %v759, 0.0
  %v997 = vmax.f32 %v835, 0.0
  %v998 = vmax.f32 %v911, 0.0
  %v999 = vmax.f32 %v987, 0.0
  %v1000 = vmax.f32 %v761, 0.0
  %v1001 = vmax.f32 %v837, 0.0
  %v1002 = vmax.f32 %v913, 0.0
  %v1003 = vmax.f32 %v989, 0.0
  %v1004 = vmax.f32 %v764, 0.0
  %v1005 = vmax.f32 %v840, 0.0
  %v1006 = vmax.f32 %v916, 0.0
  %v1007 = vmax.f32 %v992, 0.0
  %v1008 = vmax.f32 %v766, 0.0
  %v1009 = vmax.f32 %v842, 0.0
  %v1010 = vmax.f32 %v918, 0.0
  %v1011 = vmax.f32 %v994, 0.0
  %v1012 = vpack.c.bf16 %v997, %v996
  %v1013 = vpack.c.bf16 %v999, %v998
  %v1014 = vpack.c.bf16 %v1001, %v1000
  %v1015 = vpack.c.bf16 %v1003, %v1002
  %v1016 = vpack.c.bf16 %v1005, %v1004
  %v1017 = vpack.c.bf16 %v1007, %v1006
  %v1018 = vpack.c.bf16 %v1009, %v1008
  %v1019 = vpack.c.bf16 %v1011, %v1010
  %1020 = vst [vmem:[%s3] sm:$0xff] %v1012
  %1021 = vst [vmem:[%s3 + $0x8] sm:$0xff] %v1013
  %1022 = vst [vmem:[%s3 + $0x10] sm:$0xff] %v1014
  %1023 = vst [vmem:[%s3 + $0x18] sm:$0xff] %v1015
  %1024 = vst [vmem:[%s3 + $0x20] sm:$0xff] %v1016
  %1025 = vst [vmem:[%s3 + $0x28] sm:$0xff] %v1017
  %1026 = vst [vmem:[%s3 + $0x30] sm:$0xff] %v1018
  %1027 = vst [vmem:[%s3 + $0x38] sm:$0xff] %v1019
  // Predicated region
  $region14: #{cnn_forward.6} parent=0 // pred_check
    _
  $region15: #{cnn_forward.6} parent=0 // pred_check_branch
    %1029 = sbr.rel (0) target = $region17
  $region16: #{cnn_forward.6} parent=0 // pred_region
    _
  $region17: #{cnn_forward.6} parent=0 // pred_fallthru
    _
  // Predicated region
  $region18: #{cnn_forward.6} parent=0 // pred_check
    _
  $region19: #{cnn_forward.6} parent=0 // pred_check_branch
    %1031 = sbr.rel (0) target = $region21
  $region20: #{cnn_forward.6} parent=0 // pred_region
    _
  $region21: #{cnn_forward.6} parent=0 // pred_fallthru
    _

// kernel: cnn_forward.7
$region0: #{cnn_forward.7}
  #allocation0 [shape = 'u32[]', space=smem, size = 0x4, offset = 0x4, fixed_abs, tag = 'smem constant byte address 0x4 - core index']
  #allocation1 [shape = 'u32[72,128]{1,0:T(1,128)}', space=vmem, size = 0x9000, scoped, tag = 'internal scratch']
  %s0 = inlined_call_operand.vmem [shape: bf16[32,800], index: 0, kind: input, shape index: {}]
  %s1 = inlined_call_operand.vmem [shape: bf16[4,800,128], index: 1, kind: input, shape index: {}]
  %s2 = inlined_call_operand.vmem [shape: f32[32,1], index: 2, kind: input, shape index: {}]
  %s3 = inlined_call_operand.vmem [shape: bf16[32,128], index: 3, kind: output, shape index: {}]
  %s4 = sld [smem:[#allocation0]]
  $region53: #{cnn_forward.7} parent=0
    _
  %s6 = ssub.s32 1, %s4
  %s7 = scalar_select 0, %s6, %s4
  loop: start=0, step=1, limit=6
  $region2: #{cnn_forward.7} parent=0 // loop_pre_header
    _
  $region3: #{cnn_forward.7} parent=0 // loop_header
    %s9 = sphi 0, %s13
    %p10 = scmp.ge.s32.totalorder %s9, 6
    %s16 = sphi 0, %s28
    %s17 = sphi 0, %s24
    %s18 = sphi 0, %s16
    %s19 = sphi 0, %s17
    %s20 = sphi 0, %s18
    %s21 = sphi 0, %s19
    %s29 = sphi 0, %s29
    %s31 = sphi 0, %s29
    %s32 = sphi 0, %s31
    %s46 = sphi 0, %s32
    %s54 = sphi 0, %s56
    %s57 = sphi 0, %s54
    %s58 = sphi 0, %s57
    %s74 = sphi 0, %s58
    %s78 = sphi 0, %s78
    %s80 = sphi 0, %s78
    %s81 = sphi 0, %s80
    %s95 = sphi 0, %s81
    %s101 = sphi 0, %s103
    %s104 = sphi 0, %s101
    %s105 = sphi 0, %s104
    %s121 = sphi 0, %s105
  $region4: #{cnn_forward.7} parent=0 // loop_header_branch
    %12 = sbr.rel (%p10) target = $region8
  $region5: #{cnn_forward.7} parent=0 // loop_body
    %s14 = ssub.s32 %s9, 1
    %s15 = ssub.s32 %s9, 2
    %s22 = sadd.s32 1, %s17
    %p23 = scmp.ge.s32.totalorder %s22, 4
    %s24 = scalar_select %p23, 0, %s22
    %s25 = sadd.s32 1, %s16
    %s26 = scalar_select %p23, %s25, %s16
    %p27 = scmp.ge.s32.totalorder %s26, 1
    %s28 = scalar_select %p27, 0, %s26
    %s30 = sadd.s32 %s29, 1
    %p33 = scmp.eq.s32.totalorder %s9, 3
    %p34 = scmp.ne.s32.totalorder %s29, %s31
    %p35 = scmp.eq.s32.totalorder %s9, 0
    %p36 = por %p34, %p35
    %p37 = scmp.ne.s32.totalorder %s29, %s31
    %p38 = scmp.eq.s32.totalorder %s14, 3
    %p39 = por %p37, %p38
    %p40 = scmp.ne.s32.totalorder %s31, %s32
    %p41 = scmp.eq.s32.totalorder %s14, 0
    %p42 = por %p40, %p41
    %p43 = scmp.ne.s32.totalorder %s31, %s32
    %p44 = scmp.eq.s32.totalorder %s15, 3
    %p45 = por %p43, %p44
    %p47 = scmp.ne.s32.totalorder %s32, %s46
    %p48 = scmp.eq.s32.totalorder %s15, 0
    %p49 = por %p47, %p48
    %s50 = ssub.s32 %s17, %s24
    %s51 = ssub.s32 %s16, %s28
    %s52 = sor.u32 %s50, %s51
    %p53 = scmp.eq.s32.totalorder %s52, 0
    %s55 = sadd.s32 %s54, 1
    %s56 = scalar_select %p53, %s54, %s55
    %p59 = pneg %p53
    %p60 = scmp.eq.s32.totalorder %s9, 3
    %p61 = por %p59, %p60
    %p62 = scmp.ne.s32.totalorder %s54, %s57
    %p63 = scmp.eq.s32.totalorder %s9, 0
    %p64 = por %p62, %p63
    %p65 = scmp.ne.s32.totalorder %s54, %s57
    %p66 = scmp.eq.s32.totalorder %s14, 3
    %p67 = por %p65, %p66
    %p68 = scmp.ne.s32.totalorder %s57, %s58
    %p69 = scmp.eq.s32.totalorder %s14, 0
    %p70 = por %p68, %p69
    %p71 = scmp.ne.s32.totalorder %s57, %s58
    %p72 = scmp.eq.s32.totalorder %s15, 3
    %p73 = por %p71, %p72
    %p75 = scmp.ne.s32.totalorder %s58, %s74
    %p76 = scmp.eq.s32.totalorder %s15, 0
    %p77 = por %p75, %p76
    %s79 = sadd.s32 %s78, 1
    %p82 = scmp.eq.s32.totalorder %s9, 3
    %p83 = scmp.ne.s32.totalorder %s78, %s80
    %p84 = scmp.eq.s32.totalorder %s9, 0
    %p85 = por %p83, %p84
    %p86 = scmp.ne.s32.totalorder %s78, %s80
    %p87 = scmp.eq.s32.totalorder %s14, 3
    %p88 = por %p86, %p87
    %p89 = scmp.ne.s32.totalorder %s80, %s81
    %p90 = scmp.eq.s32.totalorder %s14, 0
    %p91 = por %p89, %p90
    %p92 = scmp.ne.s32.totalorder %s80, %s81
    %p93 = scmp.eq.s32.totalorder %s15, 3
    %p94 = por %p92, %p93
    %p96 = scmp.ne.s32.totalorder %s81, %s95
    %p97 = scmp.eq.s32.totalorder %s15, 0
    %p98 = por %p96, %p97
    %s99 = ssub.s32 %s16, %s28
    %p100 = scmp.eq.s32.totalorder %s99, 0
    %s102 = sadd.s32 %s101, 1
    %s103 = scalar_select %p100, %s101, %s102
    %p106 = pneg %p100
    %p107 = scmp.eq.s32.totalorder %s9, 3
    %p108 = por %p106, %p107
    %p109 = scmp.ne.s32.totalorder %s101, %s104
    %p110 = scmp.eq.s32.totalorder %s9, 0
    %p111 = por %p109, %p110
    %p112 = scmp.ne.s32.totalorder %s101, %s104
    %p113 = scmp.eq.s32.totalorder %s14, 3
    %p114 = por %p112, %p113
    %p115 = scmp.ne.s32.totalorder %s104, %s105
    %p116 = scmp.eq.s32.totalorder %s14, 0
    %p117 = por %p115, %p116
    %p118 = scmp.ne.s32.totalorder %s104, %s105
    %p119 = scmp.eq.s32.totalorder %s15, 3
    %p120 = por %p118, %p119
    %p122 = scmp.ne.s32.totalorder %s105, %s121
    %p123 = scmp.eq.s32.totalorder %s15, 0
    %p124 = por %p122, %p123
    %p125 = scmp.le.s32.totalorder 1, %s9
    %p126 = scmp.lt.s32.totalorder %s9, 5
    %p127 = pnand %p125, %p126
    %p128 = pneg %p127
    // Predicated region
    $region9: #{cnn_forward.7} parent=5 // pred_check
      _
    $region10: #{cnn_forward.7} parent=5 // pred_check_branch
      %130 = sbr.rel (%p127) target = $region12
    $region11: #{cnn_forward.7} parent=5 // pred_region
      %s131 = ssub.s32 %s9, 1
      // Predicated region
      $region13: #{cnn_forward.7} parent=11 // pred_check
        %p132 = pneg %p42
      $region14: #{cnn_forward.7} parent=11 // pred_check_branch
        %134 = sbr.rel (%p132) target = $region16
      $region15: #{cnn_forward.7} parent=11 // pred_region
        _
      $region16: #{cnn_forward.7} parent=11 // pred_fallthru
        _
      // Predicated region
      $region17: #{cnn_forward.7} parent=11 // pred_check
        %p135 = pneg %p91
      $region18: #{cnn_forward.7} parent=11 // pred_check_branch
        %137 = sbr.rel (%p135) target = $region20
      $region19: #{cnn_forward.7} parent=11 // pred_region
        _
      $region20: #{cnn_forward.7} parent=11 // pred_fallthru
        _
    $region12: #{cnn_forward.7} parent=5 // pred_fallthru
      _
    %p138 = scmp.lt.s32.totalorder %s9, 4
    // Predicated region
    $region21: #{cnn_forward.7} parent=5 // pred_check
      %p139 = pneg %p138
    $region22: #{cnn_forward.7} parent=5 // pred_check_branch
      %141 = sbr.rel (%p139) target = $region24
    $region23: #{cnn_forward.7} parent=5 // pred_region
      // Predicated region
      $region25: #{cnn_forward.7} parent=23 // pred_check
        %p142 = pneg %p64
      $region26: #{cnn_forward.7} parent=23 // pred_check_branch
        %144 = sbr.rel (%p142) target = $region28
      $region27: #{cnn_forward.7} parent=23 // pred_region
        %p145 = scmp.lt.s32.totalorder %s17, 3
        %s146 = scalar_select %p145, %s17, 3
        %p147 = scmp.lt.s32.totalorder %s16, 0
        %s148 = scalar_select %p147, %s16, 0
        %s149 = smul.addr %s146, 100
        %s150 = sadd.s32 %s148, %s149
        %s151 = smul.addr %s150, 4
        %s152 = scalar_lea.vmem %s1, %s151
      $region28: #{cnn_forward.7} parent=23 // pred_fallthru
        _
    $region24: #{cnn_forward.7} parent=5 // pred_fallthru
      _
    %p153 = scmp.le.s32.totalorder 1, %s9
    %p154 = scmp.lt.s32.totalorder %s9, 5
    %p155 = pnand %p153, %p154
    %p156 = pneg %p155
    // Predicated region
    $region29: #{cnn_forward.7} parent=5 // pred_check
      _
    $region30: #{cnn_forward.7} parent=5 // pred_check_branch
      %158 = sbr.rel (%p155) target = $region32
    $region31: #{cnn_forward.7} parent=5 // pred_region
      %s159 = ssub.s32 %s9, 1
      %p160 = pneg %p42
      %p161 = pneg %p39
      %p162 = scmp.lt.s32.totalorder %s19, 3
      %s163 = scalar_select %p162, %s19, 3
      %p164 = scmp.lt.s32.totalorder %s18, 0
      %s165 = scalar_select %p164, %s18, 0
      %s166 = smul.addr %s163, 100
      %s167 = sadd.s32 %s165, %s166
      %s168 = smul.addr %s167, 4
      %s169 = scalar_lea.vmem %s1, %s168
      %p170 = pneg %p70
      %p171 = pneg %p67
      %p172 = pneg %p91
      %p173 = pneg %p88
      %p174 = pneg %p117
      %p175 = pneg %p114
      %p176 = scmp.lt.s32.totalorder %s18, 0
      %s177 = scalar_select %p176, %s18, 0
      %s178 = smul.addr %s177, 4
      %s179 = scalar_lea.vmem %s3, %s178
      %p180 = scmp.lt.s32.totalorder %s19, 3
      %s181 = scalar_select %p180, %s19, 3
      %p182 = scmp.lt.s32.totalorder %s18, 0
      %s183 = scalar_select %p182, %s18, 0
      %s184 = smul.addr %s181, 100
      %s185 = sadd.s32 %s183, %s184
      %s186 = smul.addr %s185, 4
      %s187 = scalar_lea.vmem %s1, %s186
      %p188 = scmp.lt.s32.totalorder %s18, 0
      %s189 = scalar_select %p188, %s18, 0
      %s190 = smul.addr %s189, 4
      %s191 = scalar_lea.vmem %s3, %s190
      %v193 = vld [vmem:[%s0] sm:$0xff]
      %v194 = vld [vmem:[%s0 + $0x8] sm:$0xff]
      %v195 = vld [vmem:[%s0 + $0x10] sm:$0xff]
      %v196 = vld [vmem:[%s0 + $0x18] sm:$0xf]
      %v197 = vld [vmem:[%s0 + $0x1c] sm:$0xff]
      %v198 = vld [vmem:[%s0 + $0x24] sm:$0xff]
      %v199 = vld [vmem:[%s0 + $0x2c] sm:$0xff]
      %v200 = vld [vmem:[%s0 + $0x34] sm:$0xf]
      %v201 = vld [vmem:[%s0 + $0x38] sm:$0xff]
      %v202 = vld [vmem:[%s0 + $0x40] sm:$0xff]
      %v203 = vld [vmem:[%s0 + $0x48] sm:$0xff]
      %v204 = vld [vmem:[%s0 + $0x50] sm:$0xf]
      %v205 = vld [vmem:[%s0 + $0x54] sm:$0xff]
      %v206 = vld [vmem:[%s0 + $0x5c] sm:$0xff]
      %v207 = vld [vmem:[%s0 + $0x64] sm:$0xff]
      %v208 = vld [vmem:[%s0 + $0x6c] sm:$0xf]
      %v209 = vld [vmem:[%s187] sm:$0xf]
      %v210 = vld [vmem:[%s187 + $0x4] sm:$0xf]
      %v211 = vld [vmem:[%s187 + $0x8] sm:$0xf]
      %v212 = vld [vmem:[%s187 + $0xc] sm:$0xf]
      %v213 = vld [vmem:[%s187 + $0x10] sm:$0xf]
      %v214 = vld [vmem:[%s187 + $0x14] sm:$0xf]
      %v215 = vld [vmem:[%s187 + $0x18] sm:$0xf]
      %v216 = vld [vmem:[%s187 + $0x1c] sm:$0xf]
      %v217 = vld [vmem:[%s187 + $0x20] sm:$0xf]
      %v218 = vld [vmem:[%s187 + $0x24] sm:$0xf]
      %v219 = vld [vmem:[%s187 + $0x28] sm:$0xf]
      %v220 = vld [vmem:[%s187 + $0x2c] sm:$0xf]
      %v221 = vld [vmem:[%s187 + $0x30] sm:$0xf]
      %v222 = vld [vmem:[%s187 + $0x34] sm:$0xf]
      %v223 = vld [vmem:[%s187 + $0x38] sm:$0xf]
      %v224 = vld [vmem:[%s187 + $0x3c] sm:$0xf]
      %v225 = vld [vmem:[%s187 + $0x40] sm:$0xf]
      %v226 = vld [vmem:[%s187 + $0x44] sm:$0xf]
      %v227 = vld [vmem:[%s187 + $0x48] sm:$0xf]
      %v228 = vld [vmem:[%s187 + $0x4c] sm:$0xf]
      %v229 = vld [vmem:[%s187 + $0x50] sm:$0xf]
      %v230 = vld [vmem:[%s187 + $0x54] sm:$0xf]
      %v231 = vld [vmem:[%s187 + $0x58] sm:$0xf]
      %v232 = vld [vmem:[%s187 + $0x5c] sm:$0xf]
      %v233 = vld [vmem:[%s187 + $0x60] sm:$0xf]
      %v234 = vld [vmem:[%s187 + $0x64] sm:$0xf]
      %v235 = vld [vmem:[%s187 + $0x68] sm:$0xf]
      %v236 = vld [vmem:[%s187 + $0x6c] sm:$0xf]
      %v237 = vld [vmem:[%s187 + $0x70] sm:$0xf]
      %v238 = vld [vmem:[%s187 + $0x74] sm:$0xf]
      %v239 = vld [vmem:[%s187 + $0x78] sm:$0xf]
      %v240 = vld [vmem:[%s187 + $0x7c] sm:$0xf]
      %v241 = vld [vmem:[%s187 + $0x80] sm:$0xf]
      %v242 = vld [vmem:[%s187 + $0x84] sm:$0xf]
      %v243 = vld [vmem:[%s187 + $0x88] sm:$0xf]
      %v244 = vld [vmem:[%s187 + $0x8c] sm:$0xf]
      %v245 = vld [vmem:[%s187 + $0x90] sm:$0xf]
      %v246 = vld [vmem:[%s187 + $0x94] sm:$0xf]
      %v247 = vld [vmem:[%s187 + $0x98] sm:$0xf]
      %v248 = vld [vmem:[%s187 + $0x9c] sm:$0xf]
      %v249 = vld [vmem:[%s187 + $0xa0] sm:$0xf]
      %v250 = vld [vmem:[%s187 + $0xa4] sm:$0xf]
      %v251 = vld [vmem:[%s187 + $0xa8] sm:$0xf]
      %v252 = vld [vmem:[%s187 + $0xac] sm:$0xf]
      %v253 = vld [vmem:[%s187 + $0xb0] sm:$0xf]
      %v254 = vld [vmem:[%s187 + $0xb4] sm:$0xf]
      %v255 = vld [vmem:[%s187 + $0xb8] sm:$0xf]
      %v256 = vld [vmem:[%s187 + $0xbc] sm:$0xf]
      %v257 = vld [vmem:[%s187 + $0xc0] sm:$0xf]
      %v258 = vld [vmem:[%s187 + $0xc4] sm:$0xf]
      %v259 = vld [vmem:[%s187 + $0xc8] sm:$0xf]
      %v260 = vld [vmem:[%s187 + $0xcc] sm:$0xf]
      %v261 = vld [vmem:[%s187 + $0xd0] sm:$0xf]
      %v262 = vld [vmem:[%s187 + $0xd4] sm:$0xf]
      %v263 = vld [vmem:[%s187 + $0xd8] sm:$0xf]
      %v264 = vld [vmem:[%s187 + $0xdc] sm:$0xf]
      %v265 = vld [vmem:[%s187 + $0xe0] sm:$0xf]
      %v266 = vld [vmem:[%s187 + $0xe4] sm:$0xf]
      %v267 = vld [vmem:[%s187 + $0xe8] sm:$0xf]
      %v268 = vld [vmem:[%s187 + $0xec] sm:$0xf]
      %v269 = vld [vmem:[%s187 + $0xf0] sm:$0xf]
      %v270 = vld [vmem:[%s187 + $0xf4] sm:$0xf]
      %v271 = vld [vmem:[%s187 + $0xf8] sm:$0xf]
      %v272 = vld [vmem:[%s187 + $0xfc] sm:$0xf]
      %v273 = vld [vmem:[%s187 + $0x100] sm:$0xf]
      %v274 = vld [vmem:[%s187 + $0x104] sm:$0xf]
      %v275 = vld [vmem:[%s187 + $0x108] sm:$0xf]
      %v276 = vld [vmem:[%s187 + $0x10c] sm:$0xf]
      %v277 = vld [vmem:[%s187 + $0x110] sm:$0xf]
      %v278 = vld [vmem:[%s187 + $0x114] sm:$0xf]
      %v279 = vld [vmem:[%s187 + $0x118] sm:$0xf]
      %v280 = vld [vmem:[%s187 + $0x11c] sm:$0xf]
      %v281 = vld [vmem:[%s187 + $0x120] sm:$0xf]
      %v282 = vld [vmem:[%s187 + $0x124] sm:$0xf]
      %v283 = vld [vmem:[%s187 + $0x128] sm:$0xf]
      %v284 = vld [vmem:[%s187 + $0x12c] sm:$0xf]
      %v285 = vld [vmem:[%s187 + $0x130] sm:$0xf]
      %v286 = vld [vmem:[%s187 + $0x134] sm:$0xf]
      %v287 = vld [vmem:[%s187 + $0x138] sm:$0xf]
      %v288 = vld [vmem:[%s187 + $0x13c] sm:$0xf]
      %v289 = vld [vmem:[%s187 + $0x140] sm:$0xf]
      %v290 = vld [vmem:[%s187 + $0x144] sm:$0xf]
      %v291 = vld [vmem:[%s187 + $0x148] sm:$0xf]
      %v292 = vld [vmem:[%s187 + $0x14c] sm:$0xf]
      %v293 = vld [vmem:[%s187 + $0x150] sm:$0xf]
      %v294 = vld [vmem:[%s187 + $0x154] sm:$0xf]
      %v295 = vld [vmem:[%s187 + $0x158] sm:$0xf]
      %v296 = vld [vmem:[%s187 + $0x15c] sm:$0xf]
      %v297 = vld [vmem:[%s187 + $0x160] sm:$0xf]
      %v298 = vld [vmem:[%s187 + $0x164] sm:$0xf]
      %v299 = vld [vmem:[%s187 + $0x168] sm:$0xf]
      %v300 = vld [vmem:[%s187 + $0x16c] sm:$0xf]
      %v301 = vld [vmem:[%s187 + $0x170] sm:$0xf]
      %v302 = vld [vmem:[%s187 + $0x174] sm:$0xf]
      %v303 = vld [vmem:[%s187 + $0x178] sm:$0xf]
      %v304 = vld [vmem:[%s187 + $0x17c] sm:$0xf]
      %v305 = vld [vmem:[%s187 + $0x180] sm:$0xf]
      %v306 = vld [vmem:[%s187 + $0x184] sm:$0xf]
      %v307 = vld [vmem:[%s187 + $0x188] sm:$0xf]
      %v308 = vld [vmem:[%s187 + $0x18c] sm:$0xf]
      %v309 = vld [vmem:[%s2] sm:$0xff]
      %v310 = vld [vmem:[%s2 + $0x8] sm:$0xff]
      %v311 = vld [vmem:[%s2 + $0x10] sm:$0xff]
      %v312 = vld [vmem:[%s2 + $0x18] sm:$0xff]
      %314 = vset.pattern.permute.xlu0 0
      %315 = vperm.xlu0 %314, %v309
      %v316 = vpop.permute.xlu0 %315
      %319 = vset.pattern.permute.xlu0 0
      %320 = vperm.xlu0 %319, %v310
      %v321 = vpop.permute.xlu0 %320
      %324 = vset.pattern.permute.xlu0 0
      %325 = vperm.xlu0 %324, %v311
      %v326 = vpop.permute.xlu0 %325
      %329 = vset.pattern.permute.xlu0 0
      %330 = vperm.xlu0 %329, %v312
      %v331 = vpop.permute.xlu0 %330
      %v349 = vunpack.c.l.b16 %v193
      %v350 = vunpack.c.h.b16 %v193
      %v351 = vunpack.c.l.b16 %v194
      %v352 = vunpack.c.h.b16 %v194
      %v353 = vunpack.c.l.b16 %v195
      %v354 = vunpack.c.h.b16 %v195
      %v355 = vunpack.c.l.b16 %v196
      %v356 = vunpack.c.l.b16 %v197
      %v357 = vunpack.c.h.b16 %v197
      %v358 = vunpack.c.l.b16 %v198
      %v359 = vunpack.c.h.b16 %v198
      %v360 = vunpack.c.l.b16 %v199
      %v361 = vunpack.c.h.b16 %v199
      %v362 = vunpack.c.l.b16 %v200
      %v363 = vunpack.c.l.b16 %v201
      %v364 = vunpack.c.h.b16 %v201
      %v365 = vunpack.c.l.b16 %v202
      %v366 = vunpack.c.h.b16 %v202
      %v367 = vunpack.c.l.b16 %v203
      %v368 = vunpack.c.h.b16 %v203
      %v369 = vunpack.c.l.b16 %v204
      %v370 = vunpack.c.l.b16 %v205
      %v371 = vunpack.c.h.b16 %v205
      %v372 = vunpack.c.l.b16 %v206
      %v373 = vunpack.c.h.b16 %v206
      %v374 = vunpack.c.l.b16 %v207
      %v375 = vunpack.c.h.b16 %v207
      %v376 = vunpack.c.l.b16 %v208
      %v377 = vpack.c.b16 %v356, %v349
      %v378 = vpack.c.b16 %v357, %v350
      %v379 = vpack.c.b16 %v358, %v351
      %v380 = vpack.c.b16 %v359, %v352
      %v381 = vpack.c.b16 %v360, %v353
      %v382 = vpack.c.b16 %v361, %v354
      %v383 = vpack.c.b16 %v362, %v355
      %v384 = vpack.c.b16 %v370, %v363
      %v385 = vpack.c.b16 %v371, %v364
      %v386 = vpack.c.b16 %v372, %v365
      %v387 = vpack.c.b16 %v373, %v366
      %v388 = vpack.c.b16 %v374, %v367
      %v389 = vpack.c.b16 %v375, %v368
      %v390 = vpack.c.b16 %v376, %v369
      %v503 = vunpack.c.l.b16 %v209
      %v504 = vunpack.c.l.b16 %v210
      %v505 = vunpack.c.l.b16 %v211
      %v506 = vunpack.c.l.b16 %v212
      %v507 = vunpack.c.l.b16 %v213
      %v508 = vunpack.c.l.b16 %v214
      %v509 = vunpack.c.l.b16 %v215
      %v510 = vunpack.c.l.b16 %v216
      %v511 = vunpack.c.l.b16 %v217
      %v512 = vunpack.c.l.b16 %v218
      %v513 = vunpack.c.l.b16 %v219
      %v514 = vunpack.c.l.b16 %v220
      %v515 = vunpack.c.l.b16 %v221
      %v516 = vunpack.c.l.b16 %v222
      %v517 = vunpack.c.l.b16 %v223
      %v518 = vunpack.c.l.b16 %v224
      %v519 = vunpack.c.l.b16 %v225
      %v520 = vunpack.c.l.b16 %v226
      %v521 = vunpack.c.l.b16 %v227
      %v522 = vunpack.c.l.b16 %v228
      %v523 = vunpack.c.l.b16 %v229
      %v524 = vunpack.c.l.b16 %v230
      %v525 = vunpack.c.l.b16 %v231
      %v526 = vunpack.c.l.b16 %v232
      %v527 = vunpack.c.l.b16 %v233
      %v528 = vunpack.c.l.b16 %v234
      %v529 = vunpack.c.l.b16 %v235
      %v530 = vunpack.c.l.b16 %v236
      %v531 = vunpack.c.l.b16 %v237
      %v532 = vunpack.c.l.b16 %v238
      %v533 = vunpack.c.l.b16 %v239
      %v534 = vunpack.c.l.b16 %v240
      %v535 = vunpack.c.l.b16 %v241
      %v536 = vunpack.c.l.b16 %v242
      %v537 = vunpack.c.l.b16 %v243
      %v538 = vunpack.c.l.b16 %v244
      %v539 = vunpack.c.l.b16 %v245
      %v540 = vunpack.c.l.b16 %v246
      %v541 = vunpack.c.l.b16 %v247
      %v542 = vunpack.c.l.b16 %v248
      %v543 = vunpack.c.l.b16 %v249
      %v544 = vunpack.c.l.b16 %v250
      %v545 = vunpack.c.l.b16 %v251
      %v546 = vunpack.c.l.b16 %v252
      %v547 = vunpack.c.l.b16 %v253
      %v548 = vunpack.c.l.b16 %v254
      %v549 = vunpack.c.l.b16 %v255
      %v550 = vunpack.c.l.b16 %v256
      %v551 = vunpack.c.l.b16 %v257
      %v552 = vunpack.c.l.b16 %v258
      %v553 = vunpack.c.l.b16 %v259
      %v554 = vunpack.c.l.b16 %v260
      %v555 = vunpack.c.l.b16 %v261
      %v556 = vunpack.c.l.b16 %v262
      %v557 = vunpack.c.l.b16 %v263
      %v558 = vunpack.c.l.b16 %v264
      %v559 = vunpack.c.l.b16 %v265
      %v560 = vunpack.c.l.b16 %v266
      %v561 = vunpack.c.l.b16 %v267
      %v562 = vunpack.c.l.b16 %v268
      %v563 = vunpack.c.l.b16 %v269
      %v564 = vunpack.c.l.b16 %v270
      %v565 = vunpack.c.l.b16 %v271
      %v566 = vunpack.c.l.b16 %v272
      %v567 = vunpack.c.l.b16 %v273
      %v568 = vunpack.c.l.b16 %v274
      %v569 = vunpack.c.l.b16 %v275
      %v570 = vunpack.c.l.b16 %v276
      %v571 = vunpack.c.l.b16 %v277
      %v572 = vunpack.c.l.b16 %v278
      %v573 = vunpack.c.l.b16 %v279
      %v574 = vunpack.c.l.b16 %v280
      %v575 = vunpack.c.l.b16 %v281
      %v576 = vunpack.c.l.b16 %v282
      %v577 = vunpack.c.l.b16 %v283
      %v578 = vunpack.c.l.b16 %v284
      %v579 = vunpack.c.l.b16 %v285
      %v580 = vunpack.c.l.b16 %v286
      %v581 = vunpack.c.l.b16 %v287
      %v582 = vunpack.c.l.b16 %v288
      %v583 = vunpack.c.l.b16 %v289
      %v584 = vunpack.c.l.b16 %v290
      %v585 = vunpack.c.l.b16 %v291
      %v586 = vunpack.c.l.b16 %v292
      %v587 = vunpack.c.l.b16 %v293
      %v588 = vunpack.c.l.b16 %v294
      %v589 = vunpack.c.l.b16 %v295
      %v590 = vunpack.c.l.b16 %v296
      %v591 = vunpack.c.l.b16 %v297
      %v592 = vunpack.c.l.b16 %v298
      %v593 = vunpack.c.l.b16 %v299
      %v594 = vunpack.c.l.b16 %v300
      %v595 = vunpack.c.l.b16 %v301
      %v596 = vunpack.c.l.b16 %v302
      %v597 = vunpack.c.l.b16 %v303
      %v598 = vunpack.c.l.b16 %v304
      %v599 = vunpack.c.l.b16 %v305
      %v600 = vunpack.c.l.b16 %v306
      %v601 = vunpack.c.l.b16 %v307
      %v602 = vunpack.c.l.b16 %v308
      %v603 = vpack.c.b16 %v504, %v503
      %v604 = vpack.c.b16 %v506, %v505
      %v605 = vpack.c.b16 %v508, %v507
      %v606 = vpack.c.b16 %v510, %v509
      %v607 = vpack.c.b16 %v512, %v511
      %v608 = vpack.c.b16 %v514, %v513
      %v609 = vpack.c.b16 %v516, %v515
      %v610 = vpack.c.b16 %v518, %v517
      %v611 = vpack.c.b16 %v520, %v519
      %v612 = vpack.c.b16 %v522, %v521
      %v613 = vpack.c.b16 %v524, %v523
      %v614 = vpack.c.b16 %v526, %v525
      %v615 = vpack.c.b16 %v528, %v527
      %v616 = vpack.c.b16 %v530, %v529
      %v617 = vpack.c.b16 %v532, %v531
      %v618 = vpack.c.b16 %v534, %v533
      %v619 = vpack.c.b16 %v536, %v535
      %v620 = vpack.c.b16 %v538, %v537
      %v621 = vpack.c.b16 %v540, %v539
      %v622 = vpack.c.b16 %v542, %v541
      %v623 = vpack.c.b16 %v544, %v543
      %v624 = vpack.c.b16 %v546, %v545
      %v625 = vpack.c.b16 %v548, %v547
      %v626 = vpack.c.b16 %v550, %v549
      %v627 = vpack.c.b16 %v552, %v551
      %v628 = vpack.c.b16 %v554, %v553
      %v629 = vpack.c.b16 %v556, %v555
      %v630 = vpack.c.b16 %v558, %v557
      %v631 = vpack.c.b16 %v560, %v559
      %v632 = vpack.c.b16 %v562, %v561
      %v633 = vpack.c.b16 %v564, %v563
      %v634 = vpack.c.b16 %v566, %v565
      %v635 = vpack.c.b16 %v568, %v567
      %v636 = vpack.c.b16 %v570, %v569
      %v637 = vpack.c.b16 %v572, %v571
      %v638 = vpack.c.b16 %v574, %v573
      %v639 = vpack.c.b16 %v576, %v575
      %v640 = vpack.c.b16 %v578, %v577
      %v641 = vpack.c.b16 %v580, %v579
      %v642 = vpack.c.b16 %v582, %v581
      %v643 = vpack.c.b16 %v584, %v583
      %v644 = vpack.c.b16 %v586, %v585
      %v645 = vpack.c.b16 %v588, %v587
      %v646 = vpack.c.b16 %v590, %v589
      %v647 = vpack.c.b16 %v592, %v591
      %v648 = vpack.c.b16 %v594, %v593
      %v649 = vpack.c.b16 %v596, %v595
      %v650 = vpack.c.b16 %v598, %v597
      %v651 = vpack.c.b16 %v600, %v599
      %v652 = vpack.c.b16 %v602, %v601
      %vm703 = vcmask 261120
      %v705 = vsel %vm703, %v383, 0
      %v708 = vsel %vm703, %v390, 0
      %710 = vmatpush.bf16.msra.mxu0 %v610
      %711 = vmatpush.bf16.msra.mxu0 %v609
      %712 = vmatpush.bf16.msra.mxu0 %v608
      %713 = vmatpush.bf16.msra.mxu0 %v607
      %714 = vmatpush.bf16.msra.mxu0 %v606
      %715 = vmatpush.bf16.msra.mxu0 %v605
      %716 = vmatpush.bf16.msra.mxu0 %v604
      %717 = vmatpush.bf16.msra.mxu0 %v603
      %718 = vmatmul.bf16.gmra.mxu0 %v377
      %v719 = vpop.f32.mrf.mxu0
      %v720 = vadd.f32 %v316, %v719
      %v721 = vpop.f32.mrf.mxu0
      %v722 = vadd.f32 %v321, %v721
      %723 = vmatmul.bf16.gmra.mxu0 %v384
      %v724 = vpop.f32.mrf.mxu0
      %v725 = vadd.f32 %v326, %v724
      %v726 = vpop.f32.mrf.mxu0
      %v727 = vadd.f32 %v331, %v726
      %728 = vdwg.mxu0
      %729 = vmatpush.bf16.msra.mxu0 %v618
      %730 = vmatpush.bf16.msra.mxu0 %v617
      %731 = vmatpush.bf16.msra.mxu0 %v616
      %732 = vmatpush.bf16.msra.mxu0 %v615
      %733 = vmatpush.bf16.msra.mxu0 %v614
      %734 = vmatpush.bf16.msra.mxu0 %v613
      %735 = vmatpush.bf16.msra.mxu0 %v612
      %736 = vmatpush.bf16.msra.mxu0 %v611
      %737 = vmatmul.bf16.gmra.mxu0 %v378
      %v738 = vpop.f32.mrf.mxu0
      %v739 = vadd.f32 %v720, %v738
      %v740 = vpop.f32.mrf.mxu0
      %v741 = vadd.f32 %v722, %v740
      %742 = vmatmul.bf16.gmra.mxu0 %v385
      %v743 = vpop.f32.mrf.mxu0
      %v744 = vadd.f32 %v725, %v743
      %v745 = vpop.f32.mrf.mxu0
      %v746 = vadd.f32 %v727, %v745
      %747 = vdwg.mxu0
      %748 = vmatpush.bf16.msra.mxu0 %v626
      %749 = vmatpush.bf16.msra.mxu0 %v625
      %750 = vmatpush.bf16.msra.mxu0 %v624
      %751 = vmatpush.bf16.msra.mxu0 %v623
      %752 = vmatpush.bf16.msra.mxu0 %v622
      %753 = vmatpush.bf16.msra.mxu0 %v621
      %754 = vmatpush.bf16.msra.mxu0 %v620
      %755 = vmatpush.bf16.msra.mxu0 %v619
      %756 = vmatmul.bf16.gmra.mxu0 %v379
      %v757 = vpop.f32.mrf.mxu0
      %v758 = vadd.f32 %v739, %v757
      %v759 = vpop.f32.mrf.mxu0
      %v760 = vadd.f32 %v741, %v759
      %761 = vmatmul.bf16.gmra.mxu0 %v386
      %v762 = vpop.f32.mrf.mxu0
      %v763 = vadd.f32 %v744, %v762
      %v764 = vpop.f32.mrf.mxu0
      %v765 = vadd.f32 %v746, %v764
      %766 = vdwg.mxu0
      %767 = vmatpush.bf16.msra.mxu0 %v634
      %768 = vmatpush.bf16.msra.mxu0 %v633
      %769 = vmatpush.bf16.msra.mxu0 %v632
      %770 = vmatpush.bf16.msra.mxu0 %v631
      %771 = vmatpush.bf16.msra.mxu0 %v630
      %772 = vmatpush.bf16.msra.mxu0 %v629
      %773 = vmatpush.bf16.msra.mxu0 %v628
      %774 = vmatpush.bf16.msra.mxu0 %v627
      %775 = vmatmul.bf16.gmra.mxu0 %v380
      %v776 = vpop.f32.mrf.mxu0
      %v777 = vadd.f32 %v758, %v776
      %v778 = vpop.f32.mrf.mxu0
      %v779 = vadd.f32 %v760, %v778
      %780 = vmatmul.bf16.gmra.mxu0 %v387
      %v781 = vpop.f32.mrf.mxu0
      %v782 = vadd.f32 %v763, %v781
      %v783 = vpop.f32.mrf.mxu0
      %v784 = vadd.f32 %v765, %v783
      %785 = vdwg.mxu0
      %786 = vmatpush.bf16.msra.mxu0 %v642
      %787 = vmatpush.bf16.msra.mxu0 %v641
      %788 = vmatpush.bf16.msra.mxu0 %v640
      %789 = vmatpush.bf16.msra.mxu0 %v639
      %790 = vmatpush.bf16.msra.mxu0 %v638
      %791 = vmatpush.bf16.msra.mxu0 %v637
      %792 = vmatpush.bf16.msra.mxu0 %v636
      %793 = vmatpush.bf16.msra.mxu0 %v635
      %794 = vmatmul.bf16.gmra.mxu0 %v381
      %v795 = vpop.f32.mrf.mxu0
      %v796 = vadd.f32 %v777, %v795
      %v797 = vpop.f32.mrf.mxu0
      %v798 = vadd.f32 %v779, %v797
      %799 = vmatmul.bf16.gmra.mxu0 %v388
      %v800 = vpop.f32.mrf.mxu0
      %v801 = vadd.f32 %v782, %v800
      %v802 = vpop.f32.mrf.mxu0
      %v803 = vadd.f32 %v784, %v802
      %804 = vdwg.mxu0
      %805 = vmatpush.bf16.msra.mxu0 %v650
      %806 = vmatpush.bf16.msra.mxu0 %v649
      %807 = vmatpush.bf16.msra.mxu0 %v648
      %808 = vmatpush.bf16.msra.mxu0 %v647
      %809 = vmatpush.bf16.msra.mxu0 %v646
      %810 = vmatpush.bf16.msra.mxu0 %v645
      %811 = vmatpush.bf16.msra.mxu0 %v644
      %812 = vmatpush.bf16.msra.mxu0 %v643
      %813 = vmatmul.bf16.gmra.mxu0 %v382
      %v814 = vpop.f32.mrf.mxu0
      %v815 = vadd.f32 %v796, %v814
      %v816 = vpop.f32.mrf.mxu0
      %v817 = vadd.f32 %v798, %v816
      %818 = vmatmul.bf16.gmra.mxu0 %v389
      %v819 = vpop.f32.mrf.mxu0
      %v820 = vadd.f32 %v801, %v819
      %v821 = vpop.f32.mrf.mxu0
      %v822 = vadd.f32 %v803, %v821
      %823 = vdwg.mxu0
      %824 = vmatpush.bf16.msra.mxu0 0
      %825 = vmatpush.bf16.msra.mxu0 0
      %826 = vmatpush.bf16.msra.mxu0 0
      %827 = vmatpush.bf16.msra.mxu0 0
      %828 = vmatpush.bf16.msra.mxu0 0
      %829 = vmatpush.bf16.msra.mxu0 0
      %830 = vmatpush.bf16.msra.mxu0 %v652
      %831 = vmatpush.bf16.msra.mxu0 %v651
      %832 = vmatmul.bf16.gmra.mxu0 %v705
      %v833 = vpop.f32.mrf.mxu0
      %v834 = vadd.f32 %v815, %v833
      %v835 = vpop.f32.mrf.mxu0
      %v836 = vadd.f32 %v817, %v835
      %837 = vmatmul.bf16.gmra.mxu0 %v708
      %v838 = vpop.f32.mrf.mxu0
      %v839 = vadd.f32 %v820, %v838
      %v840 = vpop.f32.mrf.mxu0
      %v841 = vadd.f32 %v822, %v840
      %842 = vdwg.mxu0
      %v843 = vmax.f32 %v834, 0.0
      %v844 = vmax.f32 %v836, 0.0
      %v845 = vmax.f32 %v839, 0.0
      %v846 = vmax.f32 %v841, 0.0
      %v847 = vpack.c.bf16 %v843, %v843
      %v848 = vpack.c.bf16 %v844, %v844
      %v849 = vpack.c.bf16 %v845, %v845
      %v850 = vpack.c.bf16 %v846, %v846
      %p851 = scmp.eq.s32.totalorder %s19, 0
      // Predicated region
      $region33: #{cnn_forward.7} parent=31 // pred_check
        %p852 = pneg %p851
      $region34: #{cnn_forward.7} parent=31 // pred_check_branch
        %854 = sbr.rel (%p852) target = $region36
      $region35: #{cnn_forward.7} parent=31 // pred_region
        %855 = vst [vmem:[%s191] sm:$0xf] %v847
        %856 = vst [vmem:[%s191 + $0x4] sm:$0xf] %v848
        %857 = vst [vmem:[%s191 + $0x8] sm:$0xf] %v849
        %858 = vst [vmem:[%s191 + $0xc] sm:$0xf] %v850
      $region36: #{cnn_forward.7} parent=31 // pred_fallthru
        _
      %p859 = scmp.gt.s32.totalorder %s19, 0
      // Predicated region
      $region37: #{cnn_forward.7} parent=31 // pred_check
        %p860 = pneg %p859
      $region38: #{cnn_forward.7} parent=31 // pred_check_branch
        %862 = sbr.rel (%p860) target = $region40
      $region39: #{cnn_forward.7} parent=31 // pred_region
        %v863 = vld [vmem:[%s191] sm:$0xf]
        %v864 = vld [vmem:[%s191 + $0x4] sm:$0xf]
        %v865 = vld [vmem:[%s191 + $0x8] sm:$0xf]
        %v866 = vld [vmem:[%s191 + $0xc] sm:$0xf]
        %v867 = vunpack.c.l.bf16 %v863
        %v868 = vunpack.c.l.bf16 %v864
        %v869 = vunpack.c.l.bf16 %v865
        %v870 = vunpack.c.l.bf16 %v866
        %v871 = vunpack.c.l.bf16 %v847
        %v872 = vunpack.c.l.bf16 %v848
        %v873 = vunpack.c.l.bf16 %v849
        %v874 = vunpack.c.l.bf16 %v850
        %v875 = vmax.f32 %v867, %v871
        %v876 = vmax.f32 %v868, %v872
        %v877 = vmax.f32 %v869, %v873
        %v878 = vmax.f32 %v870, %v874
        %v879 = vpack.c.bf16 %v875, %v875
        %v880 = vpack.c.bf16 %v876, %v876
        %v881 = vpack.c.bf16 %v877, %v877
        %v882 = vpack.c.bf16 %v878, %v878
        %883 = vst [vmem:[%s191] sm:$0xf] %v879
        %884 = vst [vmem:[%s191 + $0x4] sm:$0xf] %v880
        %885 = vst [vmem:[%s191 + $0x8] sm:$0xf] %v881
        %886 = vst [vmem:[%s191 + $0xc] sm:$0xf] %v882
      $region40: #{cnn_forward.7} parent=31 // pred_fallthru
        _
      %p887 = scmp.lt.s32.totalorder %s18, 0
      %s888 = scalar_select %p887, %s18, 0
      %s889 = smul.addr %s888, 4
      %s890 = scalar_lea.vmem %s3, %s889
      // Predicated region
      $region41: #{cnn_forward.7} parent=31 // pred_check
        %p891 = pneg %p114
      $region42: #{cnn_forward.7} parent=31 // pred_check_branch
        %893 = sbr.rel (%p891) target = $region44
      $region43: #{cnn_forward.7} parent=31 // pred_region
        _
      $region44: #{cnn_forward.7} parent=31 // pred_fallthru
        _
      // Predicated region
      $region45: #{cnn_forward.7} parent=31 // pred_check
        %p894 = pneg %p114
      $region46: #{cnn_forward.7} parent=31 // pred_check_branch
        %896 = sbr.rel (%p894) target = $region48
      $region47: #{cnn_forward.7} parent=31 // pred_region
        %p897 = scmp.lt.s32.totalorder %s18, 0
        %s898 = scalar_select %p897, %s18, 0
        %s899 = smul.addr %s898, 4
        %s900 = scalar_lea.vmem %s3, %s899
      $region48: #{cnn_forward.7} parent=31 // pred_fallthru
        _
    $region32: #{cnn_forward.7} parent=5 // pred_fallthru
      _
    %p901 = scmp.le.s32.totalorder 2, %s9
    // Predicated region
    $region49: #{cnn_forward.7} parent=5 // pred_check
      %p902 = pneg %p901
    $region50: #{cnn_forward.7} parent=5 // pred_check_branch
      %904 = sbr.rel (%p902) target = $region52
    $region51: #{cnn_forward.7} parent=5 // pred_region
      %s905 = ssub.s32 %s9, 2
    $region52: #{cnn_forward.7} parent=5 // pred_fallthru
      _
  $region6: #{cnn_forward.7} parent=0 // loop_footer
    %s13 = sadd.s32 1, %s9
  $region7: #{cnn_forward.7} parent=0 // loop_footer_branch
    %8 = sbr.rel target = $region3
  $region8: #{cnn_forward.7} parent=0 // loop_exit
    _

// kernel: cnn_forward.8
$region0: #{cnn_forward.8}
  #allocation0 [shape = 'u32[]', space=smem, size = 0x4, offset = 0x4, fixed_abs, tag = 'smem constant byte address 0x4 - core index']
  #allocation1 [shape = 'u32[72,128]{1,0:T(1,128)}', space=vmem, size = 0x9000, scoped, tag = 'internal scratch']
  %s0 = inlined_call_operand.vmem [shape: bf16[64,800], index: 0, kind: input, shape index: {}]
  %s1 = inlined_call_operand.vmem [shape: bf16[1,800,128], index: 1, kind: input, shape index: {}]
  %s2 = inlined_call_operand.vmem [shape: f32[64,1], index: 2, kind: input, shape index: {}]
  %s3 = inlined_call_operand.vmem [shape: bf16[64,128], index: 3, kind: output, shape index: {}]
  %s4 = sld [smem:[#allocation0]]
  $region22: #{cnn_forward.8} parent=0
    _
  %s6 = ssub.s32 1, %s4
  %s7 = scalar_select 0, %s6, %s4
  // Predicated region
  $region2: #{cnn_forward.8} parent=0 // pred_check
    _
  $region3: #{cnn_forward.8} parent=0 // pred_check_branch
    %9 = sbr.rel (0) target = $region5
  $region4: #{cnn_forward.8} parent=0 // pred_region
    _
  $region5: #{cnn_forward.8} parent=0 // pred_fallthru
    _
  // Predicated region
  $region6: #{cnn_forward.8} parent=0 // pred_check
    _
  $region7: #{cnn_forward.8} parent=0 // pred_check_branch
    %11 = sbr.rel (0) target = $region9
  $region8: #{cnn_forward.8} parent=0 // pred_region
    _
  $region9: #{cnn_forward.8} parent=0 // pred_fallthru
    _
  // Predicated region
  $region10: #{cnn_forward.8} parent=0 // pred_check
    _
  $region11: #{cnn_forward.8} parent=0 // pred_check_branch
    %13 = sbr.rel (0) target = $region13
  $region12: #{cnn_forward.8} parent=0 // pred_region
    _
  $region13: #{cnn_forward.8} parent=0 // pred_fallthru
    _
  %v15 = vld [vmem:[%s0] sm:$0xff]
  %v16 = vld [vmem:[%s0 + $0x8] sm:$0xff]
  %v17 = vld [vmem:[%s0 + $0x10] sm:$0xff]
  %v18 = vld [vmem:[%s0 + $0x18] sm:$0xf]
  %v19 = vld [vmem:[%s0 + $0x1c] sm:$0xff]
  %v20 = vld [vmem:[%s0 + $0x24] sm:$0xff]
  %v21 = vld [vmem:[%s0 + $0x2c] sm:$0xff]
  %v22 = vld [vmem:[%s0 + $0x34] sm:$0xf]
  %v23 = vld [vmem:[%s0 + $0x38] sm:$0xff]
  %v24 = vld [vmem:[%s0 + $0x40] sm:$0xff]
  %v25 = vld [vmem:[%s0 + $0x48] sm:$0xff]
  %v26 = vld [vmem:[%s0 + $0x50] sm:$0xf]
  %v27 = vld [vmem:[%s0 + $0x54] sm:$0xff]
  %v28 = vld [vmem:[%s0 + $0x5c] sm:$0xff]
  %v29 = vld [vmem:[%s0 + $0x64] sm:$0xff]
  %v30 = vld [vmem:[%s0 + $0x6c] sm:$0xf]
  %v31 = vld [vmem:[%s0 + $0x70] sm:$0xff]
  %v32 = vld [vmem:[%s0 + $0x78] sm:$0xff]
  %v33 = vld [vmem:[%s0 + $0x80] sm:$0xff]
  %v34 = vld [vmem:[%s0 + $0x88] sm:$0xf]
  %v35 = vld [vmem:[%s0 + $0x8c] sm:$0xff]
  %v36 = vld [vmem:[%s0 + $0x94] sm:$0xff]
  %v37 = vld [vmem:[%s0 + $0x9c] sm:$0xff]
  %v38 = vld [vmem:[%s0 + $0xa4] sm:$0xf]
  %v39 = vld [vmem:[%s0 + $0xa8] sm:$0xff]
  %v40 = vld [vmem:[%s0 + $0xb0] sm:$0xff]
  %v41 = vld [vmem:[%s0 + $0xb8] sm:$0xff]
  %v42 = vld [vmem:[%s0 + $0xc0] sm:$0xf]
  %v43 = vld [vmem:[%s0 + $0xc4] sm:$0xff]
  %v44 = vld [vmem:[%s0 + $0xcc] sm:$0xff]
  %v45 = vld [vmem:[%s0 + $0xd4] sm:$0xff]
  %v46 = vld [vmem:[%s0 + $0xdc] sm:$0xf]
  %v47 = vld [vmem:[%s1] sm:$0xf]
  %v48 = vld [vmem:[%s1 + $0x4] sm:$0xf]
  %v49 = vld [vmem:[%s1 + $0x8] sm:$0xf]
  %v50 = vld [vmem:[%s1 + $0xc] sm:$0xf]
  %v51 = vld [vmem:[%s1 + $0x10] sm:$0xf]
  %v52 = vld [vmem:[%s1 + $0x14] sm:$0xf]
  %v53 = vld [vmem:[%s1 + $0x18] sm:$0xf]
  %v54 = vld [vmem:[%s1 + $0x1c] sm:$0xf]
  %v55 = vld [vmem:[%s1 + $0x20] sm:$0xf]
  %v56 = vld [vmem:[%s1 + $0x24] sm:$0xf]
  %v57 = vld [vmem:[%s1 + $0x28] sm:$0xf]
  %v58 = vld [vmem:[%s1 + $0x2c] sm:$0xf]
  %v59 = vld [vmem:[%s1 + $0x30] sm:$0xf]
  %v60 = vld [vmem:[%s1 + $0x34] sm:$0xf]
  %v61 = vld [vmem:[%s1 + $0x38] sm:$0xf]
  %v62 = vld [vmem:[%s1 + $0x3c] sm:$0xf]
  %v63 = vld [vmem:[%s1 + $0x40] sm:$0xf]
  %v64 = vld [vmem:[%s1 + $0x44] sm:$0xf]
  %v65 = vld [vmem:[%s1 + $0x48] sm:$0xf]
  %v66 = vld [vmem:[%s1 + $0x4c] sm:$0xf]
  %v67 = vld [vmem:[%s1 + $0x50] sm:$0xf]
  %v68 = vld [vmem:[%s1 + $0x54] sm:$0xf]
  %v69 = vld [vmem:[%s1 + $0x58] sm:$0xf]
  %v70 = vld [vmem:[%s1 + $0x5c] sm:$0xf]
  %v71 = vld [vmem:[%s1 + $0x60] sm:$0xf]
  %v72 = vld [vmem:[%s1 + $0x64] sm:$0xf]
  %v73 = vld [vmem:[%s1 + $0x68] sm:$0xf]
  %v74 = vld [vmem:[%s1 + $0x6c] sm:$0xf]
  %v75 = vld [vmem:[%s1 + $0x70] sm:$0xf]
  %v76 = vld [vmem:[%s1 + $0x74] sm:$0xf]
  %v77 = vld [vmem:[%s1 + $0x78] sm:$0xf]
  %v78 = vld [vmem:[%s1 + $0x7c] sm:$0xf]
  %v79 = vld [vmem:[%s1 + $0x80] sm:$0xf]
  %v80 = vld [vmem:[%s1 + $0x84] sm:$0xf]
  %v81 = vld [vmem:[%s1 + $0x88] sm:$0xf]
  %v82 = vld [vmem:[%s1 + $0x8c] sm:$0xf]
  %v83 = vld [vmem:[%s1 + $0x90] sm:$0xf]
  %v84 = vld [vmem:[%s1 + $0x94] sm:$0xf]
  %v85 = vld [vmem:[%s1 + $0x98] sm:$0xf]
  %v86 = vld [vmem:[%s1 + $0x9c] sm:$0xf]
  %v87 = vld [vmem:[%s1 + $0xa0] sm:$0xf]
  %v88 = vld [vmem:[%s1 + $0xa4] sm:$0xf]
  %v89 = vld [vmem:[%s1 + $0xa8] sm:$0xf]
  %v90 = vld [vmem:[%s1 + $0xac] sm:$0xf]
  %v91 = vld [vmem:[%s1 + $0xb0] sm:$0xf]
  %v92 = vld [vmem:[%s1 + $0xb4] sm:$0xf]
  %v93 = vld [vmem:[%s1 + $0xb8] sm:$0xf]
  %v94 = vld [vmem:[%s1 + $0xbc] sm:$0xf]
  %v95 = vld [vmem:[%s1 + $0xc0] sm:$0xf]
  %v96 = vld [vmem:[%s1 + $0xc4] sm:$0xf]
  %v97 = vld [vmem:[%s1 + $0xc8] sm:$0xf]
  %v98 = vld [vmem:[%s1 + $0xcc] sm:$0xf]
  %v99 = vld [vmem:[%s1 + $0xd0] sm:$0xf]
  %v100 = vld [vmem:[%s1 + $0xd4] sm:$0xf]
  %v101 = vld [vmem:[%s1 + $0xd8] sm:$0xf]
  %v102 = vld [vmem:[%s1 + $0xdc] sm:$0xf]
  %v103 = vld [vmem:[%s1 + $0xe0] sm:$0xf]
  %v104 = vld [vmem:[%s1 + $0xe4] sm:$0xf]
  %v105 = vld [vmem:[%s1 + $0xe8] sm:$0xf]
  %v106 = vld [vmem:[%s1 + $0xec] sm:$0xf]
  %v107 = vld [vmem:[%s1 + $0xf0] sm:$0xf]
  %v108 = vld [vmem:[%s1 + $0xf4] sm:$0xf]
  %v109 = vld [vmem:[%s1 + $0xf8] sm:$0xf]
  %v110 = vld [vmem:[%s1 + $0xfc] sm:$0xf]
  %v111 = vld [vmem:[%s1 + $0x100] sm:$0xf]
  %v112 = vld [vmem:[%s1 + $0x104] sm:$0xf]
  %v113 = vld [vmem:[%s1 + $0x108] sm:$0xf]
  %v114 = vld [vmem:[%s1 + $0x10c] sm:$0xf]
  %v115 = vld [vmem:[%s1 + $0x110] sm:$0xf]
  %v116 = vld [vmem:[%s1 + $0x114] sm:$0xf]
  %v117 = vld [vmem:[%s1 + $0x118] sm:$0xf]
  %v118 = vld [vmem:[%s1 + $0x11c] sm:$0xf]
  %v119 = vld [vmem:[%s1 + $0x120] sm:$0xf]
  %v120 = vld [vmem:[%s1 + $0x124] sm:$0xf]
  %v121 = vld [vmem:[%s1 + $0x128] sm:$0xf]
  %v122 = vld [vmem:[%s1 + $0x12c] sm:$0xf]
  %v123 = vld [vmem:[%s1 + $0x130] sm:$0xf]
  %v124 = vld [vmem:[%s1 + $0x134] sm:$0xf]
  %v125 = vld [vmem:[%s1 + $0x138] sm:$0xf]
  %v126 = vld [vmem:[%s1 + $0x13c] sm:$0xf]
  %v127 = vld [vmem:[%s1 + $0x140] sm:$0xf]
  %v128 = vld [vmem:[%s1 + $0x144] sm:$0xf]
  %v129 = vld [vmem:[%s1 + $0x148] sm:$0xf]
  %v130 = vld [vmem:[%s1 + $0x14c] sm:$0xf]
  %v131 = vld [vmem:[%s1 + $0x150] sm:$0xf]
  %v132 = vld [vmem:[%s1 + $0x154] sm:$0xf]
  %v133 = vld [vmem:[%s1 + $0x158] sm:$0xf]
  %v134 = vld [vmem:[%s1 + $0x15c] sm:$0xf]
  %v135 = vld [vmem:[%s1 + $0x160] sm:$0xf]
  %v136 = vld [vmem:[%s1 + $0x164] sm:$0xf]
  %v137 = vld [vmem:[%s1 + $0x168] sm:$0xf]
  %v138 = vld [vmem:[%s1 + $0x16c] sm:$0xf]
  %v139 = vld [vmem:[%s1 + $0x170] sm:$0xf]
  %v140 = vld [vmem:[%s1 + $0x174] sm:$0xf]
  %v141 = vld [vmem:[%s1 + $0x178] sm:$0xf]
  %v142 = vld [vmem:[%s1 + $0x17c] sm:$0xf]
  %v143 = vld [vmem:[%s1 + $0x180] sm:$0xf]
  %v144 = vld [vmem:[%s1 + $0x184] sm:$0xf]
  %v145 = vld [vmem:[%s1 + $0x188] sm:$0xf]
  %v146 = vld [vmem:[%s1 + $0x18c] sm:$0xf]
  %v147 = vld [vmem:[%s2] sm:$0xff]
  %v148 = vld [vmem:[%s2 + $0x8] sm:$0xff]
  %v149 = vld [vmem:[%s2 + $0x10] sm:$0xff]
  %v150 = vld [vmem:[%s2 + $0x18] sm:$0xff]
  %v151 = vld [vmem:[%s2 + $0x20] sm:$0xff]
  %v152 = vld [vmem:[%s2 + $0x28] sm:$0xff]
  %v153 = vld [vmem:[%s2 + $0x30] sm:$0xff]
  %v154 = vld [vmem:[%s2 + $0x38] sm:$0xff]
  %156 = vset.pattern.permute.xlu0 0
  %157 = vperm.xlu0 %156, %v147
  %v158 = vpop.permute.xlu0 %157
  %161 = vset.pattern.permute.xlu0 0
  %162 = vperm.xlu0 %161, %v148
  %v163 = vpop.permute.xlu0 %162
  %166 = vset.pattern.permute.xlu0 0
  %167 = vperm.xlu0 %166, %v149
  %v168 = vpop.permute.xlu0 %167
  %171 = vset.pattern.permute.xlu0 0
  %172 = vperm.xlu0 %171, %v150
  %v173 = vpop.permute.xlu0 %172
  %176 = vset.pattern.permute.xlu0 0
  %177 = vperm.xlu0 %176, %v151
  %v178 = vpop.permute.xlu0 %177
  %181 = vset.pattern.permute.xlu0 0
  %182 = vperm.xlu0 %181, %v152
  %v183 = vpop.permute.xlu0 %182
  %186 = vset.pattern.permute.xlu0 0
  %187 = vperm.xlu0 %186, %v153
  %v188 = vpop.permute.xlu0 %187
  %191 = vset.pattern.permute.xlu0 0
  %192 = vperm.xlu0 %191, %v154
  %v193 = vpop.permute.xlu0 %192
  %v227 = vunpack.c.l.b16 %v15
  %v228 = vunpack.c.h.b16 %v15
  %v229 = vunpack.c.l.b16 %v16
  %v230 = vunpack.c.h.b16 %v16
  %v231 = vunpack.c.l.b16 %v17
  %v232 = vunpack.c.h.b16 %v17
  %v233 = vunpack.c.l.b16 %v18
  %v234 = vunpack.c.l.b16 %v19
  %v235 = vunpack.c.h.b16 %v19
  %v236 = vunpack.c.l.b16 %v20
  %v237 = vunpack.c.h.b16 %v20
  %v238 = vunpack.c.l.b16 %v21
  %v239 = vunpack.c.h.b16 %v21
  %v240 = vunpack.c.l.b16 %v22
  %v241 = vunpack.c.l.b16 %v23
  %v242 = vunpack.c.h.b16 %v23
  %v243 = vunpack.c.l.b16 %v24
  %v244 = vunpack.c.h.b16 %v24
  %v245 = vunpack.c.l.b16 %v25
  %v246 = vunpack.c.h.b16 %v25
  %v247 = vunpack.c.l.b16 %v26
  %v248 = vunpack.c.l.b16 %v27
  %v249 = vunpack.c.h.b16 %v27
  %v250 = vunpack.c.l.b16 %v28
  %v251 = vunpack.c.h.b16 %v28
  %v252 = vunpack.c.l.b16 %v29
  %v253 = vunpack.c.h.b16 %v29
  %v254 = vunpack.c.l.b16 %v30
  %v255 = vunpack.c.l.b16 %v31
  %v256 = vunpack.c.h.b16 %v31
  %v257 = vunpack.c.l.b16 %v32
  %v258 = vunpack.c.h.b16 %v32
  %v259 = vunpack.c.l.b16 %v33
  %v260 = vunpack.c.h.b16 %v33
  %v261 = vunpack.c.l.b16 %v34
  %v262 = vunpack.c.l.b16 %v35
  %v263 = vunpack.c.h.b16 %v35
  %v264 = vunpack.c.l.b16 %v36
  %v265 = vunpack.c.h.b16 %v36
  %v266 = vunpack.c.l.b16 %v37
  %v267 = vunpack.c.h.b16 %v37
  %v268 = vunpack.c.l.b16 %v38
  %v269 = vunpack.c.l.b16 %v39
  %v270 = vunpack.c.h.b16 %v39
  %v271 = vunpack.c.l.b16 %v40
  %v272 = vunpack.c.h.b16 %v40
  %v273 = vunpack.c.l.b16 %v41
  %v274 = vunpack.c.h.b16 %v41
  %v275 = vunpack.c.l.b16 %v42
  %v276 = vunpack.c.l.b16 %v43
  %v277 = vunpack.c.h.b16 %v43
  %v278 = vunpack.c.l.b16 %v44
  %v279 = vunpack.c.h.b16 %v44
  %v280 = vunpack.c.l.b16 %v45
  %v281 = vunpack.c.h.b16 %v45
  %v282 = vunpack.c.l.b16 %v46
  %v283 = vpack.c.b16 %v234, %v227
  %v284 = vpack.c.b16 %v235, %v228
  %v285 = vpack.c.b16 %v236, %v229
  %v286 = vpack.c.b16 %v237, %v230
  %v287 = vpack.c.b16 %v238, %v231
  %v288 = vpack.c.b16 %v239, %v232
  %v289 = vpack.c.b16 %v240, %v233
  %v290 = vpack.c.b16 %v248, %v241
  %v291 = vpack.c.b16 %v249, %v242
  %v292 = vpack.c.b16 %v250, %v243
  %v293 = vpack.c.b16 %v251, %v244
  %v294 = vpack.c.b16 %v252, %v245
  %v295 = vpack.c.b16 %v253, %v246
  %v296 = vpack.c.b16 %v254, %v247
  %v297 = vpack.c.b16 %v262, %v255
  %v298 = vpack.c.b16 %v263, %v256
  %v299 = vpack.c.b16 %v264, %v257
  %v300 = vpack.c.b16 %v265, %v258
  %v301 = vpack.c.b16 %v266, %v259
  %v302 = vpack.c.b16 %v267, %v260
  %v303 = vpack.c.b16 %v268, %v261
  %v304 = vpack.c.b16 %v276, %v269
  %v305 = vpack.c.b16 %v277, %v270
  %v306 = vpack.c.b16 %v278, %v271
  %v307 = vpack.c.b16 %v279, %v272
  %v308 = vpack.c.b16 %v280, %v273
  %v309 = vpack.c.b16 %v281, %v274
  %v310 = vpack.c.b16 %v282, %v275
  %v435 = vunpack.c.l.b16 %v47
  %v436 = vunpack.c.l.b16 %v48
  %v437 = vunpack.c.l.b16 %v49
  %v438 = vunpack.c.l.b16 %v50
  %v439 = vunpack.c.l.b16 %v51
  %v440 = vunpack.c.l.b16 %v52
  %v441 = vunpack.c.l.b16 %v53
  %v442 = vunpack.c.l.b16 %v54
  %v443 = vunpack.c.l.b16 %v55
  %v444 = vunpack.c.l.b16 %v56
  %v445 = vunpack.c.l.b16 %v57
  %v446 = vunpack.c.l.b16 %v58
  %v447 = vunpack.c.l.b16 %v59
  %v448 = vunpack.c.l.b16 %v60
  %v449 = vunpack.c.l.b16 %v61
  %v450 = vunpack.c.l.b16 %v62
  %v451 = vunpack.c.l.b16 %v63
  %v452 = vunpack.c.l.b16 %v64
  %v453 = vunpack.c.l.b16 %v65
  %v454 = vunpack.c.l.b16 %v66
  %v455 = vunpack.c.l.b16 %v67
  %v456 = vunpack.c.l.b16 %v68
  %v457 = vunpack.c.l.b16 %v69
  %v458 = vunpack.c.l.b16 %v70
  %v459 = vunpack.c.l.b16 %v71
  %v460 = vunpack.c.l.b16 %v72
  %v461 = vunpack.c.l.b16 %v73
  %v462 = vunpack.c.l.b16 %v74
  %v463 = vunpack.c.l.b16 %v75
  %v464 = vunpack.c.l.b16 %v76
  %v465 = vunpack.c.l.b16 %v77
  %v466 = vunpack.c.l.b16 %v78
  %v467 = vunpack.c.l.b16 %v79
  %v468 = vunpack.c.l.b16 %v80
  %v469 = vunpack.c.l.b16 %v81
  %v470 = vunpack.c.l.b16 %v82
  %v471 = vunpack.c.l.b16 %v83
  %v472 = vunpack.c.l.b16 %v84
  %v473 = vunpack.c.l.b16 %v85
  %v474 = vunpack.c.l.b16 %v86
  %v475 = vunpack.c.l.b16 %v87
  %v476 = vunpack.c.l.b16 %v88
  %v477 = vunpack.c.l.b16 %v89
  %v478 = vunpack.c.l.b16 %v90
  %v479 = vunpack.c.l.b16 %v91
  %v480 = vunpack.c.l.b16 %v92
  %v481 = vunpack.c.l.b16 %v93
  %v482 = vunpack.c.l.b16 %v94
  %v483 = vunpack.c.l.b16 %v95
  %v484 = vunpack.c.l.b16 %v96
  %v485 = vunpack.c.l.b16 %v97
  %v486 = vunpack.c.l.b16 %v98
  %v487 = vunpack.c.l.b16 %v99
  %v488 = vunpack.c.l.b16 %v100
  %v489 = vunpack.c.l.b16 %v101
  %v490 = vunpack.c.l.b16 %v102
  %v491 = vunpack.c.l.b16 %v103
  %v492 = vunpack.c.l.b16 %v104
  %v493 = vunpack.c.l.b16 %v105
  %v494 = vunpack.c.l.b16 %v106
  %v495 = vunpack.c.l.b16 %v107
  %v496 = vunpack.c.l.b16 %v108
  %v497 = vunpack.c.l.b16 %v109
  %v498 = vunpack.c.l.b16 %v110
  %v499 = vunpack.c.l.b16 %v111
  %v500 = vunpack.c.l.b16 %v112
  %v501 = vunpack.c.l.b16 %v113
  %v502 = vunpack.c.l.b16 %v114
  %v503 = vunpack.c.l.b16 %v115
  %v504 = vunpack.c.l.b16 %v116
  %v505 = vunpack.c.l.b16 %v117
  %v506 = vunpack.c.l.b16 %v118
  %v507 = vunpack.c.l.b16 %v119
  %v508 = vunpack.c.l.b16 %v120
  %v509 = vunpack.c.l.b16 %v121
  %v510 = vunpack.c.l.b16 %v122
  %v511 = vunpack.c.l.b16 %v123
  %v512 = vunpack.c.l.b16 %v124
  %v513 = vunpack.c.l.b16 %v125
  %v514 = vunpack.c.l.b16 %v126
  %v515 = vunpack.c.l.b16 %v127
  %v516 = vunpack.c.l.b16 %v128
  %v517 = vunpack.c.l.b16 %v129
  %v518 = vunpack.c.l.b16 %v130
  %v519 = vunpack.c.l.b16 %v131
  %v520 = vunpack.c.l.b16 %v132
  %v521 = vunpack.c.l.b16 %v133
  %v522 = vunpack.c.l.b16 %v134
  %v523 = vunpack.c.l.b16 %v135
  %v524 = vunpack.c.l.b16 %v136
  %v525 = vunpack.c.l.b16 %v137
  %v526 = vunpack.c.l.b16 %v138
  %v527 = vunpack.c.l.b16 %v139
  %v528 = vunpack.c.l.b16 %v140
  %v529 = vunpack.c.l.b16 %v141
  %v530 = vunpack.c.l.b16 %v142
  %v531 = vunpack.c.l.b16 %v143
  %v532 = vunpack.c.l.b16 %v144
  %v533 = vunpack.c.l.b16 %v145
  %v534 = vunpack.c.l.b16 %v146
  %v535 = vpack.c.b16 %v436, %v435
  %v536 = vpack.c.b16 %v438, %v437
  %v537 = vpack.c.b16 %v440, %v439
  %v538 = vpack.c.b16 %v442, %v441
  %v539 = vpack.c.b16 %v444, %v443
  %v540 = vpack.c.b16 %v446, %v445
  %v541 = vpack.c.b16 %v448, %v447
  %v542 = vpack.c.b16 %v450, %v449
  %v543 = vpack.c.b16 %v452, %v451
  %v544 = vpack.c.b16 %v454, %v453
  %v545 = vpack.c.b16 %v456, %v455
  %v546 = vpack.c.b16 %v458, %v457
  %v547 = vpack.c.b16 %v460, %v459
  %v548 = vpack.c.b16 %v462, %v461
  %v549 = vpack.c.b16 %v464, %v463
  %v550 = vpack.c.b16 %v466, %v465
  %v551 = vpack.c.b16 %v468, %v467
  %v552 = vpack.c.b16 %v470, %v469
  %v553 = vpack.c.b16 %v472, %v471
  %v554 = vpack.c.b16 %v474, %v473
  %v555 = vpack.c.b16 %v476, %v475
  %v556 = vpack.c.b16 %v478, %v477
  %v557 = vpack.c.b16 %v480, %v479
  %v558 = vpack.c.b16 %v482, %v481
  %v559 = vpack.c.b16 %v484, %v483
  %v560 = vpack.c.b16 %v486, %v485
  %v561 = vpack.c.b16 %v488, %v487
  %v562 = vpack.c.b16 %v490, %v489
  %v563 = vpack.c.b16 %v492, %v491
  %v564 = vpack.c.b16 %v494, %v493
  %v565 = vpack.c.b16 %v496, %v495
  %v566 = vpack.c.b16 %v498, %v497
  %v567 = vpack.c.b16 %v500, %v499
  %v568 = vpack.c.b16 %v502, %v501
  %v569 = vpack.c.b16 %v504, %v503
  %v570 = vpack.c.b16 %v506, %v505
  %v571 = vpack.c.b16 %v508, %v507
  %v572 = vpack.c.b16 %v510, %v509
  %v573 = vpack.c.b16 %v512, %v511
  %v574 = vpack.c.b16 %v514, %v513
  %v575 = vpack.c.b16 %v516, %v515
  %v576 = vpack.c.b16 %v518, %v517
  %v577 = vpack.c.b16 %v520, %v519
  %v578 = vpack.c.b16 %v522, %v521
  %v579 = vpack.c.b16 %v524, %v523
  %v580 = vpack.c.b16 %v526, %v525
  %v581 = vpack.c.b16 %v528, %v527
  %v582 = vpack.c.b16 %v530, %v529
  %v583 = vpack.c.b16 %v532, %v531
  %v584 = vpack.c.b16 %v534, %v533
  %vm635 = vcmask 261120
  %v637 = vsel %vm635, %v289, 0
  %v640 = vsel %vm635, %v296, 0
  %v643 = vsel %vm635, %v303, 0
  %v646 = vsel %vm635, %v310, 0
  %648 = vmatpush.bf16.msra.mxu0 %v542
  %649 = vmatpush.bf16.msra.mxu0 %v541
  %650 = vmatpush.bf16.msra.mxu0 %v540
  %651 = vmatpush.bf16.msra.mxu0 %v539
  %652 = vmatpush.bf16.msra.mxu0 %v538
  %653 = vmatpush.bf16.msra.mxu0 %v537
  %654 = vmatpush.bf16.msra.mxu0 %v536
  %655 = vmatpush.bf16.msra.mxu0 %v535
  %656 = vmatmul.bf16.gmra.mxu0 %v283
  %v657 = vpop.f32.mrf.mxu0
  %v658 = vadd.f32 %v158, %v657
  %v659 = vpop.f32.mrf.mxu0
  %v660 = vadd.f32 %v163, %v659
  %661 = vmatmul.bf16.gmra.mxu0 %v290
  %v662 = vpop.f32.mrf.mxu0
  %v663 = vadd.f32 %v168, %v662
  %v664 = vpop.f32.mrf.mxu0
  %v665 = vadd.f32 %v173, %v664
  %666 = vmatmul.bf16.gmra.mxu0 %v297
  %v667 = vpop.f32.mrf.mxu0
  %v668 = vadd.f32 %v178, %v667
  %v669 = vpop.f32.mrf.mxu0
  %v670 = vadd.f32 %v183, %v669
  %671 = vmatmul.bf16.gmra.mxu0 %v304
  %v672 = vpop.f32.mrf.mxu0
  %v673 = vadd.f32 %v188, %v672
  %v674 = vpop.f32.mrf.mxu0
  %v675 = vadd.f32 %v193, %v674
  %676 = vdwg.mxu0
  %677 = vmatpush.bf16.msra.mxu0 %v550
  %678 = vmatpush.bf16.msra.mxu0 %v549
  %679 = vmatpush.bf16.msra.mxu0 %v548
  %680 = vmatpush.bf16.msra.mxu0 %v547
  %681 = vmatpush.bf16.msra.mxu0 %v546
  %682 = vmatpush.bf16.msra.mxu0 %v545
  %683 = vmatpush.bf16.msra.mxu0 %v544
  %684 = vmatpush.bf16.msra.mxu0 %v543
  %685 = vmatmul.bf16.gmra.mxu0 %v284
  %v686 = vpop.f32.mrf.mxu0
  %v687 = vadd.f32 %v658, %v686
  %v688 = vpop.f32.mrf.mxu0
  %v689 = vadd.f32 %v660, %v688
  %690 = vmatmul.bf16.gmra.mxu0 %v291
  %v691 = vpop.f32.mrf.mxu0
  %v692 = vadd.f32 %v663, %v691
  %v693 = vpop.f32.mrf.mxu0
  %v694 = vadd.f32 %v665, %v693
  %695 = vmatmul.bf16.gmra.mxu0 %v298
  %v696 = vpop.f32.mrf.mxu0
  %v697 = vadd.f32 %v668, %v696
  %v698 = vpop.f32.mrf.mxu0
  %v699 = vadd.f32 %v670, %v698
  %700 = vmatmul.bf16.gmra.mxu0 %v305
  %v701 = vpop.f32.mrf.mxu0
  %v702 = vadd.f32 %v673, %v701
  %v703 = vpop.f32.mrf.mxu0
  %v704 = vadd.f32 %v675, %v703
  %705 = vdwg.mxu0
  %706 = vmatpush.bf16.msra.mxu0 %v558
  %707 = vmatpush.bf16.msra.mxu0 %v557
  %708 = vmatpush.bf16.msra.mxu0 %v556
  %709 = vmatpush.bf16.msra.mxu0 %v555
  %710 = vmatpush.bf16.msra.mxu0 %v554
  %711 = vmatpush.bf16.msra.mxu0 %v553
  %712 = vmatpush.bf16.msra.mxu0 %v552
  %713 = vmatpush.bf16.msra.mxu0 %v551
  %714 = vmatmul.bf16.gmra.mxu0 %v285
  %v715 = vpop.f32.mrf.mxu0
  %v716 = vadd.f32 %v687, %v715
  %v717 = vpop.f32.mrf.mxu0
  %v718 = vadd.f32 %v689, %v717
  %719 = vmatmul.bf16.gmra.mxu0 %v292
  %v720 = vpop.f32.mrf.mxu0
  %v721 = vadd.f32 %v692, %v720
  %v722 = vpop.f32.mrf.mxu0
  %v723 = vadd.f32 %v694, %v722
  %724 = vmatmul.bf16.gmra.mxu0 %v299
  %v725 = vpop.f32.mrf.mxu0
  %v726 = vadd.f32 %v697, %v725
  %v727 = vpop.f32.mrf.mxu0
  %v728 = vadd.f32 %v699, %v727
  %729 = vmatmul.bf16.gmra.mxu0 %v306
  %v730 = vpop.f32.mrf.mxu0
  %v731 = vadd.f32 %v702, %v730
  %v732 = vpop.f32.mrf.mxu0
  %v733 = vadd.f32 %v704, %v732
  %734 = vdwg.mxu0
  %735 = vmatpush.bf16.msra.mxu0 %v566
  %736 = vmatpush.bf16.msra.mxu0 %v565
  %737 = vmatpush.bf16.msra.mxu0 %v564
  %738 = vmatpush.bf16.msra.mxu0 %v563
  %739 = vmatpush.bf16.msra.mxu0 %v562
  %740 = vmatpush.bf16.msra.mxu0 %v561
  %741 = vmatpush.bf16.msra.mxu0 %v560
  %742 = vmatpush.bf16.msra.mxu0 %v559
  %743 = vmatmul.bf16.gmra.mxu0 %v286
  %v744 = vpop.f32.mrf.mxu0
  %v745 = vadd.f32 %v716, %v744
  %v746 = vpop.f32.mrf.mxu0
  %v747 = vadd.f32 %v718, %v746
  %748 = vmatmul.bf16.gmra.mxu0 %v293
  %v749 = vpop.f32.mrf.mxu0
  %v750 = vadd.f32 %v721, %v749
  %v751 = vpop.f32.mrf.mxu0
  %v752 = vadd.f32 %v723, %v751
  %753 = vmatmul.bf16.gmra.mxu0 %v300
  %v754 = vpop.f32.mrf.mxu0
  %v755 = vadd.f32 %v726, %v754
  %v756 = vpop.f32.mrf.mxu0
  %v757 = vadd.f32 %v728, %v756
  %758 = vmatmul.bf16.gmra.mxu0 %v307
  %v759 = vpop.f32.mrf.mxu0
  %v760 = vadd.f32 %v731, %v759
  %v761 = vpop.f32.mrf.mxu0
  %v762 = vadd.f32 %v733, %v761
  %763 = vdwg.mxu0
  %764 = vmatpush.bf16.msra.mxu0 %v574
  %765 = vmatpush.bf16.msra.mxu0 %v573
  %766 = vmatpush.bf16.msra.mxu0 %v572
  %767 = vmatpush.bf16.msra.mxu0 %v571
  %768 = vmatpush.bf16.msra.mxu0 %v570
  %769 = vmatpush.bf16.msra.mxu0 %v569
  %770 = vmatpush.bf16.msra.mxu0 %v568
  %771 = vmatpush.bf16.msra.mxu0 %v567
  %772 = vmatmul.bf16.gmra.mxu0 %v287
  %v773 = vpop.f32.mrf.mxu0
  %v774 = vadd.f32 %v745, %v773
  %v775 = vpop.f32.mrf.mxu0
  %v776 = vadd.f32 %v747, %v775
  %777 = vmatmul.bf16.gmra.mxu0 %v294
  %v778 = vpop.f32.mrf.mxu0
  %v779 = vadd.f32 %v750, %v778
  %v780 = vpop.f32.mrf.mxu0
  %v781 = vadd.f32 %v752, %v780
  %782 = vmatmul.bf16.gmra.mxu0 %v301
  %v783 = vpop.f32.mrf.mxu0
  %v784 = vadd.f32 %v755, %v783
  %v785 = vpop.f32.mrf.mxu0
  %v786 = vadd.f32 %v757, %v785
  %787 = vmatmul.bf16.gmra.mxu0 %v308
  %v788 = vpop.f32.mrf.mxu0
  %v789 = vadd.f32 %v760, %v788
  %v790 = vpop.f32.mrf.mxu0
  %v791 = vadd.f32 %v762, %v790
  %792 = vdwg.mxu0
  %793 = vmatpush.bf16.msra.mxu0 %v582
  %794 = vmatpush.bf16.msra.mxu0 %v581
  %795 = vmatpush.bf16.msra.mxu0 %v580
  %796 = vmatpush.bf16.msra.mxu0 %v579
  %797 = vmatpush.bf16.msra.mxu0 %v578
  %798 = vmatpush.bf16.msra.mxu0 %v577
  %799 = vmatpush.bf16.msra.mxu0 %v576
  %800 = vmatpush.bf16.msra.mxu0 %v575
  %801 = vmatmul.bf16.gmra.mxu0 %v288
  %v802 = vpop.f32.mrf.mxu0
  %v803 = vadd.f32 %v774, %v802
  %v804 = vpop.f32.mrf.mxu0
  %v805 = vadd.f32 %v776, %v804
  %806 = vmatmul.bf16.gmra.mxu0 %v295
  %v807 = vpop.f32.mrf.mxu0
  %v808 = vadd.f32 %v779, %v807
  %v809 = vpop.f32.mrf.mxu0
  %v810 = vadd.f32 %v781, %v809
  %811 = vmatmul.bf16.gmra.mxu0 %v302
  %v812 = vpop.f32.mrf.mxu0
  %v813 = vadd.f32 %v784, %v812
  %v814 = vpop.f32.mrf.mxu0
  %v815 = vadd.f32 %v786, %v814
  %816 = vmatmul.bf16.gmra.mxu0 %v309
  %v817 = vpop.f32.mrf.mxu0
  %v818 = vadd.f32 %v789, %v817
  %v819 = vpop.f32.mrf.mxu0
  %v820 = vadd.f32 %v791, %v819
  %821 = vdwg.mxu0
  %822 = vmatpush.bf16.msra.mxu0 0
  %823 = vmatpush.bf16.msra.mxu0 0
  %824 = vmatpush.bf16.msra.mxu0 0
  %825 = vmatpush.bf16.msra.mxu0 0
  %826 = vmatpush.bf16.msra.mxu0 0
  %827 = vmatpush.bf16.msra.mxu0 0
  %828 = vmatpush.bf16.msra.mxu0 %v584
  %829 = vmatpush.bf16.msra.mxu0 %v583
  %830 = vmatmul.bf16.gmra.mxu0 %v637
  %v831 = vpop.f32.mrf.mxu0
  %v832 = vadd.f32 %v803, %v831
  %v833 = vpop.f32.mrf.mxu0
  %v834 = vadd.f32 %v805, %v833
  %835 = vmatmul.bf16.gmra.mxu0 %v640
  %v836 = vpop.f32.mrf.mxu0
  %v837 = vadd.f32 %v808, %v836
  %v838 = vpop.f32.mrf.mxu0
  %v839 = vadd.f32 %v810, %v838
  %840 = vmatmul.bf16.gmra.mxu0 %v643
  %v841 = vpop.f32.mrf.mxu0
  %v842 = vadd.f32 %v813, %v841
  %v843 = vpop.f32.mrf.mxu0
  %v844 = vadd.f32 %v815, %v843
  %845 = vmatmul.bf16.gmra.mxu0 %v646
  %v846 = vpop.f32.mrf.mxu0
  %v847 = vadd.f32 %v818, %v846
  %v848 = vpop.f32.mrf.mxu0
  %v849 = vadd.f32 %v820, %v848
  %850 = vdwg.mxu0
  %v851 = vmax.f32 %v832, 0.0
  %v852 = vmax.f32 %v834, 0.0
  %v853 = vmax.f32 %v837, 0.0
  %v854 = vmax.f32 %v839, 0.0
  %v855 = vmax.f32 %v842, 0.0
  %v856 = vmax.f32 %v844, 0.0
  %v857 = vmax.f32 %v847, 0.0
  %v858 = vmax.f32 %v849, 0.0
  %v859 = vpack.c.bf16 %v851, %v851
  %v860 = vpack.c.bf16 %v852, %v852
  %v861 = vpack.c.bf16 %v853, %v853
  %v862 = vpack.c.bf16 %v854, %v854
  %v863 = vpack.c.bf16 %v855, %v855
  %v864 = vpack.c.bf16 %v856, %v856
  %v865 = vpack.c.bf16 %v857, %v857
  %v866 = vpack.c.bf16 %v858, %v858
  %867 = vst [vmem:[%s3] sm:$0xf] %v859
  %868 = vst [vmem:[%s3 + $0x4] sm:$0xf] %v860
  %869 = vst [vmem:[%s3 + $0x8] sm:$0xf] %v861
  %870 = vst [vmem:[%s3 + $0xc] sm:$0xf] %v862
  %871 = vst [vmem:[%s3 + $0x10] sm:$0xf] %v863
  %872 = vst [vmem:[%s3 + $0x14] sm:$0xf] %v864
  %873 = vst [vmem:[%s3 + $0x18] sm:$0xf] %v865
  %874 = vst [vmem:[%s3 + $0x1c] sm:$0xf] %v866
  // Predicated region
  $region14: #{cnn_forward.8} parent=0 // pred_check
    _
  $region15: #{cnn_forward.8} parent=0 // pred_check_branch
    %876 = sbr.rel (0) target = $region17
  $region16: #{cnn_forward.8} parent=0 // pred_region
    _
  $region17: #{cnn_forward.8} parent=0 // pred_fallthru
    _
  // Predicated region
  $region18: #{cnn_forward.8} parent=0 // pred_check
    _
  $region19: #{cnn_forward.8} parent=0 // pred_check_branch
    %878 = sbr.rel (0) target = $region21
  $region20: #{cnn_forward.8} parent=0 // pred_region
    _
  $region21: #{cnn_forward.8} parent=0 // pred_fallthru
    _

// kernel: cnn_forward.9
$region0: #{cnn_forward.9}
  #allocation0 [shape = 'u32[]', space=smem, size = 0x4, offset = 0x4, fixed_abs, tag = 'smem constant byte address 0x4 - core index']
  #allocation1 [shape = 'u32[72,128]{1,0:T(1,128)}', space=vmem, size = 0x9000, scoped, tag = 'internal scratch']
  %s0 = inlined_call_operand.vmem [shape: bf16[16,3136], index: 0, kind: input, shape index: {}]
  %s1 = inlined_call_operand.vmem [shape: bf16[1,3136,128], index: 1, kind: input, shape index: {}]
  %s2 = inlined_call_operand.vmem [shape: f32[16,1], index: 2, kind: input, shape index: {}]
  %s3 = inlined_call_operand.vmem [shape: f32[16,128], index: 3, kind: output, shape index: {}]
  %s4 = sld [smem:[#allocation0]]
  $region22: #{cnn_forward.9} parent=0
    _
  %s6 = ssub.s32 1, %s4
  %s7 = scalar_select 0, %s6, %s4
  // Predicated region
  $region2: #{cnn_forward.9} parent=0 // pred_check
    _
  $region3: #{cnn_forward.9} parent=0 // pred_check_branch
    %9 = sbr.rel (0) target = $region5
  $region4: #{cnn_forward.9} parent=0 // pred_region
    _
  $region5: #{cnn_forward.9} parent=0 // pred_fallthru
    _
  // Predicated region
  $region6: #{cnn_forward.9} parent=0 // pred_check
    _
  $region7: #{cnn_forward.9} parent=0 // pred_check_branch
    %11 = sbr.rel (0) target = $region9
  $region8: #{cnn_forward.9} parent=0 // pred_region
    _
  $region9: #{cnn_forward.9} parent=0 // pred_fallthru
    _
  // Predicated region
  $region10: #{cnn_forward.9} parent=0 // pred_check
    _
  $region11: #{cnn_forward.9} parent=0 // pred_check_branch
    %13 = sbr.rel (0) target = $region13
  $region12: #{cnn_forward.9} parent=0 // pred_region
    _
  $region13: #{cnn_forward.9} parent=0 // pred_fallthru
    _
  %v15 = vld [vmem:[%s0] sm:$0xff]
  %v16 = vld [vmem:[%s0 + $0x8] sm:$0xff]
  %v17 = vld [vmem:[%s0 + $0x10] sm:$0xff]
  %v18 = vld [vmem:[%s0 + $0x18] sm:$0xff]
  %v19 = vld [vmem:[%s0 + $0x20] sm:$0xff]
  %v20 = vld [vmem:[%s0 + $0x28] sm:$0xff]
  %v21 = vld [vmem:[%s0 + $0x30] sm:$0xff]
  %v22 = vld [vmem:[%s0 + $0x38] sm:$0xff]
  %v23 = vld [vmem:[%s0 + $0x40] sm:$0xff]
  %v24 = vld [vmem:[%s0 + $0x48] sm:$0xff]
  %v25 = vld [vmem:[%s0 + $0x50] sm:$0xff]
  %v26 = vld [vmem:[%s0 + $0x58] sm:$0xff]
  %v27 = vld [vmem:[%s0 + $0x60] sm:$0xf]
  %v28 = vld [vmem:[%s0 + $0x64] sm:$0xff]
  %v29 = vld [vmem:[%s0 + $0x6c] sm:$0xff]
  %v30 = vld [vmem:[%s0 + $0x74] sm:$0xff]
  %v31 = vld [vmem:[%s0 + $0x7c] sm:$0xff]
  %v32 = vld [vmem:[%s0 + $0x84] sm:$0xff]
  %v33 = vld [vmem:[%s0 + $0x8c] sm:$0xff]
  %v34 = vld [vmem:[%s0 + $0x94] sm:$0xff]
  %v35 = vld [vmem:[%s0 + $0x9c] sm:$0xff]
  %v36 = vld [vmem:[%s0 + $0xa4] sm:$0xff]
  %v37 = vld [vmem:[%s0 + $0xac] sm:$0xff]
  %v38 = vld [vmem:[%s0 + $0xb4] sm:$0xff]
  %v39 = vld [vmem:[%s0 + $0xbc] sm:$0xff]
  %v40 = vld [vmem:[%s0 + $0xc4] sm:$0xf]
  %v41 = vld [vmem:[%s1] sm:$0xf]
  %v42 = vld [vmem:[%s1 + $0x4] sm:$0xf]
  %v43 = vld [vmem:[%s1 + $0x8] sm:$0xf]
  %v44 = vld [vmem:[%s1 + $0xc] sm:$0xf]
  %v45 = vld [vmem:[%s1 + $0x10] sm:$0xf]
  %v46 = vld [vmem:[%s1 + $0x14] sm:$0xf]
  %v47 = vld [vmem:[%s1 + $0x18] sm:$0xf]
  %v48 = vld [vmem:[%s1 + $0x1c] sm:$0xf]
  %v49 = vld [vmem:[%s1 + $0x20] sm:$0xf]
  %v50 = vld [vmem:[%s1 + $0x24] sm:$0xf]
  %v51 = vld [vmem:[%s1 + $0x28] sm:$0xf]
  %v52 = vld [vmem:[%s1 + $0x2c] sm:$0xf]
  %v53 = vld [vmem:[%s1 + $0x30] sm:$0xf]
  %v54 = vld [vmem:[%s1 + $0x34] sm:$0xf]
  %v55 = vld [vmem:[%s1 + $0x38] sm:$0xf]
  %v56 = vld [vmem:[%s1 + $0x3c] sm:$0xf]
  %v57 = vld [vmem:[%s1 + $0x40] sm:$0xf]
  %v58 = vld [vmem:[%s1 + $0x44] sm:$0xf]
  %v59 = vld [vmem:[%s1 + $0x48] sm:$0xf]
  %v60 = vld [vmem:[%s1 + $0x4c] sm:$0xf]
  %v61 = vld [vmem:[%s1 + $0x50] sm:$0xf]
  %v62 = vld [vmem:[%s1 + $0x54] sm:$0xf]
  %v63 = vld [vmem:[%s1 + $0x58] sm:$0xf]
  %v64 = vld [vmem:[%s1 + $0x5c] sm:$0xf]
  %v65 = vld [vmem:[%s1 + $0x60] sm:$0xf]
  %v66 = vld [vmem:[%s1 + $0x64] sm:$0xf]
  %v67 = vld [vmem:[%s1 + $0x68] sm:$0xf]
  %v68 = vld [vmem:[%s1 + $0x6c] sm:$0xf]
  %v69 = vld [vmem:[%s1 + $0x70] sm:$0xf]
  %v70 = vld [vmem:[%s1 + $0x74] sm:$0xf]
  %v71 = vld [vmem:[%s1 + $0x78] sm:$0xf]
  %v72 = vld [vmem:[%s1 + $0x7c] sm:$0xf]
  %v73 = vld [vmem:[%s1 + $0x80] sm:$0xf]
  %v74 = vld [vmem:[%s1 + $0x84] sm:$0xf]
  %v75 = vld [vmem:[%s1 + $0x88] sm:$0xf]
  %v76 = vld [vmem:[%s1 + $0x8c] sm:$0xf]
  %v77 = vld [vmem:[%s1 + $0x90] sm:$0xf]
  %v78 = vld [vmem:[%s1 + $0x94] sm:$0xf]
  %v79 = vld [vmem:[%s1 + $0x98] sm:$0xf]
  %v80 = vld [vmem:[%s1 + $0x9c] sm:$0xf]
  %v81 = vld [vmem:[%s1 + $0xa0] sm:$0xf]
  %v82 = vld [vmem:[%s1 + $0xa4] sm:$0xf]
  %v83 = vld [vmem:[%s1 + $0xa8] sm:$0xf]
  %v84 = vld [vmem:[%s1 + $0xac] sm:$0xf]
  %v85 = vld [vmem:[%s1 + $0xb0] sm:$0xf]
  %v86 = vld [vmem:[%s1 + $0xb4] sm:$0xf]
  %v87 = vld [vmem:[%s1 + $0xb8] sm:$0xf]
  %v88 = vld [vmem:[%s1 + $0xbc] sm:$0xf]
  %v89 = vld [vmem:[%s1 + $0xc0] sm:$0xf]
  %v90 = vld [vmem:[%s1 + $0xc4] sm:$0xf]
  %v91 = vld [vmem:[%s1 + $0xc8] sm:$0xf]
  %v92 = vld [vmem:[%s1 + $0xcc] sm:$0xf]
  %v93 = vld [vmem:[%s1 + $0xd0] sm:$0xf]
  %v94 = vld [vmem:[%s1 + $0xd4] sm:$0xf]
  %v95 = vld [vmem:[%s1 + $0xd8] sm:$0xf]
  %v96 = vld [vmem:[%s1 + $0xdc] sm:$0xf]
  %v97 = vld [vmem:[%s1 + $0xe0] sm:$0xf]
  %v98 = vld [vmem:[%s1 + $0xe4] sm:$0xf]
  %v99 = vld [vmem:[%s1 + $0xe8] sm:$0xf]
  %v100 = vld [vmem:[%s1 + $0xec] sm:$0xf]
  %v101 = vld [vmem:[%s1 + $0xf0] sm:$0xf]
  %v102 = vld [vmem:[%s1 + $0xf4] sm:$0xf]
  %v103 = vld [vmem:[%s1 + $0xf8] sm:$0xf]
  %v104 = vld [vmem:[%s1 + $0xfc] sm:$0xf]
  %v105 = vld [vmem:[%s1 + $0x100] sm:$0xf]
  %v106 = vld [vmem:[%s1 + $0x104] sm:$0xf]
  %v107 = vld [vmem:[%s1 + $0x108] sm:$0xf]
  %v108 = vld [vmem:[%s1 + $0x10c] sm:$0xf]
  %v109 = vld [vmem:[%s1 + $0x110] sm:$0xf]
  %v110 = vld [vmem:[%s1 + $0x114] sm:$0xf]
  %v111 = vld [vmem:[%s1 + $0x118] sm:$0xf]
  %v112 = vld [vmem:[%s1 + $0x11c] sm:$0xf]
  %v113 = vld [vmem:[%s1 + $0x120] sm:$0xf]
  %v114 = vld [vmem:[%s1 + $0x124] sm:$0xf]
  %v115 = vld [vmem:[%s1 + $0x128] sm:$0xf]
  %v116 = vld [vmem:[%s1 + $0x12c] sm:$0xf]
  %v117 = vld [vmem:[%s1 + $0x130] sm:$0xf]
  %v118 = vld [vmem:[%s1 + $0x134] sm:$0xf]
  %v119 = vld [vmem:[%s1 + $0x138] sm:$0xf]
  %v120 = vld [vmem:[%s1 + $0x13c] sm:$0xf]
  %v121 = vld [vmem:[%s1 + $0x140] sm:$0xf]
  %v122 = vld [vmem:[%s1 + $0x144] sm:$0xf]
  %v123 = vld [vmem:[%s1 + $0x148] sm:$0xf]
  %v124 = vld [vmem:[%s1 + $0x14c] sm:$0xf]
  %v125 = vld [vmem:[%s1 + $0x150] sm:$0xf]
  %v126 = vld [vmem:[%s1 + $0x154] sm:$0xf]
  %v127 = vld [vmem:[%s1 + $0x158] sm:$0xf]
  %v128 = vld [vmem:[%s1 + $0x15c] sm:$0xf]
  %v129 = vld [vmem:[%s1 + $0x160] sm:$0xf]
  %v130 = vld [vmem:[%s1 + $0x164] sm:$0xf]
  %v131 = vld [vmem:[%s1 + $0x168] sm:$0xf]
  %v132 = vld [vmem:[%s1 + $0x16c] sm:$0xf]
  %v133 = vld [vmem:[%s1 + $0x170] sm:$0xf]
  %v134 = vld [vmem:[%s1 + $0x174] sm:$0xf]
  %v135 = vld [vmem:[%s1 + $0x178] sm:$0xf]
  %v136 = vld [vmem:[%s1 + $0x17c] sm:$0xf]
  %v137 = vld [vmem:[%s1 + $0x180] sm:$0xf]
  %v138 = vld [vmem:[%s1 + $0x184] sm:$0xf]
  %v139 = vld [vmem:[%s1 + $0x188] sm:$0xf]
  %v140 = vld [vmem:[%s1 + $0x18c] sm:$0xf]
  %v141 = vld [vmem:[%s1 + $0x190] sm:$0xf]
  %v142 = vld [vmem:[%s1 + $0x194] sm:$0xf]
  %v143 = vld [vmem:[%s1 + $0x198] sm:$0xf]
  %v144 = vld [vmem:[%s1 + $0x19c] sm:$0xf]
  %v145 = vld [vmem:[%s1 + $0x1a0] sm:$0xf]
  %v146 = vld [vmem:[%s1 + $0x1a4] sm:$0xf]
  %v147 = vld [vmem:[%s1 + $0x1a8] sm:$0xf]
  %v148 = vld [vmem:[%s1 + $0x1ac] sm:$0xf]
  %v149 = vld [vmem:[%s1 + $0x1b0] sm:$0xf]
  %v150 = vld [vmem:[%s1 + $0x1b4] sm:$0xf]
  %v151 = vld [vmem:[%s1 + $0x1b8] sm:$0xf]
  %v152 = vld [vmem:[%s1 + $0x1bc] sm:$0xf]
  %v153 = vld [vmem:[%s1 + $0x1c0] sm:$0xf]
  %v154 = vld [vmem:[%s1 + $0x1c4] sm:$0xf]
  %v155 = vld [vmem:[%s1 + $0x1c8] sm:$0xf]
  %v156 = vld [vmem:[%s1 + $0x1cc] sm:$0xf]
  %v157 = vld [vmem:[%s1 + $0x1d0] sm:$0xf]
  %v158 = vld [vmem:[%s1 + $0x1d4] sm:$0xf]
  %v159 = vld [vmem:[%s1 + $0x1d8] sm:$0xf]
  %v160 = vld [vmem:[%s1 + $0x1dc] sm:$0xf]
  %v161 = vld [vmem:[%s1 + $0x1e0] sm:$0xf]
  %v162 = vld [vmem:[%s1 + $0x1e4] sm:$0xf]
  %v163 = vld [vmem:[%s1 + $0x1e8] sm:$0xf]
  %v164 = vld [vmem:[%s1 + $0x1ec] sm:$0xf]
  %v165 = vld [vmem:[%s1 + $0x1f0] sm:$0xf]
  %v166 = vld [vmem:[%s1 + $0x1f4] sm:$0xf]
  %v167 = vld [vmem:[%s1 + $0x1f8] sm:$0xf]
  %v168 = vld [vmem:[%s1 + $0x1fc] sm:$0xf]
  %v169 = vld [vmem:[%s1 + $0x200] sm:$0xf]
  %v170 = vld [vmem:[%s1 + $0x204] sm:$0xf]
  %v171 = vld [vmem:[%s1 + $0x208] sm:$0xf]
  %v172 = vld [vmem:[%s1 + $0x20c] sm:$0xf]
  %v173 = vld [vmem:[%s1 + $0x210] sm:$0xf]
  %v174 = vld [vmem:[%s1 + $0x214] sm:$0xf]
  %v175 = vld [vmem:[%s1 + $0x218] sm:$0xf]
  %v176 = vld [vmem:[%s1 + $0x21c] sm:$0xf]
  %v177 = vld [vmem:[%s1 + $0x220] sm:$0xf]
  %v178 = vld [vmem:[%s1 + $0x224] sm:$0xf]
  %v179 = vld [vmem:[%s1 + $0x228] sm:$0xf]
  %v180 = vld [vmem:[%s1 + $0x22c] sm:$0xf]
  %v181 = vld [vmem:[%s1 + $0x230] sm:$0xf]
  %v182 = vld [vmem:[%s1 + $0x234] sm:$0xf]
  %v183 = vld [vmem:[%s1 + $0x238] sm:$0xf]
  %v184 = vld [vmem:[%s1 + $0x23c] sm:$0xf]
  %v185 = vld [vmem:[%s1 + $0x240] sm:$0xf]
  %v186 = vld [vmem:[%s1 + $0x244] sm:$0xf]
  %v187 = vld [vmem:[%s1 + $0x248] sm:$0xf]
  %v188 = vld [vmem:[%s1 + $0x24c] sm:$0xf]
  %v189 = vld [vmem:[%s1 + $0x250] sm:$0xf]
  %v190 = vld [vmem:[%s1 + $0x254] sm:$0xf]
  %v191 = vld [vmem:[%s1 + $0x258] sm:$0xf]
  %v192 = vld [vmem:[%s1 + $0x25c] sm:$0xf]
  %v193 = vld [vmem:[%s1 + $0x260] sm:$0xf]
  %v194 = vld [vmem:[%s1 + $0x264] sm:$0xf]
  %v195 = vld [vmem:[%s1 + $0x268] sm:$0xf]
  %v196 = vld [vmem:[%s1 + $0x26c] sm:$0xf]
  %v197 = vld [vmem:[%s1 + $0x270] sm:$0xf]
  %v198 = vld [vmem:[%s1 + $0x274] sm:$0xf]
  %v199 = vld [vmem:[%s1 + $0x278] sm:$0xf]
  %v200 = vld [vmem:[%s1 + $0x27c] sm:$0xf]
  %v201 = vld [vmem:[%s1 + $0x280] sm:$0xf]
  %v202 = vld [vmem:[%s1 + $0x284] sm:$0xf]
  %v203 = vld [vmem:[%s1 + $0x288] sm:$0xf]
  %v204 = vld [vmem:[%s1 + $0x28c] sm:$0xf]
  %v205 = vld [vmem:[%s1 + $0x290] sm:$0xf]
  %v206 = vld [vmem:[%s1 + $0x294] sm:$0xf]
  %v207 = vld [vmem:[%s1 + $0x298] sm:$0xf]
  %v208 = vld [vmem:[%s1 + $0x29c] sm:$0xf]
  %v209 = vld [vmem:[%s1 + $0x2a0] sm:$0xf]
  %v210 = vld [vmem:[%s1 + $0x2a4] sm:$0xf]
  %v211 = vld [vmem:[%s1 + $0x2a8] sm:$0xf]
  %v212 = vld [vmem:[%s1 + $0x2ac] sm:$0xf]
  %v213 = vld [vmem:[%s1 + $0x2b0] sm:$0xf]
  %v214 = vld [vmem:[%s1 + $0x2b4] sm:$0xf]
  %v215 = vld [vmem:[%s1 + $0x2b8] sm:$0xf]
  %v216 = vld [vmem:[%s1 + $0x2bc] sm:$0xf]
  %v217 = vld [vmem:[%s1 + $0x2c0] sm:$0xf]
  %v218 = vld [vmem:[%s1 + $0x2c4] sm:$0xf]
  %v219 = vld [vmem:[%s1 + $0x2c8] sm:$0xf]
  %v220 = vld [vmem:[%s1 + $0x2cc] sm:$0xf]
  %v221 = vld [vmem:[%s1 + $0x2d0] sm:$0xf]
  %v222 = vld [vmem:[%s1 + $0x2d4] sm:$0xf]
  %v223 = vld [vmem:[%s1 + $0x2d8] sm:$0xf]
  %v224 = vld [vmem:[%s1 + $0x2dc] sm:$0xf]
  %v225 = vld [vmem:[%s1 + $0x2e0] sm:$0xf]
  %v226 = vld [vmem:[%s1 + $0x2e4] sm:$0xf]
  %v227 = vld [vmem:[%s1 + $0x2e8] sm:$0xf]
  %v228 = vld [vmem:[%s1 + $0x2ec] sm:$0xf]
  %v229 = vld [vmem:[%s1 + $0x2f0] sm:$0xf]
  %v230 = vld [vmem:[%s1 + $0x2f4] sm:$0xf]
  %v231 = vld [vmem:[%s1 + $0x2f8] sm:$0xf]
  %v232 = vld [vmem:[%s1 + $0x2fc] sm:$0xf]
  %v233 = vld [vmem:[%s1 + $0x300] sm:$0xf]
  %v234 = vld [vmem:[%s1 + $0x304] sm:$0xf]
  %v235 = vld [vmem:[%s1 + $0x308] sm:$0xf]
  %v236 = vld [vmem:[%s1 + $0x30c] sm:$0xf]
  %v237 = vld [vmem:[%s1 + $0x310] sm:$0xf]
  %v238 = vld [vmem:[%s1 + $0x314] sm:$0xf]
  %v239 = vld [vmem:[%s1 + $0x318] sm:$0xf]
  %v240 = vld [vmem:[%s1 + $0x31c] sm:$0xf]
  %v241 = vld [vmem:[%s1 + $0x320] sm:$0xf]
  %v242 = vld [vmem:[%s1 + $0x324] sm:$0xf]
  %v243 = vld [vmem:[%s1 + $0x328] sm:$0xf]
  %v244 = vld [vmem:[%s1 + $0x32c] sm:$0xf]
  %v245 = vld [vmem:[%s1 + $0x330] sm:$0xf]
  %v246 = vld [vmem:[%s1 + $0x334] sm:$0xf]
  %v247 = vld [vmem:[%s1 + $0x338] sm:$0xf]
  %v248 = vld [vmem:[%s1 + $0x33c] sm:$0xf]
  %v249 = vld [vmem:[%s1 + $0x340] sm:$0xf]
  %v250 = vld [vmem:[%s1 + $0x344] sm:$0xf]
  %v251 = vld [vmem:[%s1 + $0x348] sm:$0xf]
  %v252 = vld [vmem:[%s1 + $0x34c] sm:$0xf]
  %v253 = vld [vmem:[%s1 + $0x350] sm:$0xf]
  %v254 = vld [vmem:[%s1 + $0x354] sm:$0xf]
  %v255 = vld [vmem:[%s1 + $0x358] sm:$0xf]
  %v256 = vld [vmem:[%s1 + $0x35c] sm:$0xf]
  %v257 = vld [vmem:[%s1 + $0x360] sm:$0xf]
  %v258 = vld [vmem:[%s1 + $0x364] sm:$0xf]
  %v259 = vld [vmem:[%s1 + $0x368] sm:$0xf]
  %v260 = vld [vmem:[%s1 + $0x36c] sm:$0xf]
  %v261 = vld [vmem:[%s1 + $0x370] sm:$0xf]
  %v262 = vld [vmem:[%s1 + $0x374] sm:$0xf]
  %v263 = vld [vmem:[%s1 + $0x378] sm:$0xf]
  %v264 = vld [vmem:[%s1 + $0x37c] sm:$0xf]
  %v265 = vld [vmem:[%s1 + $0x380] sm:$0xf]
  %v266 = vld [vmem:[%s1 + $0x384] sm:$0xf]
  %v267 = vld [vmem:[%s1 + $0x388] sm:$0xf]
  %v268 = vld [vmem:[%s1 + $0x38c] sm:$0xf]
  %v269 = vld [vmem:[%s1 + $0x390] sm:$0xf]
  %v270 = vld [vmem:[%s1 + $0x394] sm:$0xf]
  %v271 = vld [vmem:[%s1 + $0x398] sm:$0xf]
  %v272 = vld [vmem:[%s1 + $0x39c] sm:$0xf]
  %v273 = vld [vmem:[%s1 + $0x3a0] sm:$0xf]
  %v274 = vld [vmem:[%s1 + $0x3a4] sm:$0xf]
  %v275 = vld [vmem:[%s1 + $0x3a8] sm:$0xf]
  %v276 = vld [vmem:[%s1 + $0x3ac] sm:$0xf]
  %v277 = vld [vmem:[%s1 + $0x3b0] sm:$0xf]
  %v278 = vld [vmem:[%s1 + $0x3b4] sm:$0xf]
  %v279 = vld [vmem:[%s1 + $0x3b8] sm:$0xf]
  %v280 = vld [vmem:[%s1 + $0x3bc] sm:$0xf]
  %v281 = vld [vmem:[%s1 + $0x3c0] sm:$0xf]
  %v282 = vld [vmem:[%s1 + $0x3c4] sm:$0xf]
  %v283 = vld [vmem:[%s1 + $0x3c8] sm:$0xf]
  %v284 = vld [vmem:[%s1 + $0x3cc] sm:$0xf]
  %v285 = vld [vmem:[%s1 + $0x3d0] sm:$0xf]
  %v286 = vld [vmem:[%s1 + $0x3d4] sm:$0xf]
  %v287 = vld [vmem:[%s1 + $0x3d8] sm:$0xf]
  %v288 = vld [vmem:[%s1 + $0x3dc] sm:$0xf]
  %v289 = vld [vmem:[%s1 + $0x3e0] sm:$0xf]
  %v290 = vld [vmem:[%s1 + $0x3e4] sm:$0xf]
  %v291 = vld [vmem:[%s1 + $0x3e8] sm:$0xf]
  %v292 = vld [vmem:[%s1 + $0x3ec] sm:$0xf]
  %v293 = vld [vmem:[%s1 + $0x3f0] sm:$0xf]
  %v294 = vld [vmem:[%s1 + $0x3f4] sm:$0xf]
  %v295 = vld [vmem:[%s1 + $0x3f8] sm:$0xf]
  %v296 = vld [vmem:[%s1 + $0x3fc] sm:$0xf]
  %v297 = vld [vmem:[%s1 + $0x400] sm:$0xf]
  %v298 = vld [vmem:[%s1 + $0x404] sm:$0xf]
  %v299 = vld [vmem:[%s1 + $0x408] sm:$0xf]
  %v300 = vld [vmem:[%s1 + $0x40c] sm:$0xf]
  %v301 = vld [vmem:[%s1 + $0x410] sm:$0xf]
  %v302 = vld [vmem:[%s1 + $0x414] sm:$0xf]
  %v303 = vld [vmem:[%s1 + $0x418] sm:$0xf]
  %v304 = vld [vmem:[%s1 + $0x41c] sm:$0xf]
  %v305 = vld [vmem:[%s1 + $0x420] sm:$0xf]
  %v306 = vld [vmem:[%s1 + $0x424] sm:$0xf]
  %v307 = vld [vmem:[%s1 + $0x428] sm:$0xf]
  %v308 = vld [vmem:[%s1 + $0x42c] sm:$0xf]
  %v309 = vld [vmem:[%s1 + $0x430] sm:$0xf]
  %v310 = vld [vmem:[%s1 + $0x434] sm:$0xf]
  %v311 = vld [vmem:[%s1 + $0x438] sm:$0xf]
  %v312 = vld [vmem:[%s1 + $0x43c] sm:$0xf]
  %v313 = vld [vmem:[%s1 + $0x440] sm:$0xf]
  %v314 = vld [vmem:[%s1 + $0x444] sm:$0xf]
  %v315 = vld [vmem:[%s1 + $0x448] sm:$0xf]
  %v316 = vld [vmem:[%s1 + $0x44c] sm:$0xf]
  %v317 = vld [vmem:[%s1 + $0x450] sm:$0xf]
  %v318 = vld [vmem:[%s1 + $0x454] sm:$0xf]
  %v319 = vld [vmem:[%s1 + $0x458] sm:$0xf]
  %v320 = vld [vmem:[%s1 + $0x45c] sm:$0xf]
  %v321 = vld [vmem:[%s1 + $0x460] sm:$0xf]
  %v322 = vld [vmem:[%s1 + $0x464] sm:$0xf]
  %v323 = vld [vmem:[%s1 + $0x468] sm:$0xf]
  %v324 = vld [vmem:[%s1 + $0x46c] sm:$0xf]
  %v325 = vld [vmem:[%s1 + $0x470] sm:$0xf]
  %v326 = vld [vmem:[%s1 + $0x474] sm:$0xf]
  %v327 = vld [vmem:[%s1 + $0x478] sm:$0xf]
  %v328 = vld [vmem:[%s1 + $0x47c] sm:$0xf]
  %v329 = vld [vmem:[%s1 + $0x480] sm:$0xf]
  %v330 = vld [vmem:[%s1 + $0x484] sm:$0xf]
  %v331 = vld [vmem:[%s1 + $0x488] sm:$0xf]
  %v332 = vld [vmem:[%s1 + $0x48c] sm:$0xf]
  %v333 = vld [vmem:[%s1 + $0x490] sm:$0xf]
  %v334 = vld [vmem:[%s1 + $0x494] sm:$0xf]
  %v335 = vld [vmem:[%s1 + $0x498] sm:$0xf]
  %v336 = vld [vmem:[%s1 + $0x49c] sm:$0xf]
  %v337 = vld [vmem:[%s1 + $0x4a0] sm:$0xf]
  %v338 = vld [vmem:[%s1 + $0x4a4] sm:$0xf]
  %v339 = vld [vmem:[%s1 + $0x4a8] sm:$0xf]
  %v340 = vld [vmem:[%s1 + $0x4ac] sm:$0xf]
  %v341 = vld [vmem:[%s1 + $0x4b0] sm:$0xf]
  %v342 = vld [vmem:[%s1 + $0x4b4] sm:$0xf]
  %v343 = vld [vmem:[%s1 + $0x4b8] sm:$0xf]
  %v344 = vld [vmem:[%s1 + $0x4bc] sm:$0xf]
  %v345 = vld [vmem:[%s1 + $0x4c0] sm:$0xf]
  %v346 = vld [vmem:[%s1 + $0x4c4] sm:$0xf]
  %v347 = vld [vmem:[%s1 + $0x4c8] sm:$0xf]
  %v348 = vld [vmem:[%s1 + $0x4cc] sm:$0xf]
  %v349 = vld [vmem:[%s1 + $0x4d0] sm:$0xf]
  %v350 = vld [vmem:[%s1 + $0x4d4] sm:$0xf]
  %v351 = vld [vmem:[%s1 + $0x4d8] sm:$0xf]
  %v352 = vld [vmem:[%s1 + $0x4dc] sm:$0xf]
  %v353 = vld [vmem:[%s1 + $0x4e0] sm:$0xf]
  %v354 = vld [vmem:[%s1 + $0x4e4] sm:$0xf]
  %v355 = vld [vmem:[%s1 + $0x4e8] sm:$0xf]
  %v356 = vld [vmem:[%s1 + $0x4ec] sm:$0xf]
  %v357 = vld [vmem:[%s1 + $0x4f0] sm:$0xf]
  %v358 = vld [vmem:[%s1 + $0x4f4] sm:$0xf]
  %v359 = vld [vmem:[%s1 + $0x4f8] sm:$0xf]
  %v360 = vld [vmem:[%s1 + $0x4fc] sm:$0xf]
  %v361 = vld [vmem:[%s1 + $0x500] sm:$0xf]
  %v362 = vld [vmem:[%s1 + $0x504] sm:$0xf]
  %v363 = vld [vmem:[%s1 + $0x508] sm:$0xf]
  %v364 = vld [vmem:[%s1 + $0x50c] sm:$0xf]
  %v365 = vld [vmem:[%s1 + $0x510] sm:$0xf]
  %v366 = vld [vmem:[%s1 + $0x514] sm:$0xf]
  %v367 = vld [vmem:[%s1 + $0x518] sm:$0xf]
  %v368 = vld [vmem:[%s1 + $0x51c] sm:$0xf]
  %v369 = vld [vmem:[%s1 + $0x520] sm:$0xf]
  %v370 = vld [vmem:[%s1 + $0x524] sm:$0xf]
  %v371 = vld [vmem:[%s1 + $0x528] sm:$0xf]
  %v372 = vld [vmem:[%s1 + $0x52c] sm:$0xf]
  %v373 = vld [vmem:[%s1 + $0x530] sm:$0xf]
  %v374 = vld [vmem:[%s1 + $0x534] sm:$0xf]
  %v375 = vld [vmem:[%s1 + $0x538] sm:$0xf]
  %v376 = vld [vmem:[%s1 + $0x53c] sm:$0xf]
  %v377 = vld [vmem:[%s1 + $0x540] sm:$0xf]
  %v378 = vld [vmem:[%s1 + $0x544] sm:$0xf]
  %v379 = vld [vmem:[%s1 + $0x548] sm:$0xf]
  %v380 = vld [vmem:[%s1 + $0x54c] sm:$0xf]
  %v381 = vld [vmem:[%s1 + $0x550] sm:$0xf]
  %v382 = vld [vmem:[%s1 + $0x554] sm:$0xf]
  %v383 = vld [vmem:[%s1 + $0x558] sm:$0xf]
  %v384 = vld [vmem:[%s1 + $0x55c] sm:$0xf]
  %v385 = vld [vmem:[%s1 + $0x560] sm:$0xf]
  %v386 = vld [vmem:[%s1 + $0x564] sm:$0xf]
  %v387 = vld [vmem:[%s1 + $0x568] sm:$0xf]
  %v388 = vld [vmem:[%s1 + $0x56c] sm:$0xf]
  %v389 = vld [vmem:[%s1 + $0x570] sm:$0xf]
  %v390 = vld [vmem:[%s1 + $0x574] sm:$0xf]
  %v391 = vld [vmem:[%s1 + $0x578] sm:$0xf]
  %v392 = vld [vmem:[%s1 + $0x57c] sm:$0xf]
  %v393 = vld [vmem:[%s1 + $0x580] sm:$0xf]
  %v394 = vld [vmem:[%s1 + $0x584] sm:$0xf]
  %v395 = vld [vmem:[%s1 + $0x588] sm:$0xf]
  %v396 = vld [vmem:[%s1 + $0x58c] sm:$0xf]
  %v397 = vld [vmem:[%s1 + $0x590] sm:$0xf]
  %v398 = vld [vmem:[%s1 + $0x594] sm:$0xf]
  %v399 = vld [vmem:[%s1 + $0x598] sm:$0xf]
  %v400 = vld [vmem:[%s1 + $0x59c] sm:$0xf]
  %v401 = vld [vmem:[%s1 + $0x5a0] sm:$0xf]
  %v402 = vld [vmem:[%s1 + $0x5a4] sm:$0xf]
  %v403 = vld [vmem:[%s1 + $0x5a8] sm:$0xf]
  %v404 = vld [vmem:[%s1 + $0x5ac] sm:$0xf]
  %v405 = vld [vmem:[%s1 + $0x5b0] sm:$0xf]
  %v406 = vld [vmem:[%s1 + $0x5b4] sm:$0xf]
  %v407 = vld [vmem:[%s1 + $0x5b8] sm:$0xf]
  %v408 = vld [vmem:[%s1 + $0x5bc] sm:$0xf]
  %v409 = vld [vmem:[%s1 + $0x5c0] sm:$0xf]
  %v410 = vld [vmem:[%s1 + $0x5c4] sm:$0xf]
  %v411 = vld [vmem:[%s1 + $0x5c8] sm:$0xf]
  %v412 = vld [vmem:[%s1 + $0x5cc] sm:$0xf]
  %v413 = vld [vmem:[%s1 + $0x5d0] sm:$0xf]
  %v414 = vld [vmem:[%s1 + $0x5d4] sm:$0xf]
  %v415 = vld [vmem:[%s1 + $0x5d8] sm:$0xf]
  %v416 = vld [vmem:[%s1 + $0x5dc] sm:$0xf]
  %v417 = vld [vmem:[%s1 + $0x5e0] sm:$0xf]
  %v418 = vld [vmem:[%s1 + $0x5e4] sm:$0xf]
  %v419 = vld [vmem:[%s1 + $0x5e8] sm:$0xf]
  %v420 = vld [vmem:[%s1 + $0x5ec] sm:$0xf]
  %v421 = vld [vmem:[%s1 + $0x5f0] sm:$0xf]
  %v422 = vld [vmem:[%s1 + $0x5f4] sm:$0xf]
  %v423 = vld [vmem:[%s1 + $0x5f8] sm:$0xf]
  %v424 = vld [vmem:[%s1 + $0x5fc] sm:$0xf]
  %v425 = vld [vmem:[%s1 + $0x600] sm:$0xf]
  %v426 = vld [vmem:[%s1 + $0x604] sm:$0xf]
  %v427 = vld [vmem:[%s1 + $0x608] sm:$0xf]
  %v428 = vld [vmem:[%s1 + $0x60c] sm:$0xf]
  %v429 = vld [vmem:[%s1 + $0x610] sm:$0xf]
  %v430 = vld [vmem:[%s1 + $0x614] sm:$0xf]
  %v431 = vld [vmem:[%s1 + $0x618] sm:$0xf]
  %v432 = vld [vmem:[%s1 + $0x61c] sm:$0xf]
  %v433 = vld [vmem:[%s2] sm:$0xff]
  %v434 = vld [vmem:[%s2 + $0x8] sm:$0xff]
  %436 = vset.pattern.permute.xlu0 0
  %437 = vperm.xlu0 %436, %v433
  %v438 = vpop.permute.xlu0 %437
  %441 = vset.pattern.permute.xlu0 0
  %442 = vperm.xlu0 %441, %v434
  %v443 = vpop.permute.xlu0 %442
  %v471 = vunpack.c.l.b16 %v15
  %v472 = vunpack.c.h.b16 %v15
  %v473 = vunpack.c.l.b16 %v16
  %v474 = vunpack.c.h.b16 %v16
  %v475 = vunpack.c.l.b16 %v17
  %v476 = vunpack.c.h.b16 %v17
  %v477 = vunpack.c.l.b16 %v18
  %v478 = vunpack.c.h.b16 %v18
  %v479 = vunpack.c.l.b16 %v19
  %v480 = vunpack.c.h.b16 %v19
  %v481 = vunpack.c.l.b16 %v20
  %v482 = vunpack.c.h.b16 %v20
  %v483 = vunpack.c.l.b16 %v21
  %v484 = vunpack.c.h.b16 %v21
  %v485 = vunpack.c.l.b16 %v22
  %v486 = vunpack.c.h.b16 %v22
  %v487 = vunpack.c.l.b16 %v23
  %v488 = vunpack.c.h.b16 %v23
  %v489 = vunpack.c.l.b16 %v24
  %v490 = vunpack.c.h.b16 %v24
  %v491 = vunpack.c.l.b16 %v25
  %v492 = vunpack.c.h.b16 %v25
  %v493 = vunpack.c.l.b16 %v26
  %v494 = vunpack.c.h.b16 %v26
  %v495 = vunpack.c.l.b16 %v27
  %v496 = vunpack.c.l.b16 %v28
  %v497 = vunpack.c.h.b16 %v28
  %v498 = vunpack.c.l.b16 %v29
  %v499 = vunpack.c.h.b16 %v29
  %v500 = vunpack.c.l.b16 %v30
  %v501 = vunpack.c.h.b16 %v30
  %v502 = vunpack.c.l.b16 %v31
  %v503 = vunpack.c.h.b16 %v31
  %v504 = vunpack.c.l.b16 %v32
  %v505 = vunpack.c.h.b16 %v32
  %v506 = vunpack.c.l.b16 %v33
  %v507 = vunpack.c.h.b16 %v33
  %v508 = vunpack.c.l.b16 %v34
  %v509 = vunpack.c.h.b16 %v34
  %v510 = vunpack.c.l.b16 %v35
  %v511 = vunpack.c.h.b16 %v35
  %v512 = vunpack.c.l.b16 %v36
  %v513 = vunpack.c.h.b16 %v36
  %v514 = vunpack.c.l.b16 %v37
  %v515 = vunpack.c.h.b16 %v37
  %v516 = vunpack.c.l.b16 %v38
  %v517 = vunpack.c.h.b16 %v38
  %v518 = vunpack.c.l.b16 %v39
  %v519 = vunpack.c.h.b16 %v39
  %v520 = vunpack.c.l.b16 %v40
  %v521 = vpack.c.b16 %v496, %v471
  %v522 = vpack.c.b16 %v497, %v472
  %v523 = vpack.c.b16 %v498, %v473
  %v524 = vpack.c.b16 %v499, %v474
  %v525 = vpack.c.b16 %v500, %v475
  %v526 = vpack.c.b16 %v501, %v476
  %v527 = vpack.c.b16 %v502, %v477
  %v528 = vpack.c.b16 %v503, %v478
  %v529 = vpack.c.b16 %v504, %v479
  %v530 = vpack.c.b16 %v505, %v480
  %v531 = vpack.c.b16 %v506, %v481
  %v532 = vpack.c.b16 %v507, %v482
  %v533 = vpack.c.b16 %v508, %v483
  %v534 = vpack.c.b16 %v509, %v484
  %v535 = vpack.c.b16 %v510, %v485
  %v536 = vpack.c.b16 %v511, %v486
  %v537 = vpack.c.b16 %v512, %v487
  %v538 = vpack.c.b16 %v513, %v488
  %v539 = vpack.c.b16 %v514, %v489
  %v540 = vpack.c.b16 %v515, %v490
  %v541 = vpack.c.b16 %v516, %v491
  %v542 = vpack.c.b16 %v517, %v492
  %v543 = vpack.c.b16 %v518, %v493
  %v544 = vpack.c.b16 %v519, %v494
  %v545 = vpack.c.b16 %v520, %v495
  %v962 = vunpack.c.l.b16 %v41
  %v963 = vunpack.c.l.b16 %v42
  %v964 = vunpack.c.l.b16 %v43
  %v965 = vunpack.c.l.b16 %v44
  %v966 = vunpack.c.l.b16 %v45
  %v967 = vunpack.c.l.b16 %v46
  %v968 = vunpack.c.l.b16 %v47
  %v969 = vunpack.c.l.b16 %v48
  %v970 = vunpack.c.l.b16 %v49
  %v971 = vunpack.c.l.b16 %v50
  %v972 = vunpack.c.l.b16 %v51
  %v973 = vunpack.c.l.b16 %v52
  %v974 = vunpack.c.l.b16 %v53
  %v975 = vunpack.c.l.b16 %v54
  %v976 = vunpack.c.l.b16 %v55
  %v977 = vunpack.c.l.b16 %v56
  %v978 = vunpack.c.l.b16 %v57
  %v979 = vunpack.c.l.b16 %v58
  %v980 = vunpack.c.l.b16 %v59
  %v981 = vunpack.c.l.b16 %v60
  %v982 = vunpack.c.l.b16 %v61
  %v983 = vunpack.c.l.b16 %v62
  %v984 = vunpack.c.l.b16 %v63
  %v985 = vunpack.c.l.b16 %v64
  %v986 = vunpack.c.l.b16 %v65
  %v987 = vunpack.c.l.b16 %v66
  %v988 = vunpack.c.l.b16 %v67
  %v989 = vunpack.c.l.b16 %v68
  %v990 = vunpack.c.l.b16 %v69
  %v991 = vunpack.c.l.b16 %v70
  %v992 = vunpack.c.l.b16 %v71
  %v993 = vunpack.c.l.b16 %v72
  %v994 = vunpack.c.l.b16 %v73
  %v995 = vunpack.c.l.b16 %v74
  %v996 = vunpack.c.l.b16 %v75
  %v997 = vunpack.c.l.b16 %v76
  %v998 = vunpack.c.l.b16 %v77
  %v999 = vunpack.c.l.b16 %v78
  %v1000 = vunpack.c.l.b16 %v79
  %v1001 = vunpack.c.l.b16 %v80
  %v1002 = vunpack.c.l.b16 %v81
  %v1003 = vunpack.c.l.b16 %v82
  %v1004 = vunpack.c.l.b16 %v83
  %v1005 = vunpack.c.l.b16 %v84
  %v1006 = vunpack.c.l.b16 %v85
  %v1007 = vunpack.c.l.b16 %v86
  %v1008 = vunpack.c.l.b16 %v87
  %v1009 = vunpack.c.l.b16 %v88
  %v1010 = vunpack.c.l.b16 %v89
  %v1011 = vunpack.c.l.b16 %v90
  %v1012 = vunpack.c.l.b16 %v91
  %v1013 = vunpack.c.l.b16 %v92
  %v1014 = vunpack.c.l.b16 %v93
  %v1015 = vunpack.c.l.b16 %v94
  %v1016 = vunpack.c.l.b16 %v95
  %v1017 = vunpack.c.l.b16 %v96
  %v1018 = vunpack.c.l.b16 %v97
  %v1019 = vunpack.c.l.b16 %v98
  %v1020 = vunpack.c.l.b16 %v99
  %v1021 = vunpack.c.l.b16 %v100
  %v1022 = vunpack.c.l.b16 %v101
  %v1023 = vunpack.c.l.b16 %v102
  %v1024 = vunpack.c.l.b16 %v103
  %v1025 = vunpack.c.l.b16 %v104
  %v1026 = vunpack.c.l.b16 %v105
  %v1027 = vunpack.c.l.b16 %v106
  %v1028 = vunpack.c.l.b16 %v107
  %v1029 = vunpack.c.l.b16 %v108
  %v1030 = vunpack.c.l.b16 %v109
  %v1031 = vunpack.c.l.b16 %v110
  %v1032 = vunpack.c.l.b16 %v111
  %v1033 = vunpack.c.l.b16 %v112
  %v1034 = vunpack.c.l.b16 %v113
  %v1035 = vunpack.c.l.b16 %v114
  %v1036 = vunpack.c.l.b16 %v115
  %v1037 = vunpack.c.l.b16 %v116
  %v1038 = vunpack.c.l.b16 %v117
  %v1039 = vunpack.c.l.b16 %v118
  %v1040 = vunpack.c.l.b16 %v119
  %v1041 = vunpack.c.l.b16 %v120
  %v1042 = vunpack.c.l.b16 %v121
  %v1043 = vunpack.c.l.b16 %v122
  %v1044 = vunpack.c.l.b16 %v123
  %v1045 = vunpack.c.l.b16 %v124
  %v1046 = vunpack.c.l.b16 %v125
  %v1047 = vunpack.c.l.b16 %v126
  %v1048 = vunpack.c.l.b16 %v127
  %v1049 = vunpack.c.l.b16 %v128
  %v1050 = vunpack.c.l.b16 %v129
  %v1051 = vunpack.c.l.b16 %v130
  %v1052 = vunpack.c.l.b16 %v131
  %v1053 = vunpack.c.l.b16 %v132
  %v1054 = vunpack.c.l.b16 %v133
  %v1055 = vunpack.c.l.b16 %v134
  %v1056 = vunpack.c.l.b16 %v135
  %v1057 = vunpack.c.l.b16 %v136
  %v1058 = vunpack.c.l.b16 %v137
  %v1059 = vunpack.c.l.b16 %v138
  %v1060 = vunpack.c.l.b16 %v139
  %v1061 = vunpack.c.l.b16 %v140
  %v1062 = vunpack.c.l.b16 %v141
  %v1063 = vunpack.c.l.b16 %v142
  %v1064 = vunpack.c.l.b16 %v143
  %v1065 = vunpack.c.l.b16 %v144
  %v1066 = vunpack.c.l.b16 %v145
  %v1067 = vunpack.c.l.b16 %v146
  %v1068 = vunpack.c.l.b16 %v147
  %v1069 = vunpack.c.l.b16 %v148
  %v1070 = vunpack.c.l.b16 %v149
  %v1071 = vunpack.c.l.b16 %v150
  %v1072 = vunpack.c.l.b16 %v151
  %v1073 = vunpack.c.l.b16 %v152
  %v1074 = vunpack.c.l.b16 %v153
  %v1075 = vunpack.c.l.b16 %v154
  %v1076 = vunpack.c.l.b16 %v155
  %v1077 = vunpack.c.l.b16 %v156
  %v1078 = vunpack.c.l.b16 %v157
  %v1079 = vunpack.c.l.b16 %v158
  %v1080 = vunpack.c.l.b16 %v159
  %v1081 = vunpack.c.l.b16 %v160
  %v1082 = vunpack.c.l.b16 %v161
  %v1083 = vunpack.c.l.b16 %v162
  %v1084 = vunpack.c.l.b16 %v163
  %v1085 = vunpack.c.l.b16 %v164
  %v1086 = vunpack.c.l.b16 %v165
  %v1087 = vunpack.c.l.b16 %v166
  %v1088 = vunpack.c.l.b16 %v167
  %v1089 = vunpack.c.l.b16 %v168
  %v1090 = vunpack.c.l.b16 %v169
  %v1091 = vunpack.c.l.b16 %v170
  %v1092 = vunpack.c.l.b16 %v171
  %v1093 = vunpack.c.l.b16 %v172
  %v1094 = vunpack.c.l.b16 %v173
  %v1095 = vunpack.c.l.b16 %v174
  %v1096 = vunpack.c.l.b16 %v175
  %v1097 = vunpack.c.l.b16 %v176
  %v1098 = vunpack.c.l.b16 %v177
  %v1099 = vunpack.c.l.b16 %v178
  %v1100 = vunpack.c.l.b16 %v179
  %v1101 = vunpack.c.l.b16 %v180
  %v1102 = vunpack.c.l.b16 %v181
  %v1103 = vunpack.c.l.b16 %v182
  %v1104 = vunpack.c.l.b16 %v183
  %v1105 = vunpack.c.l.b16 %v184
  %v1106 = vunpack.c.l.b16 %v185
  %v1107 = vunpack.c.l.b16 %v186
  %v1108 = vunpack.c.l.b16 %v187
  %v1109 = vunpack.c.l.b16 %v188
  %v1110 = vunpack.c.l.b16 %v189
  %v1111 = vunpack.c.l.b16 %v190
  %v1112 = vunpack.c.l.b16 %v191
  %v1113 = vunpack.c.l.b16 %v192
  %v1114 = vunpack.c.l.b16 %v193
  %v1115 = vunpack.c.l.b16 %v194
  %v1116 = vunpack.c.l.b16 %v195
  %v1117 = vunpack.c.l.b16 %v196
  %v1118 = vunpack.c.l.b16 %v197
  %v1119 = vunpack.c.l.b16 %v198
  %v1120 = vunpack.c.l.b16 %v199
  %v1121 = vunpack.c.l.b16 %v200
  %v1122 = vunpack.c.l.b16 %v201
  %v1123 = vunpack.c.l.b16 %v202
  %v1124 = vunpack.c.l.b16 %v203
  %v1125 = vunpack.c.l.b16 %v204
  %v1126 = vunpack.c.l.b16 %v205
  %v1127 = vunpack.c.l.b16 %v206
  %v1128 = vunpack.c.l.b16 %v207
  %v1129 = vunpack.c.l.b16 %v208
  %v1130 = vunpack.c.l.b16 %v209
  %v1131 = vunpack.c.l.b16 %v210
  %v1132 = vunpack.c.l.b16 %v211
  %v1133 = vunpack.c.l.b16 %v212
  %v1134 = vunpack.c.l.b16 %v213
  %v1135 = vunpack.c.l.b16 %v214
  %v1136 = vunpack.c.l.b16 %v215
  %v1137 = vunpack.c.l.b16 %v216
  %v1138 = vunpack.c.l.b16 %v217
  %v1139 = vunpack.c.l.b16 %v218
  %v1140 = vunpack.c.l.b16 %v219
  %v1141 = vunpack.c.l.b16 %v220
  %v1142 = vunpack.c.l.b16 %v221
  %v1143 = vunpack.c.l.b16 %v222
  %v1144 = vunpack.c.l.b16 %v223
  %v1145 = vunpack.c.l.b16 %v224
  %v1146 = vunpack.c.l.b16 %v225
  %v1147 = vunpack.c.l.b16 %v226
  %v1148 = vunpack.c.l.b16 %v227
  %v1149 = vunpack.c.l.b16 %v228
  %v1150 = vunpack.c.l.b16 %v229
  %v1151 = vunpack.c.l.b16 %v230
  %v1152 = vunpack.c.l.b16 %v231
  %v1153 = vunpack.c.l.b16 %v232
  %v1154 = vunpack.c.l.b16 %v233
  %v1155 = vunpack.c.l.b16 %v234
  %v1156 = vunpack.c.l.b16 %v235
  %v1157 = vunpack.c.l.b16 %v236
  %v1158 = vunpack.c.l.b16 %v237
  %v1159 = vunpack.c.l.b16 %v238
  %v1160 = vunpack.c.l.b16 %v239
  %v1161 = vunpack.c.l.b16 %v240
  %v1162 = vunpack.c.l.b16 %v241
  %v1163 = vunpack.c.l.b16 %v242
  %v1164 = vunpack.c.l.b16 %v243
  %v1165 = vunpack.c.l.b16 %v244
  %v1166 = vunpack.c.l.b16 %v245
  %v1167 = vunpack.c.l.b16 %v246
  %v1168 = vunpack.c.l.b16 %v247
  %v1169 = vunpack.c.l.b16 %v248
  %v1170 = vunpack.c.l.b16 %v249
  %v1171 = vunpack.c.l.b16 %v250
  %v1172 = vunpack.c.l.b16 %v251
  %v1173 = vunpack.c.l.b16 %v252
  %v1174 = vunpack.c.l.b16 %v253
  %v1175 = vunpack.c.l.b16 %v254
  %v1176 = vunpack.c.l.b16 %v255
  %v1177 = vunpack.c.l.b16 %v256
  %v1178 = vunpack.c.l.b16 %v257
  %v1179 = vunpack.c.l.b16 %v258
  %v1180 = vunpack.c.l.b16 %v259
  %v1181 = vunpack.c.l.b16 %v260
  %v1182 = vunpack.c.l.b16 %v261
  %v1183 = vunpack.c.l.b16 %v262
  %v1184 = vunpack.c.l.b16 %v263
  %v1185 = vunpack.c.l.b16 %v264
  %v1186 = vunpack.c.l.b16 %v265
  %v1187 = vunpack.c.l.b16 %v266
  %v1188 = vunpack.c.l.b16 %v267
  %v1189 = vunpack.c.l.b16 %v268
  %v1190 = vunpack.c.l.b16 %v269
  %v1191 = vunpack.c.l.b16 %v270
  %v1192 = vunpack.c.l.b16 %v271
  %v1193 = vunpack.c.l.b16 %v272
  %v1194 = vunpack.c.l.b16 %v273
  %v1195 = vunpack.c.l.b16 %v274
  %v1196 = vunpack.c.l.b16 %v275
  %v1197 = vunpack.c.l.b16 %v276
  %v1198 = vunpack.c.l.b16 %v277
  %v1199 = vunpack.c.l.b16 %v278
  %v1200 = vunpack.c.l.b16 %v279
  %v1201 = vunpack.c.l.b16 %v280
  %v1202 = vunpack.c.l.b16 %v281
  %v1203 = vunpack.c.l.b16 %v282
  %v1204 = vunpack.c.l.b16 %v283
  %v1205 = vunpack.c.l.b16 %v284
  %v1206 = vunpack.c.l.b16 %v285
  %v1207 = vunpack.c.l.b16 %v286
  %v1208 = vunpack.c.l.b16 %v287
  %v1209 = vunpack.c.l.b16 %v288
  %v1210 = vunpack.c.l.b16 %v289
  %v1211 = vunpack.c.l.b16 %v290
  %v1212 = vunpack.c.l.b16 %v291
  %v1213 = vunpack.c.l.b16 %v292
  %v1214 = vunpack.c.l.b16 %v293
  %v1215 = vunpack.c.l.b16 %v294
  %v1216 = vunpack.c.l.b16 %v295
  %v1217 = vunpack.c.l.b16 %v296
  %v1218 = vunpack.c.l.b16 %v297
  %v1219 = vunpack.c.l.b16 %v298
  %v1220 = vunpack.c.l.b16 %v299
  %v1221 = vunpack.c.l.b16 %v300
  %v1222 = vunpack.c.l.b16 %v301
  %v1223 = vunpack.c.l.b16 %v302
  %v1224 = vunpack.c.l.b16 %v303
  %v1225 = vunpack.c.l.b16 %v304
  %v1226 = vunpack.c.l.b16 %v305
  %v1227 = vunpack.c.l.b16 %v306
  %v1228 = vunpack.c.l.b16 %v307
  %v1229 = vunpack.c.l.b16 %v308
  %v1230 = vunpack.c.l.b16 %v309
  %v1231 = vunpack.c.l.b16 %v310
  %v1232 = vunpack.c.l.b16 %v311
  %v1233 = vunpack.c.l.b16 %v312
  %v1234 = vunpack.c.l.b16 %v313
  %v1235 = vunpack.c.l.b16 %v314
  %v1236 = vunpack.c.l.b16 %v315
  %v1237 = vunpack.c.l.b16 %v316
  %v1238 = vunpack.c.l.b16 %v317
  %v1239 = vunpack.c.l.b16 %v318
  %v1240 = vunpack.c.l.b16 %v319
  %v1241 = vunpack.c.l.b16 %v320
  %v1242 = vunpack.c.l.b16 %v321
  %v1243 = vunpack.c.l.b16 %v322
  %v1244 = vunpack.c.l.b16 %v323
  %v1245 = vunpack.c.l.b16 %v324
  %v1246 = vunpack.c.l.b16 %v325
  %v1247 = vunpack.c.l.b16 %v326
  %v1248 = vunpack.c.l.b16 %v327
  %v1249 = vunpack.c.l.b16 %v328
  %v1250 = vunpack.c.l.b16 %v329
  %v1251 = vunpack.c.l.b16 %v330
  %v1252 = vunpack.c.l.b16 %v331
  %v1253 = vunpack.c.l.b16 %v332
  %v1254 = vunpack.c.l.b16 %v333
  %v1255 = vunpack.c.l.b16 %v334
  %v1256 = vunpack.c.l.b16 %v335
  %v1257 = vunpack.c.l.b16 %v336
  %v1258 = vunpack.c.l.b16 %v337
  %v1259 = vunpack.c.l.b16 %v338
  %v1260 = vunpack.c.l.b16 %v339
  %v1261 = vunpack.c.l.b16 %v340
  %v1262 = vunpack.c.l.b16 %v341
  %v1263 = vunpack.c.l.b16 %v342
  %v1264 = vunpack.c.l.b16 %v343
  %v1265 = vunpack.c.l.b16 %v344
  %v1266 = vunpack.c.l.b16 %v345
  %v1267 = vunpack.c.l.b16 %v346
  %v1268 = vunpack.c.l.b16 %v347
  %v1269 = vunpack.c.l.b16 %v348
  %v1270 = vunpack.c.l.b16 %v349
  %v1271 = vunpack.c.l.b16 %v350
  %v1272 = vunpack.c.l.b16 %v351
  %v1273 = vunpack.c.l.b16 %v352
  %v1274 = vunpack.c.l.b16 %v353
  %v1275 = vunpack.c.l.b16 %v354
  %v1276 = vunpack.c.l.b16 %v355
  %v1277 = vunpack.c.l.b16 %v356
  %v1278 = vunpack.c.l.b16 %v357
  %v1279 = vunpack.c.l.b16 %v358
  %v1280 = vunpack.c.l.b16 %v359
  %v1281 = vunpack.c.l.b16 %v360
  %v1282 = vunpack.c.l.b16 %v361
  %v1283 = vunpack.c.l.b16 %v362
  %v1284 = vunpack.c.l.b16 %v363
  %v1285 = vunpack.c.l.b16 %v364
  %v1286 = vunpack.c.l.b16 %v365
  %v1287 = vunpack.c.l.b16 %v366
  %v1288 = vunpack.c.l.b16 %v367
  %v1289 = vunpack.c.l.b16 %v368
  %v1290 = vunpack.c.l.b16 %v369
  %v1291 = vunpack.c.l.b16 %v370
  %v1292 = vunpack.c.l.b16 %v371
  %v1293 = vunpack.c.l.b16 %v372
  %v1294 = vunpack.c.l.b16 %v373
  %v1295 = vunpack.c.l.b16 %v374
  %v1296 = vunpack.c.l.b16 %v375
  %v1297 = vunpack.c.l.b16 %v376
  %v1298 = vunpack.c.l.b16 %v377
  %v1299 = vunpack.c.l.b16 %v378
  %v1300 = vunpack.c.l.b16 %v379
  %v1301 = vunpack.c.l.b16 %v380
  %v1302 = vunpack.c.l.b16 %v381
  %v1303 = vunpack.c.l.b16 %v382
  %v1304 = vunpack.c.l.b16 %v383
  %v1305 = vunpack.c.l.b16 %v384
  %v1306 = vunpack.c.l.b16 %v385
  %v1307 = vunpack.c.l.b16 %v386
  %v1308 = vunpack.c.l.b16 %v387
  %v1309 = vunpack.c.l.b16 %v388
  %v1310 = vunpack.c.l.b16 %v389
  %v1311 = vunpack.c.l.b16 %v390
  %v1312 = vunpack.c.l.b16 %v391
  %v1313 = vunpack.c.l.b16 %v392
  %v1314 = vunpack.c.l.b16 %v393
  %v1315 = vunpack.c.l.b16 %v394
  %v1316 = vunpack.c.l.b16 %v395
  %v1317 = vunpack.c.l.b16 %v396
  %v1318 = vunpack.c.l.b16 %v397
  %v1319 = vunpack.c.l.b16 %v398
  %v1320 = vunpack.c.l.b16 %v399
  %v1321 = vunpack.c.l.b16 %v400
  %v1322 = vunpack.c.l.b16 %v401
  %v1323 = vunpack.c.l.b16 %v402
  %v1324 = vunpack.c.l.b16 %v403
  %v1325 = vunpack.c.l.b16 %v404
  %v1326 = vunpack.c.l.b16 %v405
  %v1327 = vunpack.c.l.b16 %v406
  %v1328 = vunpack.c.l.b16 %v407
  %v1329 = vunpack.c.l.b16 %v408
  %v1330 = vunpack.c.l.b16 %v409
  %v1331 = vunpack.c.l.b16 %v410
  %v1332 = vunpack.c.l.b16 %v411
  %v1333 = vunpack.c.l.b16 %v412
  %v1334 = vunpack.c.l.b16 %v413
  %v1335 = vunpack.c.l.b16 %v414
  %v1336 = vunpack.c.l.b16 %v415
  %v1337 = vunpack.c.l.b16 %v416
  %v1338 = vunpack.c.l.b16 %v417
  %v1339 = vunpack.c.l.b16 %v418
  %v1340 = vunpack.c.l.b16 %v419
  %v1341 = vunpack.c.l.b16 %v420
  %v1342 = vunpack.c.l.b16 %v421
  %v1343 = vunpack.c.l.b16 %v422
  %v1344 = vunpack.c.l.b16 %v423
  %v1345 = vunpack.c.l.b16 %v424
  %v1346 = vunpack.c.l.b16 %v425
  %v1347 = vunpack.c.l.b16 %v426
  %v1348 = vunpack.c.l.b16 %v427
  %v1349 = vunpack.c.l.b16 %v428
  %v1350 = vunpack.c.l.b16 %v429
  %v1351 = vunpack.c.l.b16 %v430
  %v1352 = vunpack.c.l.b16 %v431
  %v1353 = vunpack.c.l.b16 %v432
  %v1354 = vpack.c.b16 %v963, %v962
  %v1355 = vpack.c.b16 %v965, %v964
  %v1356 = vpack.c.b16 %v967, %v966
  %v1357 = vpack.c.b16 %v969, %v968
  %v1358 = vpack.c.b16 %v971, %v970
  %v1359 = vpack.c.b16 %v973, %v972
  %v1360 = vpack.c.b16 %v975, %v974
  %v1361 = vpack.c.b16 %v977, %v976
  %v1362 = vpack.c.b16 %v979, %v978
  %v1363 = vpack.c.b16 %v981, %v980
  %v1364 = vpack.c.b16 %v983, %v982
  %v1365 = vpack.c.b16 %v985, %v984
  %v1366 = vpack.c.b16 %v987, %v986
  %v1367 = vpack.c.b16 %v989, %v988
  %v1368 = vpack.c.b16 %v991, %v990
  %v1369 = vpack.c.b16 %v993, %v992
  %v1370 = vpack.c.b16 %v995, %v994
  %v1371 = vpack.c.b16 %v997, %v996
  %v1372 = vpack.c.b16 %v999, %v998
  %v1373 = vpack.c.b16 %v1001, %v1000
  %v1374 = vpack.c.b16 %v1003, %v1002
  %v1375 = vpack.c.b16 %v1005, %v1004
  %v1376 = vpack.c.b16 %v1007, %v1006
  %v1377 = vpack.c.b16 %v1009, %v1008
  %v1378 = vpack.c.b16 %v1011, %v1010
  %v1379 = vpack.c.b16 %v1013, %v1012
  %v1380 = vpack.c.b16 %v1015, %v1014
  %v1381 = vpack.c.b16 %v1017, %v1016
  %v1382 = vpack.c.b16 %v1019, %v1018
  %v1383 = vpack.c.b16 %v1021, %v1020
  %v1384 = vpack.c.b16 %v1023, %v1022
  %v1385 = vpack.c.b16 %v1025, %v1024
  %v1386 = vpack.c.b16 %v1027, %v1026
  %v1387 = vpack.c.b16 %v1029, %v1028
  %v1388 = vpack.c.b16 %v1031, %v1030
  %v1389 = vpack.c.b16 %v1033, %v1032
  %v1390 = vpack.c.b16 %v1035, %v1034
  %v1391 = vpack.c.b16 %v1037, %v1036
  %v1392 = vpack.c.b16 %v1039, %v1038
  %v1393 = vpack.c.b16 %v1041, %v1040
  %v1394 = vpack.c.b16 %v1043, %v1042
  %v1395 = vpack.c.b16 %v1045, %v1044
  %v1396 = vpack.c.b16 %v1047, %v1046
  %v1397 = vpack.c.b16 %v1049, %v1048
  %v1398 = vpack.c.b16 %v1051, %v1050
  %v1399 = vpack.c.b16 %v1053, %v1052
  %v1400 = vpack.c.b16 %v1055, %v1054
  %v1401 = vpack.c.b16 %v1057, %v1056
  %v1402 = vpack.c.b16 %v1059, %v1058
  %v1403 = vpack.c.b16 %v1061, %v1060
  %v1404 = vpack.c.b16 %v1063, %v1062
  %v1405 = vpack.c.b16 %v1065, %v1064
  %v1406 = vpack.c.b16 %v1067, %v1066
  %v1407 = vpack.c.b16 %v1069, %v1068
  %v1408 = vpack.c.b16 %v1071, %v1070
  %v1409 = vpack.c.b16 %v1073, %v1072
  %v1410 = vpack.c.b16 %v1075, %v1074
  %v1411 = vpack.c.b16 %v1077, %v1076
  %v1412 = vpack.c.b16 %v1079, %v1078
  %v1413 = vpack.c.b16 %v1081, %v1080
  %v1414 = vpack.c.b16 %v1083, %v1082
  %v1415 = vpack.c.b16 %v1085, %v1084
  %v1416 = vpack.c.b16 %v1087, %v1086
  %v1417 = vpack.c.b16 %v1089, %v1088
  %v1418 = vpack.c.b16 %v1091, %v1090
  %v1419 = vpack.c.b16 %v1093, %v1092
  %v1420 = vpack.c.b16 %v1095, %v1094
  %v1421 = vpack.c.b16 %v1097, %v1096
  %v1422 = vpack.c.b16 %v1099, %v1098
  %v1423 = vpack.c.b16 %v1101, %v1100
  %v1424 = vpack.c.b16 %v1103, %v1102
  %v1425 = vpack.c.b16 %v1105, %v1104
  %v1426 = vpack.c.b16 %v1107, %v1106
  %v1427 = vpack.c.b16 %v1109, %v1108
  %v1428 = vpack.c.b16 %v1111, %v1110
  %v1429 = vpack.c.b16 %v1113, %v1112
  %v1430 = vpack.c.b16 %v1115, %v1114
  %v1431 = vpack.c.b16 %v1117, %v1116
  %v1432 = vpack.c.b16 %v1119, %v1118
  %v1433 = vpack.c.b16 %v1121, %v1120
  %v1434 = vpack.c.b16 %v1123, %v1122
  %v1435 = vpack.c.b16 %v1125, %v1124
  %v1436 = vpack.c.b16 %v1127, %v1126
  %v1437 = vpack.c.b16 %v1129, %v1128
  %v1438 = vpack.c.b16 %v1131, %v1130
  %v1439 = vpack.c.b16 %v1133, %v1132
  %v1440 = vpack.c.b16 %v1135, %v1134
  %v1441 = vpack.c.b16 %v1137, %v1136
  %v1442 = vpack.c.b16 %v1139, %v1138
  %v1443 = vpack.c.b16 %v1141, %v1140
  %v1444 = vpack.c.b16 %v1143, %v1142
  %v1445 = vpack.c.b16 %v1145, %v1144
  %v1446 = vpack.c.b16 %v1147, %v1146
  %v1447 = vpack.c.b16 %v1149, %v1148
  %v1448 = vpack.c.b16 %v1151, %v1150
  %v1449 = vpack.c.b16 %v1153, %v1152
  %v1450 = vpack.c.b16 %v1155, %v1154
  %v1451 = vpack.c.b16 %v1157, %v1156
  %v1452 = vpack.c.b16 %v1159, %v1158
  %v1453 = vpack.c.b16 %v1161, %v1160
  %v1454 = vpack.c.b16 %v1163, %v1162
  %v1455 = vpack.c.b16 %v1165, %v1164
  %v1456 = vpack.c.b16 %v1167, %v1166
  %v1457 = vpack.c.b16 %v1169, %v1168
  %v1458 = vpack.c.b16 %v1171, %v1170
  %v1459 = vpack.c.b16 %v1173, %v1172
  %v1460 = vpack.c.b16 %v1175, %v1174
  %v1461 = vpack.c.b16 %v1177, %v1176
  %v1462 = vpack.c.b16 %v1179, %v1178
  %v1463 = vpack.c.b16 %v1181, %v1180
  %v1464 = vpack.c.b16 %v1183, %v1182
  %v1465 = vpack.c.b16 %v1185, %v1184
  %v1466 = vpack.c.b16 %v1187, %v1186
  %v1467 = vpack.c.b16 %v1189, %v1188
  %v1468 = vpack.c.b16 %v1191, %v1190
  %v1469 = vpack.c.b16 %v1193, %v1192
  %v1470 = vpack.c.b16 %v1195, %v1194
  %v1471 = vpack.c.b16 %v1197, %v1196
  %v1472 = vpack.c.b16 %v1199, %v1198
  %v1473 = vpack.c.b16 %v1201, %v1200
  %v1474 = vpack.c.b16 %v1203, %v1202
  %v1475 = vpack.c.b16 %v1205, %v1204
  %v1476 = vpack.c.b16 %v1207, %v1206
  %v1477 = vpack.c.b16 %v1209, %v1208
  %v1478 = vpack.c.b16 %v1211, %v1210
  %v1479 = vpack.c.b16 %v1213, %v1212
  %v1480 = vpack.c.b16 %v1215, %v1214
  %v1481 = vpack.c.b16 %v1217, %v1216
  %v1482 = vpack.c.b16 %v1219, %v1218
  %v1483 = vpack.c.b16 %v1221, %v1220
  %v1484 = vpack.c.b16 %v1223, %v1222
  %v1485 = vpack.c.b16 %v1225, %v1224
  %v1486 = vpack.c.b16 %v1227, %v1226
  %v1487 = vpack.c.b16 %v1229, %v1228
  %v1488 = vpack.c.b16 %v1231, %v1230
  %v1489 = vpack.c.b16 %v1233, %v1232
  %v1490 = vpack.c.b16 %v1235, %v1234
  %v1491 = vpack.c.b16 %v1237, %v1236
  %v1492 = vpack.c.b16 %v1239, %v1238
  %v1493 = vpack.c.b16 %v1241, %v1240
  %v1494 = vpack.c.b16 %v1243, %v1242
  %v1495 = vpack.c.b16 %v1245, %v1244
  %v1496 = vpack.c.b16 %v1247, %v1246
  %v1497 = vpack.c.b16 %v1249, %v1248
  %v1498 = vpack.c.b16 %v1251, %v1250
  %v1499 = vpack.c.b16 %v1253, %v1252
  %v1500 = vpack.c.b16 %v1255, %v1254
  %v1501 = vpack.c.b16 %v1257, %v1256
  %v1502 = vpack.c.b16 %v1259, %v1258
  %v1503 = vpack.c.b16 %v1261, %v1260
  %v1504 = vpack.c.b16 %v1263, %v1262
  %v1505 = vpack.c.b16 %v1265, %v1264
  %v1506 = vpack.c.b16 %v1267, %v1266
  %v1507 = vpack.c.b16 %v1269, %v1268
  %v1508 = vpack.c.b16 %v1271, %v1270
  %v1509 = vpack.c.b16 %v1273, %v1272
  %v1510 = vpack.c.b16 %v1275, %v1274
  %v1511 = vpack.c.b16 %v1277, %v1276
  %v1512 = vpack.c.b16 %v1279, %v1278
  %v1513 = vpack.c.b16 %v1281, %v1280
  %v1514 = vpack.c.b16 %v1283, %v1282
  %v1515 = vpack.c.b16 %v1285, %v1284
  %v1516 = vpack.c.b16 %v1287, %v1286
  %v1517 = vpack.c.b16 %v1289, %v1288
  %v1518 = vpack.c.b16 %v1291, %v1290
  %v1519 = vpack.c.b16 %v1293, %v1292
  %v1520 = vpack.c.b16 %v1295, %v1294
  %v1521 = vpack.c.b16 %v1297, %v1296
  %v1522 = vpack.c.b16 %v1299, %v1298
  %v1523 = vpack.c.b16 %v1301, %v1300
  %v1524 = vpack.c.b16 %v1303, %v1302
  %v1525 = vpack.c.b16 %v1305, %v1304
  %v1526 = vpack.c.b16 %v1307, %v1306
  %v1527 = vpack.c.b16 %v1309, %v1308
  %v1528 = vpack.c.b16 %v1311, %v1310
  %v1529 = vpack.c.b16 %v1313, %v1312
  %v1530 = vpack.c.b16 %v1315, %v1314
  %v1531 = vpack.c.b16 %v1317, %v1316
  %v1532 = vpack.c.b16 %v1319, %v1318
  %v1533 = vpack.c.b16 %v1321, %v1320
  %v1534 = vpack.c.b16 %v1323, %v1322
  %v1535 = vpack.c.b16 %v1325, %v1324
  %v1536 = vpack.c.b16 %v1327, %v1326
  %v1537 = vpack.c.b16 %v1329, %v1328
  %v1538 = vpack.c.b16 %v1331, %v1330
  %v1539 = vpack.c.b16 %v1333, %v1332
  %v1540 = vpack.c.b16 %v1335, %v1334
  %v1541 = vpack.c.b16 %v1337, %v1336
  %v1542 = vpack.c.b16 %v1339, %v1338
  %v1543 = vpack.c.b16 %v1341, %v1340
  %v1544 = vpack.c.b16 %v1343, %v1342
  %v1545 = vpack.c.b16 %v1345, %v1344
  %v1546 = vpack.c.b16 %v1347, %v1346
  %v1547 = vpack.c.b16 %v1349, %v1348
  %v1548 = vpack.c.b16 %v1351, %v1350
  %v1549 = vpack.c.b16 %v1353, %v1352
  %vm1746 = vcmask 523264
  %v1748 = vsel %vm1746, %v545, 0
  %1750 = vmatpush.bf16.msra.mxu0 %v1361
  %1751 = vmatpush.bf16.msra.mxu0 %v1360
  %1752 = vmatpush.bf16.msra.mxu0 %v1359
  %1753 = vmatpush.bf16.msra.mxu0 %v1358
  %1754 = vmatpush.bf16.msra.mxu0 %v1357
  %1755 = vmatpush.bf16.msra.mxu0 %v1356
  %1756 = vmatpush.bf16.msra.mxu0 %v1355
  %1757 = vmatpush.bf16.msra.mxu0 %v1354
  %1758 = vmatmul.bf16.gmra.mxu0 %v521
  %v1759 = vpop.f32.mrf.mxu0
  %v1760 = vadd.f32 %v438, %v1759
  %v1761 = vpop.f32.mrf.mxu0
  %v1762 = vadd.f32 %v443, %v1761
  %1763 = vdwg.mxu0
  %1764 = vmatpush.bf16.msra.mxu0 %v1369
  %1765 = vmatpush.bf16.msra.mxu0 %v1368
  %1766 = vmatpush.bf16.msra.mxu0 %v1367
  %1767 = vmatpush.bf16.msra.mxu0 %v1366
  %1768 = vmatpush.bf16.msra.mxu0 %v1365
  %1769 = vmatpush.bf16.msra.mxu0 %v1364
  %1770 = vmatpush.bf16.msra.mxu0 %v1363
  %1771 = vmatpush.bf16.msra.mxu0 %v1362
  %1772 = vmatmul.bf16.gmra.mxu0 %v522
  %v1773 = vpop.f32.mrf.mxu0
  %v1774 = vadd.f32 %v1760, %v1773
  %v1775 = vpop.f32.mrf.mxu0
  %v1776 = vadd.f32 %v1762, %v1775
  %1777 = vdwg.mxu0
  %1778 = vmatpush.bf16.msra.mxu0 %v1377
  %1779 = vmatpush.bf16.msra.mxu0 %v1376
  %1780 = vmatpush.bf16.msra.mxu0 %v1375
  %1781 = vmatpush.bf16.msra.mxu0 %v1374
  %1782 = vmatpush.bf16.msra.mxu0 %v1373
  %1783 = vmatpush.bf16.msra.mxu0 %v1372
  %1784 = vmatpush.bf16.msra.mxu0 %v1371
  %1785 = vmatpush.bf16.msra.mxu0 %v1370
  %1786 = vmatmul.bf16.gmra.mxu0 %v523
  %v1787 = vpop.f32.mrf.mxu0
  %v1788 = vadd.f32 %v1774, %v1787
  %v1789 = vpop.f32.mrf.mxu0
  %v1790 = vadd.f32 %v1776, %v1789
  %1791 = vdwg.mxu0
  %1792 = vmatpush.bf16.msra.mxu0 %v1385
  %1793 = vmatpush.bf16.msra.mxu0 %v1384
  %1794 = vmatpush.bf16.msra.mxu0 %v1383
  %1795 = vmatpush.bf16.msra.mxu0 %v1382
  %1796 = vmatpush.bf16.msra.mxu0 %v1381
  %1797 = vmatpush.bf16.msra.mxu0 %v1380
  %1798 = vmatpush.bf16.msra.mxu0 %v1379
  %1799 = vmatpush.bf16.msra.mxu0 %v1378
  %1800 = vmatmul.bf16.gmra.mxu0 %v524
  %v1801 = vpop.f32.mrf.mxu0
  %v1802 = vadd.f32 %v1788, %v1801
  %v1803 = vpop.f32.mrf.mxu0
  %v1804 = vadd.f32 %v1790, %v1803
  %1805 = vdwg.mxu0
  %1806 = vmatpush.bf16.msra.mxu0 %v1393
  %1807 = vmatpush.bf16.msra.mxu0 %v1392
  %1808 = vmatpush.bf16.msra.mxu0 %v1391
  %1809 = vmatpush.bf16.msra.mxu0 %v1390
  %1810 = vmatpush.bf16.msra.mxu0 %v1389
  %1811 = vmatpush.bf16.msra.mxu0 %v1388
  %1812 = vmatpush.bf16.msra.mxu0 %v1387
  %1813 = vmatpush.bf16.msra.mxu0 %v1386
  %1814 = vmatmul.bf16.gmra.mxu0 %v525
  %v1815 = vpop.f32.mrf.mxu0
  %v1816 = vadd.f32 %v1802, %v1815
  %v1817 = vpop.f32.mrf.mxu0
  %v1818 = vadd.f32 %v1804, %v1817
  %1819 = vdwg.mxu0
  %1820 = vmatpush.bf16.msra.mxu0 %v1401
  %1821 = vmatpush.bf16.msra.mxu0 %v1400
  %1822 = vmatpush.bf16.msra.mxu0 %v1399
  %1823 = vmatpush.bf16.msra.mxu0 %v1398
  %1824 = vmatpush.bf16.msra.mxu0 %v1397
  %1825 = vmatpush.bf16.msra.mxu0 %v1396
  %1826 = vmatpush.bf16.msra.mxu0 %v1395
  %1827 = vmatpush.bf16.msra.mxu0 %v1394
  %1828 = vmatmul.bf16.gmra.mxu0 %v526
  %v1829 = vpop.f32.mrf.mxu0
  %v1830 = vadd.f32 %v1816, %v1829
  %v1831 = vpop.f32.mrf.mxu0
  %v1832 = vadd.f32 %v1818, %v1831
  %1833 = vdwg.mxu0
  %1834 = vmatpush.bf16.msra.mxu0 %v1409
  %1835 = vmatpush.bf16.msra.mxu0 %v1408
  %1836 = vmatpush.bf16.msra.mxu0 %v1407
  %1837 = vmatpush.bf16.msra.mxu0 %v1406
  %1838 = vmatpush.bf16.msra.mxu0 %v1405
  %1839 = vmatpush.bf16.msra.mxu0 %v1404
  %1840 = vmatpush.bf16.msra.mxu0 %v1403
  %1841 = vmatpush.bf16.msra.mxu0 %v1402
  %1842 = vmatmul.bf16.gmra.mxu0 %v527
  %v1843 = vpop.f32.mrf.mxu0
  %v1844 = vadd.f32 %v1830, %v1843
  %v1845 = vpop.f32.mrf.mxu0
  %v1846 = vadd.f32 %v1832, %v1845
  %1847 = vdwg.mxu0
  %1848 = vmatpush.bf16.msra.mxu0 %v1417
  %1849 = vmatpush.bf16.msra.mxu0 %v1416
  %1850 = vmatpush.bf16.msra.mxu0 %v1415
  %1851 = vmatpush.bf16.msra.mxu0 %v1414
  %1852 = vmatpush.bf16.msra.mxu0 %v1413
  %1853 = vmatpush.bf16.msra.mxu0 %v1412
  %1854 = vmatpush.bf16.msra.mxu0 %v1411
  %1855 = vmatpush.bf16.msra.mxu0 %v1410
  %1856 = vmatmul.bf16.gmra.mxu0 %v528
  %v1857 = vpop.f32.mrf.mxu0
  %v1858 = vadd.f32 %v1844, %v1857
  %v1859 = vpop.f32.mrf.mxu0
  %v1860 = vadd.f32 %v1846, %v1859
  %1861 = vdwg.mxu0
  %1862 = vmatpush.bf16.msra.mxu0 %v1425
  %1863 = vmatpush.bf16.msra.mxu0 %v1424
  %1864 = vmatpush.bf16.msra.mxu0 %v1423
  %1865 = vmatpush.bf16.msra.mxu0 %v1422
  %1866 = vmatpush.bf16.msra.mxu0 %v1421
  %1867 = vmatpush.bf16.msra.mxu0 %v1420
  %1868 = vmatpush.bf16.msra.mxu0 %v1419
  %1869 = vmatpush.bf16.msra.mxu0 %v1418
  %1870 = vmatmul.bf16.gmra.mxu0 %v529
  %v1871 = vpop.f32.mrf.mxu0
  %v1872 = vadd.f32 %v1858, %v1871
  %v1873 = vpop.f32.mrf.mxu0
  %v1874 = vadd.f32 %v1860, %v1873
  %1875 = vdwg.mxu0
  %1876 = vmatpush.bf16.msra.mxu0 %v1433
  %1877 = vmatpush.bf16.msra.mxu0 %v1432
  %1878 = vmatpush.bf16.msra.mxu0 %v1431
  %1879 = vmatpush.bf16.msra.mxu0 %v1430
  %1880 = vmatpush.bf16.msra.mxu0 %v1429
  %1881 = vmatpush.bf16.msra.mxu0 %v1428
  %1882 = vmatpush.bf16.msra.mxu0 %v1427
  %1883 = vmatpush.bf16.msra.mxu0 %v1426
  %1884 = vmatmul.bf16.gmra.mxu0 %v530
  %v1885 = vpop.f32.mrf.mxu0
  %v1886 = vadd.f32 %v1872, %v1885
  %v1887 = vpop.f32.mrf.mxu0
  %v1888 = vadd.f32 %v1874, %v1887
  %1889 = vdwg.mxu0
  %1890 = vmatpush.bf16.msra.mxu0 %v1441
  %1891 = vmatpush.bf16.msra.mxu0 %v1440
  %1892 = vmatpush.bf16.msra.mxu0 %v1439
  %1893 = vmatpush.bf16.msra.mxu0 %v1438
  %1894 = vmatpush.bf16.msra.mxu0 %v1437
  %1895 = vmatpush.bf16.msra.mxu0 %v1436
  %1896 = vmatpush.bf16.msra.mxu0 %v1435
  %1897 = vmatpush.bf16.msra.mxu0 %v1434
  %1898 = vmatmul.bf16.gmra.mxu0 %v531
  %v1899 = vpop.f32.mrf.mxu0
  %v1900 = vadd.f32 %v1886, %v1899
  %v1901 = vpop.f32.mrf.mxu0
  %v1902 = vadd.f32 %v1888, %v1901
  %1903 = vdwg.mxu0
  %1904 = vmatpush.bf16.msra.mxu0 %v1449
  %1905 = vmatpush.bf16.msra.mxu0 %v1448
  %1906 = vmatpush.bf16.msra.mxu0 %v1447
  %1907 = vmatpush.bf16.msra.mxu0 %v1446
  %1908 = vmatpush.bf16.msra.mxu0 %v1445
  %1909 = vmatpush.bf16.msra.mxu0 %v1444
  %1910 = vmatpush.bf16.msra.mxu0 %v1443
  %1911 = vmatpush.bf16.msra.mxu0 %v1442
  %1912 = vmatmul.bf16.gmra.mxu0 %v532
  %v1913 = vpop.f32.mrf.mxu0
  %v1914 = vadd.f32 %v1900, %v1913
  %v1915 = vpop.f32.mrf.mxu0
  %v1916 = vadd.f32 %v1902, %v1915
  %1917 = vdwg.mxu0
  %1918 = vmatpush.bf16.msra.mxu0 %v1457
  %1919 = vmatpush.bf16.msra.mxu0 %v1456
  %1920 = vmatpush.bf16.msra.mxu0 %v1455
  %1921 = vmatpush.bf16.msra.mxu0 %v1454
  %1922 = vmatpush.bf16.msra.mxu0 %v1453
  %1923 = vmatpush.bf16.msra.mxu0 %v1452
  %1924 = vmatpush.bf16.msra.mxu0 %v1451
  %1925 = vmatpush.bf16.msra.mxu0 %v1450
  %1926 = vmatmul.bf16.gmra.mxu0 %v533
  %v1927 = vpop.f32.mrf.mxu0
  %v1928 = vadd.f32 %v1914, %v1927
  %v1929 = vpop.f32.mrf.mxu0
  %v1930 = vadd.f32 %v1916, %v1929
  %1931 = vdwg.mxu0
  %1932 = vmatpush.bf16.msra.mxu0 %v1465
  %1933 = vmatpush.bf16.msra.mxu0 %v1464
  %1934 = vmatpush.bf16.msra.mxu0 %v1463
  %1935 = vmatpush.bf16.msra.mxu0 %v1462
  %1936 = vmatpush.bf16.msra.mxu0 %v1461
  %1937 = vmatpush.bf16.msra.mxu0 %v1460
  %1938 = vmatpush.bf16.msra.mxu0 %v1459
  %1939 = vmatpush.bf16.msra.mxu0 %v1458
  %1940 = vmatmul.bf16.gmra.mxu0 %v534
  %v1941 = vpop.f32.mrf.mxu0
  %v1942 = vadd.f32 %v1928, %v1941
  %v1943 = vpop.f32.mrf.mxu0
  %v1944 = vadd.f32 %v1930, %v1943
  %1945 = vdwg.mxu0
  %1946 = vmatpush.bf16.msra.mxu0 %v1473
  %1947 = vmatpush.bf16.msra.mxu0 %v1472
  %1948 = vmatpush.bf16.msra.mxu0 %v1471
  %1949 = vmatpush.bf16.msra.mxu0 %v1470
  %1950 = vmatpush.bf16.msra.mxu0 %v1469
  %1951 = vmatpush.bf16.msra.mxu0 %v1468
  %1952 = vmatpush.bf16.msra.mxu0 %v1467
  %1953 = vmatpush.bf16.msra.mxu0 %v1466
  %1954 = vmatmul.bf16.gmra.mxu0 %v535
  %v1955 = vpop.f32.mrf.mxu0
  %v1956 = vadd.f32 %v1942, %v1955
  %v1957 = vpop.f32.mrf.mxu0
  %v1958 = vadd.f32 %v1944, %v1957
  %1959 = vdwg.mxu0
  %1960 = vmatpush.bf16.msra.mxu0 %v1481
  %1961 = vmatpush.bf16.msra.mxu0 %v1480
  %1962 = vmatpush.bf16.msra.mxu0 %v1479
  %1963 = vmatpush.bf16.msra.mxu0 %v1478
  %1964 = vmatpush.bf16.msra.mxu0 %v1477
  %1965 = vmatpush.bf16.msra.mxu0 %v1476
  %1966 = vmatpush.bf16.msra.mxu0 %v1475
  %1967 = vmatpush.bf16.msra.mxu0 %v1474
  %1968 = vmatmul.bf16.gmra.mxu0 %v536
  %v1969 = vpop.f32.mrf.mxu0
  %v1970 = vadd.f32 %v1956, %v1969
  %v1971 = vpop.f32.mrf.mxu0
  %v1972 = vadd.f32 %v1958, %v1971
  %1973 = vdwg.mxu0
  %1974 = vmatpush.bf16.msra.mxu0 %v1489
  %1975 = vmatpush.bf16.msra.mxu0 %v1488
  %1976 = vmatpush.bf16.msra.mxu0 %v1487
  %1977 = vmatpush.bf16.msra.mxu0 %v1486
  %1978 = vmatpush.bf16.msra.mxu0 %v1485
  %1979 = vmatpush.bf16.msra.mxu0 %v1484
  %1980 = vmatpush.bf16.msra.mxu0 %v1483
  %1981 = vmatpush.bf16.msra.mxu0 %v1482
  %1982 = vmatmul.bf16.gmra.mxu0 %v537
  %v1983 = vpop.f32.mrf.mxu0
  %v1984 = vadd.f32 %v1970, %v1983
  %v1985 = vpop.f32.mrf.mxu0
  %v1986 = vadd.f32 %v1972, %v1985
  %1987 = vdwg.mxu0
  %1988 = vmatpush.bf16.msra.mxu0 %v1497
  %1989 = vmatpush.bf16.msra.mxu0 %v1496
  %1990 = vmatpush.bf16.msra.mxu0 %v1495
  %1991 = vmatpush.bf16.msra.mxu0 %v1494
  %1992 = vmatpush.bf16.msra.mxu0 %v1493
  %1993 = vmatpush.bf16.msra.mxu0 %v1492
  %1994 = vmatpush.bf16.msra.mxu0 %v1491
  %1995 = vmatpush.bf16.msra.mxu0 %v1490
  %1996 = vmatmul.bf16.gmra.mxu0 %v538
  %v1997 = vpop.f32.mrf.mxu0
  %v1998 = vadd.f32 %v1984, %v1997
  %v1999 = vpop.f32.mrf.mxu0
  %v2000 = vadd.f32 %v1986, %v1999
  %2001 = vdwg.mxu0
  %2002 = vmatpush.bf16.msra.mxu0 %v1505
  %2003 = vmatpush.bf16.msra.mxu0 %v1504
  %2004 = vmatpush.bf16.msra.mxu0 %v1503
  %2005 = vmatpush.bf16.msra.mxu0 %v1502
  %2006 = vmatpush.bf16.msra.mxu0 %v1501
  %2007 = vmatpush.bf16.msra.mxu0 %v1500
  %2008 = vmatpush.bf16.msra.mxu0 %v1499
  %2009 = vmatpush.bf16.msra.mxu0 %v1498
  %2010 = vmatmul.bf16.gmra.mxu0 %v539
  %v2011 = vpop.f32.mrf.mxu0
  %v2012 = vadd.f32 %v1998, %v2011
  %v2013 = vpop.f32.mrf.mxu0
  %v2014 = vadd.f32 %v2000, %v2013
  %2015 = vdwg.mxu0
  %2016 = vmatpush.bf16.msra.mxu0 %v1513
  %2017 = vmatpush.bf16.msra.mxu0 %v1512
  %2018 = vmatpush.bf16.msra.mxu0 %v1511
  %2019 = vmatpush.bf16.msra.mxu0 %v1510
  %2020 = vmatpush.bf16.msra.mxu0 %v1509
  %2021 = vmatpush.bf16.msra.mxu0 %v1508
  %2022 = vmatpush.bf16.msra.mxu0 %v1507
  %2023 = vmatpush.bf16.msra.mxu0 %v1506
  %2024 = vmatmul.bf16.gmra.mxu0 %v540
  %v2025 = vpop.f32.mrf.mxu0
  %v2026 = vadd.f32 %v2012, %v2025
  %v2027 = vpop.f32.mrf.mxu0
  %v2028 = vadd.f32 %v2014, %v2027
  %2029 = vdwg.mxu0
  %2030 = vmatpush.bf16.msra.mxu0 %v1521
  %2031 = vmatpush.bf16.msra.mxu0 %v1520
  %2032 = vmatpush.bf16.msra.mxu0 %v1519
  %2033 = vmatpush.bf16.msra.mxu0 %v1518
  %2034 = vmatpush.bf16.msra.mxu0 %v1517
  %2035 = vmatpush.bf16.msra.mxu0 %v1516
  %2036 = vmatpush.bf16.msra.mxu0 %v1515
  %2037 = vmatpush.bf16.msra.mxu0 %v1514
  %2038 = vmatmul.bf16.gmra.mxu0 %v541
  %v2039 = vpop.f32.mrf.mxu0
  %v2040 = vadd.f32 %v2026, %v2039
  %v2041 = vpop.f32.mrf.mxu0
  %v2042 = vadd.f32 %v2028, %v2041
  %2043 = vdwg.mxu0
  %2044 = vmatpush.bf16.msra.mxu0 %v1529
  %2045 = vmatpush.bf16.msra.mxu0 %v1528
  %2046 = vmatpush.bf16.msra.mxu0 %v1527
  %2047 = vmatpush.bf16.msra.mxu0 %v1526
  %2048 = vmatpush.bf16.msra.mxu0 %v1525
  %2049 = vmatpush.bf16.msra.mxu0 %v1524
  %2050 = vmatpush.bf16.msra.mxu0 %v1523
  %2051 = vmatpush.bf16.msra.mxu0 %v1522
  %2052 = vmatmul.bf16.gmra.mxu0 %v542
  %v2053 = vpop.f32.mrf.mxu0
  %v2054 = vadd.f32 %v2040, %v2053
  %v2055 = vpop.f32.mrf.mxu0
  %v2056 = vadd.f32 %v2042, %v2055
  %2057 = vdwg.mxu0
  %2058 = vmatpush.bf16.msra.mxu0 %v1537
  %2059 = vmatpush.bf16.msra.mxu0 %v1536
  %2060 = vmatpush.bf16.msra.mxu0 %v1535
  %2061 = vmatpush.bf16.msra.mxu0 %v1534
  %2062 = vmatpush.bf16.msra.mxu0 %v1533
  %2063 = vmatpush.bf16.msra.mxu0 %v1532
  %2064 = vmatpush.bf16.msra.mxu0 %v1531
  %2065 = vmatpush.bf16.msra.mxu0 %v1530
  %2066 = vmatmul.bf16.gmra.mxu0 %v543
  %v2067 = vpop.f32.mrf.mxu0
  %v2068 = vadd.f32 %v2054, %v2067
  %v2069 = vpop.f32.mrf.mxu0
  %v2070 = vadd.f32 %v2056, %v2069
  %2071 = vdwg.mxu0
  %2072 = vmatpush.bf16.msra.mxu0 %v1545
  %2073 = vmatpush.bf16.msra.mxu0 %v1544
  %2074 = vmatpush.bf16.msra.mxu0 %v1543
  %2075 = vmatpush.bf16.msra.mxu0 %v1542
  %2076 = vmatpush.bf16.msra.mxu0 %v1541
  %2077 = vmatpush.bf16.msra.mxu0 %v1540
  %2078 = vmatpush.bf16.msra.mxu0 %v1539
  %2079 = vmatpush.bf16.msra.mxu0 %v1538
  %2080 = vmatmul.bf16.gmra.mxu0 %v544
  %v2081 = vpop.f32.mrf.mxu0
  %v2082 = vadd.f32 %v2068, %v2081
  %v2083 = vpop.f32.mrf.mxu0
  %v2084 = vadd.f32 %v2070, %v2083
  %2085 = vdwg.mxu0
  %2086 = vmatpush.bf16.msra.mxu0 0
  %2087 = vmatpush.bf16.msra.mxu0 0
  %2088 = vmatpush.bf16.msra.mxu0 0
  %2089 = vmatpush.bf16.msra.mxu0 0
  %2090 = vmatpush.bf16.msra.mxu0 %v1549
  %2091 = vmatpush.bf16.msra.mxu0 %v1548
  %2092 = vmatpush.bf16.msra.mxu0 %v1547
  %2093 = vmatpush.bf16.msra.mxu0 %v1546
  %2094 = vmatmul.bf16.gmra.mxu0 %v1748
  %v2095 = vpop.f32.mrf.mxu0
  %v2096 = vadd.f32 %v2082, %v2095
  %v2097 = vpop.f32.mrf.mxu0
  %v2098 = vadd.f32 %v2084, %v2097
  %2099 = vdwg.mxu0
  %2100 = vst [vmem:[%s3] sm:$0xff] %v2096
  %2101 = vst [vmem:[%s3 + $0x8] sm:$0xff] %v2098
  // Predicated region
  $region14: #{cnn_forward.9} parent=0 // pred_check
    _
  $region15: #{cnn_forward.9} parent=0 // pred_check_branch
    %2103 = sbr.rel (0) target = $region17
  $region16: #{cnn_forward.9} parent=0 // pred_region
    _
  $region17: #{cnn_forward.9} parent=0 // pred_fallthru
    _
  // Predicated region
  $region18: #{cnn_forward.9} parent=0 // pred_check
    _
  $region19: #{cnn_forward.9} parent=0 // pred_check_branch
    %2105 = sbr.rel (0) target = $region21
  $region20: #{cnn_forward.9} parent=0 // pred_region
    _
  $region21: #{cnn_forward.9} parent=0 // pred_fallthru
    _

</llo_original>
